<compile_context>
chip_gen: v7x
topology: tpu7x:2x2x1
jax: 0.10.0
libtpu: 0.0.40
codegen_flags: <defaults>
</compile_context>

<pallas_src>
import functools

import jax
import jax.numpy as jnp
from jax import lax
from jax.experimental import pallas as pl
from jax.experimental.pallas import tpu as pltpu

POOL_KS = (5, 9, 13)
RPAD = POOL_KS[0] // 2          # 2: halo radius of one cascaded 5x5 pass
BN_EPS = 1e-5


def _vmem_limit_bytes():
    # Generation-aware scoped-VMEM budget: ~3/4 of physical, capped at 96 MiB
    # (128 MiB phys on v5e/v6e -> 96 MiB; 64 MiB phys on v7x -> 48 MiB).
    try:
        phys = pltpu.get_tpu_info().vmem_capacity_bytes
    except Exception:
        phys = 64 * 1024 * 1024
    return int(min(phys * 3 // 4, 96 * 1024 * 1024))


VMEM_LIMIT = _vmem_limit_bytes()


def _pick_row_tile(m, candidates=(2048, 1024, 512, 256, 128)):
    # Largest candidate <= m; the grid uses cdiv + masked tail blocks, so no
    # divisibility requirement.  Tiny inputs use a single full block.
    for t in candidates:
        if m >= t:
            return t
    return m


# ----------------------------------------------------------------------------
# pltpu.roll capability / rotation-direction probe (run once, eagerly).
#   "jnp"     : roll(x, s, axis)[i] == x[(i - s) % n]   (jnp.roll convention)
#   "flipped" : roll(x, s, axis)[i] == x[(i + s) % n]
#   "scratch" : rolls unavailable -> use the -inf-padded-scratch fallback.
# ----------------------------------------------------------------------------
_ROLL_MODE = None


def _roll_probe_kernel(x_ref, o_ref):
    o_ref[...] = pltpu.roll(x_ref[...], shift=1, axis=2)


def _probe_roll_mode():
    global _ROLL_MODE
    if _ROLL_MODE is not None:
        return _ROLL_MODE
    shape = (1, 2, 16, 8)
    x = jnp.broadcast_to(
        jnp.arange(16, dtype=jnp.float32).reshape(1, 1, 16, 1), shape)
    try:
        out = jax.block_until_ready(
            pl.pallas_call(
                _roll_probe_kernel,
                out_shape=jax.ShapeDtypeStruct(shape, jnp.float32),
            )(x))
        if bool(jnp.array_equal(out, jnp.roll(x, 1, axis=2))):
            _ROLL_MODE = "jnp"
        elif bool(jnp.array_equal(out, jnp.roll(x, -1, axis=2))):
            _ROLL_MODE = "flipped"
        else:
            _ROLL_MODE = "scratch"
    except Exception:
        _ROLL_MODE = "scratch"
    return _ROLL_MODE


# ----------------------------------------------------------------------------
# Kernel 1: pointwise (1x1) conv (BN scale pre-folded into the weights) + bias
#           + Hardswish, tiled over rows.
#   x_ref: (tm, Cin) bf16   w_ref: (Cin, Cout) bf16   b_ref: (1, Cout) f32
# ----------------------------------------------------------------------------
def _pw_conv_kernel(x_ref, w_ref, b_ref, o_ref):
    y = jnp.dot(x_ref[...], w_ref[...], preferred_element_type=jnp.float32)
    y = y + b_ref[...]
    # Hardswish: x * relu6(x + 3) / 6
    o_ref[...] = (y * jnp.clip(y + 3.0, 0.0, 6.0) * (1.0 / 6.0)).astype(o_ref.dtype)


def pw_conv_bias_hswish(x2d, w, bias, out_dtype=jnp.bfloat16):
    m, cin = x2d.shape
    cout = w.shape[1]
    tm = _pick_row_tile(m)
    # cdiv grid: a partial tail block reads unspecified rows and its
    # out-of-bounds output rows are masked on writeback (row-wise op -> safe).
    return pl.pallas_call(
        _pw_conv_kernel,
        out_shape=jax.ShapeDtypeStruct((m, cout), out_dtype),
        grid=(pl.cdiv(m, tm),),
        in_specs=[
            pl.BlockSpec((tm, cin), lambda i: (i, 0)),
            pl.BlockSpec((cin, cout), lambda i: (0, 0)),
            pl.BlockSpec((1, cout), lambda i: (0, 0)),
        ],
        out_specs=pl.BlockSpec((tm, cout), lambda i: (i, 0)),
        compiler_params=pltpu.CompilerParams(
            dimension_semantics=("parallel",),
            vmem_limit_bytes=VMEM_LIMIT,
        ),
    )(x2d, w, bias.reshape(1, -1).astype(jnp.float32))


# ----------------------------------------------------------------------------
# Kernel 2: FUSED SPP + conv2.
# Three cascaded, separable 5x5 stride-1 'same' max passes reproduce the
# 5 / 9 / 13 pools exactly.  Each group's conv2 contribution is accumulated on
# the MXU into a VMEM f32 scratch, so the pooled groups never leave VMEM.
#   x_ref: (1, H, W, Cm) bf16   w_ref: (4, Cm, C1) bf16   b_ref: (1, C1) f32
#   o_ref: (1, H*W, C1)         acc_ref: VMEM (H*W, C1) f32
# ----------------------------------------------------------------------------
def _spp_conv2_kernel(roll_mode, x_ref, w_ref, b_ref, o_ref, acc_ref, *padw):
    _, h, w, cm = x_ref.shape
    hw = h * w
    neg_inf = jnp.float32(-jnp.inf)

    x = x_ref[...]                                     # (1, H, W, Cm) bf16
    # conv2 contribution of the identity group (MXU, f32 accumulation).
    acc_ref[...] = jnp.dot(x.reshape(hw, cm), w_ref[0],
                           preferred_element_type=jnp.float32)

    # Pooling math in f32 (exact for max, and v5e has no bf16 VALU).
    # TODO(synk): run the cascade in bf16 on v6e/v7x to halve vreg footprint.
    p = x.astype(jnp.float32)

    # Hoisted constants for the shifted-window maxima.
    ninf_rows = [jnp.full((1, d, w, cm), neg_inf, jnp.float32)
                 for d in range(1, RPAD + 1)]
    if roll_mode == "scratch":
        padw_ref, = padw
        halo_w = jnp.full((1, h, RPAD, cm), neg_inf, jnp.float32)
        padw_ref[:, :, 0:RPAD] = halo_w
        padw_ref[:, :, RPAD + w:2 * RPAD + w] = halo_w
    else:
        w_idx = lax.broadcasted_iota(jnp.int32, (1, h, w, cm), 2)
        plus_ok = [w_idx < (w - d) for d in range(1, RPAD + 1)]   # valid for m[i+d]
        minus_ok = [w_idx >= d for d in range(1, RPAD + 1)]       # valid for m[i-d]

    for g in range(len(POOL_KS)):            # cascade: 5, then 9, then 13
        # ---- H direction (major dim): value slices + concat, no scratch ----
        m = p
        for d in range(1, RPAD + 1):
            fwd = jnp.concatenate([p[:, d:h], ninf_rows[d - 1]], axis=1)   # p[i+d]
            bwd = jnp.concatenate([ninf_rows[d - 1], p[:, 0:h - d]], axis=1)  # p[i-d]
            m = jnp.maximum(m, jnp.maximum(fwd, bwd))
        # ---- W direction (sublane dim) ----
        if roll_mode == "scratch":
            # Fallback: -inf-padded scratch + shifted slices (proven path).
            padw_ref[:, :, RPAD:RPAD + w] = m
            p = padw_ref[:, :, 0:w]
            for d in range(1, 2 * RPAD + 1):
                p = jnp.maximum(p, padw_ref[:, :, d:d + w])
        else:
            # XLU rolls + -inf edge masks: no scratch, no retiling copies.
            p = m
            for d in range(1, RPAD + 1):
                s_plus = (w - d) if roll_mode == "jnp" else d     # -> m[i + d]
                s_minus = d if roll_mode == "jnp" else (w - d)    # -> m[i - d]
                r_plus = jnp.where(plus_ok[d - 1],
                                   pltpu.roll(m, shift=s_plus, axis=2), neg_inf)
                r_minus = jnp.where(minus_ok[d - 1],
                                    pltpu.roll(m, shift=s_minus, axis=2), neg_inf)
                p = jnp.maximum(p, jnp.maximum(r_plus, r_minus))
        # conv2 contribution of this pool group; the pooled tensor stays in VMEM.
        # TODO(synk): when Cm % 128 == 0, stage the four groups lane-concatenated
        # in a bf16 scratch and use a single K = 4*Cm matmul instead.
        acc_ref[...] += jnp.dot(p.astype(jnp.bfloat16).reshape(hw, cm),
                                w_ref[g + 1],
                                preferred_element_type=jnp.float32)

    y = acc_ref[...] + b_ref[...]
    o_ref[0] = (y * jnp.clip(y + 3.0, 0.0, 6.0) * (1.0 / 6.0)).astype(o_ref.dtype)


def spp_conv2(hid, w2, bias2, out_dtype=jnp.float32):
    # hid: (N, H, W, Cm) bf16 -> (N, H*W, C1) out_dtype
    n, h, w, cm = hid.shape
    c1 = w2.shape[-1]
    roll_mode = _probe_roll_mode()
    scratch_shapes = [pltpu.VMEM((h * w, c1), jnp.float32)]
    if roll_mode == "scratch":
        scratch_shapes.append(pltpu.VMEM((1, h, w + 2 * RPAD, cm), jnp.float32))
    # TODO(synk): for production feature maps on v7x (64 MiB VMEM), tile H with
    # a +/-6-row halo (3 passes x RPAD) and mark that axis 'parallel' so both
    # TensorCores get work even when N == 1.
    return pl.pallas_call(
        functools.partial(_spp_conv2_kernel, roll_mode),
        out_shape=jax.ShapeDtypeStruct((n, h * w, c1), out_dtype),
        grid=(n,),
        in_specs=[
            pl.BlockSpec((1, h, w, cm), lambda i: (i, 0, 0, 0)),
            pl.BlockSpec((4, cm, c1), lambda i: (0, 0, 0)),
            pl.BlockSpec((1, c1), lambda i: (0, 0)),
        ],
        out_specs=pl.BlockSpec((1, h * w, c1), lambda i: (i, 0, 0)),
        scratch_shapes=scratch_shapes,
        compiler_params=pltpu.CompilerParams(
            dimension_semantics=("parallel",),
            vmem_limit_bytes=VMEM_LIMIT,
        ),
    )(hid, w2, bias2.reshape(1, -1).astype(jnp.float32))


# ----------------------------------------------------------------------------
# Parameters (deterministic), BN folding, full forward, pure-JAX reference.
# ----------------------------------------------------------------------------
def make_params(c1, key):
    cm = c1 // 2
    ks = jax.random.split(key, 10)
    w1 = 0.1 * jax.random.normal(ks[0], (c1, cm), jnp.float32)      # (Cin, Cout)
    w2 = 0.1 * jax.random.normal(ks[1], (4, cm, c1), jnp.float32)   # grouped (4*cm, c1)
    g1 = 1.0 + 0.1 * jax.random.normal(ks[2], (cm,), jnp.float32)
    b1 = 0.1 * jax.random.normal(ks[3], (cm,), jnp.float32)
    m1 = 0.05 * jax.random.normal(ks[4], (cm,), jnp.float32)
    v1 = jax.random.uniform(ks[5], (cm,), jnp.float32, 0.5, 1.5)
    g2 = 1.0 + 0.1 * jax.random.normal(ks[6], (c1,), jnp.float32)
    b2 = 0.1 * jax.random.normal(ks[7], (c1,), jnp.float32)
    m2 = 0.05 * jax.random.normal(ks[8], (c1,), jnp.float32)
    v2 = jax.random.uniform(ks[9], (c1,), jnp.float32, 0.5, 1.5)
    return dict(w1=w1, g1=g1, b1=b1, m1=m1, v1=v1,
                w2=w2, g2=g2, b2=b2, m2=m2, v2=v2)


def fold_bn(gamma, beta, mean, var, eps=BN_EPS):
    scale = gamma / jnp.sqrt(var + eps)
    return scale, beta - mean * scale


def prepare_params(p):
    s1, bias1 = fold_bn(p["g1"], p["b1"], p["m1"], p["v1"])
    s2, bias2 = fold_bn(p["g2"], p["b2"], p["m2"], p["v2"])
    w1f = (p["w1"] * s1[None, :]).astype(jnp.bfloat16)              # (C1, Cm)
    w2f = (p["w2"] * s2[None, None, :]).astype(jnp.bfloat16)        # (4, Cm, C1)
    return w1f, bias1, w2f, bias2


def spp_forward(x_nchw, w1f, bias1, w2f, bias2):
    _probe_roll_mode()   # resolve the roll probe eagerly, outside the jit trace
    return _spp_forward_jit(x_nchw, w1f, bias1, w2f, bias2)


@jax.jit
def _spp_forward_jit(x_nchw, w1f, bias1, w2f, bias2):
    n, c1, h, w = x_nchw.shape
    cm = w1f.shape[1]
    x = jnp.transpose(x_nchw, (0, 2, 3, 1)).astype(jnp.bfloat16)    # NHWC bf16
    # conv1 (1x1): row-tiled MXU matmul, bf16 writeback (halves HBM traffic
    # into the fused SPP+conv2 stage).
    hid = pw_conv_bias_hswish(x.reshape(n * h * w, c1), w1f, bias1,
                              out_dtype=jnp.bfloat16)
    hid = hid.reshape(n, h, w, cm)
    # Fused SPP pooling + channel concat + conv2: pools never hit HBM.
    out = spp_conv2(hid, w2f, bias2)                                # (N, H*W, C1)
    out = out.reshape(n, h, w, c1)
    return jnp.transpose(out, (0, 3, 1, 2))                         # back to NCHW


def ref_forward(x_nchw, p):
    x = jnp.transpose(x_nchw, (0, 2, 3, 1)).astype(jnp.float32)

    def conv_bn_hswish(x, w, g, b, m, v):
        y = jnp.einsum("nhwc,cd->nhwd", x, w)
        y = (y - m) * (g / jnp.sqrt(v + BN_EPS)) + b
        return y * jnp.clip(y + 3.0, 0.0, 6.0) / 6.0

    hid = conv_bn_hswish(x, p["w1"], p["g1"], p["b1"], p["m1"], p["v1"])
    pools = [hid]
    for k in POOL_KS:
        r = k // 2
        pools.append(lax.reduce_window(
            hid, -jnp.inf, lax.max, (1, k, k, 1), (1, 1, 1, 1),
            [(0, 0), (r, r), (r, r), (0, 0)]))
    cat = jnp.concatenate(pools, axis=-1)
    c1 = x.shape[-1]
    cm = c1 // 2
    out = conv_bn_hswish(cat, p["w2"].reshape(4 * cm, c1),
                         p["g2"], p["b2"], p["m2"], p["v2"])
    return jnp.transpose(out, (0, 3, 1, 2))


if __name__ == "__main__":
    N, C1, H, W = 2, 8, 16, 16
    key = jax.random.PRNGKey(0)
    kx, kp = jax.random.split(key)
    x = jax.random.normal(kx, (N, C1, H, W), jnp.float32)   # NCHW like PyTorch
    params = make_params(C1, kp)
    w1f, bias1, w2f, bias2 = prepare_params(params)

    out = spp_forward(x, w1f, bias1, w2f, bias2)
    out = jax.block_until_ready(out)
    assert out.shape == (N, C1, H, W), out.shape
    assert bool(jnp.all(jnp.isfinite(out)))

    ref = jax.block_until_ready(ref_forward(x, params))
    # bf16 MXU inputs / bf16 conv1 output vs. an all-f32 reference
    assert jnp.allclose(out, ref, rtol=5e-2, atol=5e-2), (
        float(jnp.max(jnp.abs(out - ref))))

    print("KERNEL_OK")
</pallas_src>

<mosaic_0001>
module attributes {stable_mosaic.version = 11 : i64} {
  func.func @_roll_probe_kernel(%arg0: memref<1x2x16x8xf32, #tpu.memory_space<vmem>>, %arg1: memref<1x2x16x8xf32, #tpu.memory_space<vmem>>) attributes {dimension_semantics = [], scalar_prefetch = 0 : i64, scratch_operands = 0 : i64, tpu.core_type = #tpu.core_type<tc>} {
    %c0 = arith.constant 0 : index
    %c0_0 = arith.constant 0 : index
    %c0_1 = arith.constant 0 : index
    %c0_2 = arith.constant 0 : index
    %0 = vector.load %arg0[%c0, %c0_0, %c0_1, %c0_2] : memref<1x2x16x8xf32, #tpu.memory_space<vmem>>, vector<1x2x16x8xf32>
    %c1_i32 = arith.constant 1 : i32
    %1 = tpu.dynamic_rotate %0 by %c1_i32 dim 2 : vector<1x2x16x8xf32>, i32 -> vector<1x2x16x8xf32>
    %c0_3 = arith.constant 0 : index
    %c0_4 = arith.constant 0 : index
    %c0_5 = arith.constant 0 : index
    %c0_6 = arith.constant 0 : index
    %2 = vector.load %arg1[%c0_3, %c0_4, %c0_5, %c0_6] : memref<1x2x16x8xf32, #tpu.memory_space<vmem>>, vector<1x2x16x8xf32>
    tpu.vector_store %arg1[%c0_3, %c0_4, %c0_5, %c0_6], %1 {strides = array<i32>} : memref<1x2x16x8xf32, #tpu.memory_space<vmem>>, vector<1x2x16x8xf32>,
    return
  }
}

module attributes {stable_mosaic.version = 11 : i64} {
  func.func @_pw_conv_kernel(%arg0: i32, %arg1: memref<512x8xbf16, #tpu.memory_space<vmem>>, %arg2: memref<8x4xbf16, #tpu.memory_space<vmem>>, %arg3: memref<1x4xf32, #tpu.memory_space<vmem>>, %arg4: memref<512x4xbf16, #tpu.memory_space<vmem>>) attributes {dimension_semantics = [#tpu.dimension_semantics<parallel>], iteration_bounds = array<i64: 1>, scalar_prefetch = 0 : i64, scratch_operands = 0 : i64, tpu.core_type = #tpu.core_type<tc>, window_params = [{transform_indices = @transform_0, window_bounds = array<i64: 512, 8>}, {pipeline_mode = #tpu.pipeline_mode<synchronous>, transform_indices = @transform_1, window_bounds = array<i64: 8, 4>}, {pipeline_mode = #tpu.pipeline_mode<synchronous>, transform_indices = @transform_2, window_bounds = array<i64: 1, 4>}, {transform_indices = @transform_3, window_bounds = array<i64: 512, 4>}]} {
    %c0 = arith.constant 0 : index
    %c0_0 = arith.constant 0 : index
    %0 = vector.load %arg1[%c0, %c0_0] : memref<512x8xbf16, #tpu.memory_space<vmem>>, vector<512x8xbf16>
    %c0_1 = arith.constant 0 : index
    %c0_2 = arith.constant 0 : index
    %1 = vector.load %arg2[%c0_1, %c0_2] : memref<8x4xbf16, #tpu.memory_space<vmem>>, vector<8x4xbf16>
    %cst = arith.constant dense<0.000000e+00> : vector<512x4xf32>
    %2 = tpu.matmul %0, %1, %cst {dimension_numbers = #tpu.dot_dimension_numbers<[1], [0], [0], [1], [0, 0, 1, 1], [], []>} : vector<512x8xbf16>, vector<8x4xbf16>, vector<512x4xf32> -> vector<512x4xf32>
    %c0_3 = arith.constant 0 : index
    %c0_4 = arith.constant 0 : index
    %3 = vector.load %arg3[%c0_3, %c0_4] : memref<1x4xf32, #tpu.memory_space<vmem>>, vector<1x4xf32>
    %4 = vector.broadcast %3 : vector<1x4xf32> to vector<512x4xf32>
    %5 = arith.addf %2, %4 : vector<512x4xf32>
    %cst_5 = arith.constant 3.000000e+00 : f32
    %6 = vector.broadcast %cst_5 : f32 to vector<512x4xf32>
    %7 = arith.addf %5, %6 : vector<512x4xf32>
    %cst_6 = arith.constant 0.000000e+00 : f32
    %cst_7 = arith.constant 6.000000e+00 : f32
    %8 = vector.broadcast %cst_6 : f32 to vector<512x4xf32>
    %9 = arith.maximumf %8, %7 : vector<512x4xf32>
    %10 = vector.broadcast %cst_7 : f32 to vector<512x4xf32>
    %11 = arith.minimumf %10, %9 : vector<512x4xf32>
    %12 = arith.mulf %5, %11 : vector<512x4xf32>
    %cst_8 = arith.constant 0.166666672 : f32
    %13 = vector.broadcast %cst_8 : f32 to vector<512x4xf32>
    %14 = arith.mulf %12, %13 : vector<512x4xf32>
    %15 = arith.truncf %14 : vector<512x4xf32> to vector<512x4xbf16>
    %c0_9 = arith.constant 0 : index
    %c0_10 = arith.constant 0 : index
    %16 = vector.load %arg4[%c0_9, %c0_10] : memref<512x4xbf16, #tpu.memory_space<vmem>>, vector<512x4xbf16>
    tpu.vector_store %arg4[%c0_9, %c0_10], %15 {strides = array<i32>} : memref<512x4xbf16, #tpu.memory_space<vmem>>, vector<512x4xbf16>,
    return
  }
  func.func @transform_0(%arg0: i32) -> (i32, i32) {
    %c0_i32 = arith.constant 0 : i32
    %c0_i32_0 = arith.constant 0 : i32
    return %arg0, %c0_i32 : i32, i32
  }
  func.func @transform_1(%arg0: i32) -> (i32, i32) {
    %c0_i32 = arith.constant 0 : i32
    %c0_i32_0 = arith.constant 0 : i32
    %c0_i32_1 = arith.constant 0 : i32
    return %c0_i32, %c0_i32_0 : i32, i32
  }
  func.func @transform_2(%arg0: i32) -> (i32, i32) {
    %c0_i32 = arith.constant 0 : i32
    %c0_i32_0 = arith.constant 0 : i32
    %c0_i32_1 = arith.constant 0 : i32
    return %c0_i32, %c0_i32_0 : i32, i32
  }
  func.func @transform_3(%arg0: i32) -> (i32, i32) {
    %c0_i32 = arith.constant 0 : i32
    %c0_i32_0 = arith.constant 0 : i32
    return %arg0, %c0_i32 : i32, i32
  }
}

module attributes {stable_mosaic.version = 11 : i64} {
  func.func @_spp_conv2_kernel(%arg0: i32, %arg1: memref<1x16x16x4xbf16, #tpu.memory_space<vmem>>, %arg2: memref<4x4x8xbf16, #tpu.memory_space<vmem>>, %arg3: memref<1x8xf32, #tpu.memory_space<vmem>>, %arg4: memref<1x256x8xf32, #tpu.memory_space<vmem>>, %arg5: memref<256x8xf32, #tpu.memory_space<vmem>>, %arg6: memref<1x16x20x4xf32, #tpu.memory_space<vmem>>) attributes {dimension_semantics = [#tpu.dimension_semantics<parallel>], iteration_bounds = array<i64: 2>, scalar_prefetch = 0 : i64, scratch_operands = 2 : i64, tpu.core_type = #tpu.core_type<tc>, window_params = [{transform_indices = @transform_0, window_bounds = array<i64: 1, 16, 16, 4>}, {pipeline_mode = #tpu.pipeline_mode<synchronous>, transform_indices = @transform_1, window_bounds = array<i64: 4, 4, 8>}, {pipeline_mode = #tpu.pipeline_mode<synchronous>, transform_indices = @transform_2, window_bounds = array<i64: 1, 8>}, {transform_indices = @transform_3, window_bounds = array<i64: 1, 256, 8>}]} {
    %c0 = arith.constant 0 : index
    %c0_0 = arith.constant 0 : index
    %c0_1 = arith.constant 0 : index
    %c0_2 = arith.constant 0 : index
    %0 = vector.load %arg1[%c0, %c0_0, %c0_1, %c0_2] : memref<1x16x16x4xbf16, #tpu.memory_space<vmem>>, vector<1x16x16x4xbf16>
    %1 = vector.shape_cast %0 : vector<1x16x16x4xbf16> to vector<256x4xbf16>
    %c0_3 = arith.constant 0 : index
    %c0_4 = arith.constant 0 : index
    %c0_5 = arith.constant 0 : index
    %2 = vector.load %arg2[%c0_3, %c0_4, %c0_5] : memref<4x4x8xbf16, #tpu.memory_space<vmem>>, vector<1x4x8xbf16>
    %3 = vector.shape_cast %2 : vector<1x4x8xbf16> to vector<4x8xbf16>
    %cst = arith.constant dense<0.000000e+00> : vector<256x8xf32>
    %4 = tpu.matmul %1, %3, %cst {dimension_numbers = #tpu.dot_dimension_numbers<[1], [0], [0], [1], [0, 0, 1, 1], [], []>} : vector<256x4xbf16>, vector<4x8xbf16>, vector<256x8xf32> -> vector<256x8xf32>
    %c0_6 = arith.constant 0 : index
    %c0_7 = arith.constant 0 : index
    %5 = vector.load %arg5[%c0_6, %c0_7] : memref<256x8xf32, #tpu.memory_space<vmem>>, vector<256x8xf32>
    tpu.vector_store %arg5[%c0_6, %c0_7], %4 {strides = array<i32>} : memref<256x8xf32, #tpu.memory_space<vmem>>, vector<256x8xf32>,
    %6 = arith.extf %0 : vector<1x16x16x4xbf16> to vector<1x16x16x4xf32>
    %cst_8 = arith.constant 0xFF800000 : f32
    %7 = vector.broadcast %cst_8 : f32 to vector<1x1x16x4xf32>
    %cst_9 = arith.constant 0xFF800000 : f32
    %8 = vector.broadcast %cst_9 : f32 to vector<1x2x16x4xf32>
    %cst_10 = arith.constant 0xFF800000 : f32
    %9 = vector.broadcast %cst_10 : f32 to vector<1x16x2x4xf32>
    %c0_11 = arith.constant 0 : index
    %c0_12 = arith.constant 0 : index
    %c0_13 = arith.constant 0 : index
    %c0_14 = arith.constant 0 : index
    %10 = vector.load %arg6[%c0_11, %c0_12, %c0_13, %c0_14] : memref<1x16x20x4xf32, #tpu.memory_space<vmem>>, vector<1x16x2x4xf32>
    tpu.vector_store %arg6[%c0_11, %c0_12, %c0_13, %c0_14], %9 {strides = array<i32>} : memref<1x16x20x4xf32, #tpu.memory_space<vmem>>, vector<1x16x2x4xf32>,
    %c0_15 = arith.constant 0 : index
    %c0_16 = arith.constant 0 : index
    %c18 = arith.constant 18 : index
    %c0_17 = arith.constant 0 : index
    %11 = vector.load %arg6[%c0_15, %c0_16, %c18, %c0_17] : memref<1x16x20x4xf32, #tpu.memory_space<vmem>>, vector<1x16x2x4xf32>
    tpu.vector_store %arg6[%c0_15, %c0_16, %c18, %c0_17], %9 {strides = array<i32>} : memref<1x16x20x4xf32, #tpu.memory_space<vmem>>, vector<1x16x2x4xf32>,
    %12 = vector.extract_strided_slice %6 {offsets = [0, 1, 0, 0], sizes = [1, 15, 16, 4], strides = [1, 1, 1, 1]} : vector<1x16x16x4xf32> to vector<1x15x16x4xf32>
    %13 = tpu.concatenate %12, %7 in 1 : vector<1x15x16x4xf32>, vector<1x1x16x4xf32> -> vector<1x16x16x4xf32>
    %14 = vector.extract_strided_slice %6 {offsets = [0, 0, 0, 0], sizes = [1, 15, 16, 4], strides = [1, 1, 1, 1]} : vector<1x16x16x4xf32> to vector<1x15x16x4xf32>
    %15 = tpu.concatenate %7, %14 in 1 : vector<1x1x16x4xf32>, vector<1x15x16x4xf32> -> vector<1x16x16x4xf32>
    %16 = arith.maximumf %13, %15 : vector<1x16x16x4xf32>
    %17 = arith.maximumf %6, %16 : vector<1x16x16x4xf32>
    %18 = vector.extract_strided_slice %6 {offsets = [0, 2, 0, 0], sizes = [1, 14, 16, 4], strides = [1, 1, 1, 1]} : vector<1x16x16x4xf32> to vector<1x14x16x4xf32>
    %19 = tpu.concatenate %18, %8 in 1 : vector<1x14x16x4xf32>, vector<1x2x16x4xf32> -> vector<1x16x16x4xf32>
    %20 = vector.extract_strided_slice %6 {offsets = [0, 0, 0, 0], sizes = [1, 14, 16, 4], strides = [1, 1, 1, 1]} : vector<1x16x16x4xf32> to vector<1x14x16x4xf32>
    %21 = tpu.concatenate %8, %20 in 1 : vector<1x2x16x4xf32>, vector<1x14x16x4xf32> -> vector<1x16x16x4xf32>
    %22 = arith.maximumf %19, %21 : vector<1x16x16x4xf32>
    %23 = arith.maximumf %17, %22 : vector<1x16x16x4xf32>
    %c0_18 = arith.constant 0 : index
    %c0_19 = arith.constant 0 : index
    %c2 = arith.constant 2 : index
    %c0_20 = arith.constant 0 : index
    %24 = vector.load %arg6[%c0_18, %c0_19, %c2, %c0_20] : memref<1x16x20x4xf32, #tpu.memory_space<vmem>>, vector<1x16x16x4xf32>
    tpu.vector_store %arg6[%c0_18, %c0_19, %c2, %c0_20], %23 {strides = array<i32>} : memref<1x16x20x4xf32, #tpu.memory_space<vmem>>, vector<1x16x16x4xf32>,
    %c0_21 = arith.constant 0 : index
    %c0_22 = arith.constant 0 : index
    %c0_23 = arith.constant 0 : index
    %c0_24 = arith.constant 0 : index
    %25 = vector.load %arg6[%c0_21, %c0_22, %c0_23, %c0_24] : memref<1x16x20x4xf32, #tpu.memory_space<vmem>>, vector<1x16x16x4xf32>
    %c0_25 = arith.constant 0 : index
    %c0_26 = arith.constant 0 : index
    %c1 = arith.constant 1 : index
    %c0_27 = arith.constant 0 : index
    %26 = vector.load %arg6[%c0_25, %c0_26, %c1, %c0_27] : memref<1x16x20x4xf32, #tpu.memory_space<vmem>>, vector<1x16x16x4xf32>
    %27 = arith.maximumf %25, %26 : vector<1x16x16x4xf32>
    %c0_28 = arith.constant 0 : index
    %c0_29 = arith.constant 0 : index
    %c2_30 = arith.constant 2 : index
    %c0_31 = arith.constant 0 : index
    %28 = vector.load %arg6[%c0_28, %c0_29, %c2_30, %c0_31] : memref<1x16x20x4xf32, #tpu.memory_space<vmem>>, vector<1x16x16x4xf32>
    %29 = arith.maximumf %27, %28 : vector<1x16x16x4xf32>
    %c0_32 = arith.constant 0 : index
    %c0_33 = arith.constant 0 : index
    %c3 = arith.constant 3 : index
    %c0_34 = arith.constant 0 : index
    %30 = vector.load %arg6[%c0_32, %c0_33, %c3, %c0_34] : memref<1x16x20x4xf32, #tpu.memory_space<vmem>>, vector<1x16x16x4xf32>
    %31 = arith.maximumf %29, %30 : vector<1x16x16x4xf32>
    %c0_35 = arith.constant 0 : index
    %c0_36 = arith.constant 0 : index
    %c4 = arith.constant 4 : index
    %c0_37 = arith.constant 0 : index
    %32 = vector.load %arg6[%c0_35, %c0_36, %c4, %c0_37] : memref<1x16x20x4xf32, #tpu.memory_space<vmem>>, vector<1x16x16x4xf32>
    %33 = arith.maximumf %31, %32 : vector<1x16x16x4xf32>
    %c0_38 = arith.constant 0 : index
    %c0_39 = arith.constant 0 : index
    %34 = vector.load %arg5[%c0_38, %c0_39] : memref<256x8xf32, #tpu.memory_space<vmem>>, vector<256x8xf32>
    %35 = arith.truncf %33 : vector<1x16x16x4xf32> to vector<1x16x16x4xbf16>
    %36 = vector.shape_cast %35 : vector<1x16x16x4xbf16> to vector<256x4xbf16>
    %c1_40 = arith.constant 1 : index
    %c0_41 = arith.constant 0 : index
    %c0_42 = arith.constant 0 : index
    %37 = vector.load %arg2[%c1_40, %c0_41, %c0_42] : memref<4x4x8xbf16, #tpu.memory_space<vmem>>, vector<1x4x8xbf16>
    %38 = vector.shape_cast %37 : vector<1x4x8xbf16> to vector<4x8xbf16>
    %cst_43 = arith.constant dense<0.000000e+00> : vector<256x8xf32>
    %39 = tpu.matmul %36, %38, %cst_43 {dimension_numbers = #tpu.dot_dimension_numbers<[1], [0], [0], [1], [0, 0, 1, 1], [], []>} : vector<256x4xbf16>, vector<4x8xbf16>, vector<256x8xf32> -> vector<256x8xf32>
    %40 = arith.addf %34, %39 : vector<256x8xf32>
    %c0_44 = arith.constant 0 : index
    %c0_45 = arith.constant 0 : index
    %41 = vector.load %arg5[%c0_44, %c0_45] : memref<256x8xf32, #tpu.memory_space<vmem>>, vector<256x8xf32>
    tpu.vector_store %arg5[%c0_44, %c0_45], %40 {strides = array<i32>} : memref<256x8xf32, #tpu.memory_space<vmem>>, vector<256x8xf32>,
    %42 = vector.extract_strided_slice %33 {offsets = [0, 1, 0, 0], sizes = [1, 15, 16, 4], strides = [1, 1, 1, 1]} : vector<1x16x16x4xf32> to vector<1x15x16x4xf32>
    %43 = tpu.concatenate %42, %7 in 1 : vector<1x15x16x4xf32>, vector<1x1x16x4xf32> -> vector<1x16x16x4xf32>
    %44 = vector.extract_strided_slice %33 {offsets = [0, 0, 0, 0], sizes = [1, 15, 16, 4], strides = [1, 1, 1, 1]} : vector<1x16x16x4xf32> to vector<1x15x16x4xf32>
    %45 = tpu.concatenate %7, %44 in 1 : vector<1x1x16x4xf32>, vector<1x15x16x4xf32> -> vector<1x16x16x4xf32>
    %46 = arith.maximumf %43, %45 : vector<1x16x16x4xf32>
    %47 = arith.maximumf %33, %46 : vector<1x16x16x4xf32>
    %48 = vector.extract_strided_slice %33 {offsets = [0, 2, 0, 0], sizes = [1, 14, 16, 4], strides = [1, 1, 1, 1]} : vector<1x16x16x4xf32> to vector<1x14x16x4xf32>
    %49 = tpu.concatenate %48, %8 in 1 : vector<1x14x16x4xf32>, vector<1x2x16x4xf32> -> vector<1x16x16x4xf32>
    %50 = vector.extract_strided_slice %33 {offsets = [0, 0, 0, 0], sizes = [1, 14, 16, 4], strides = [1, 1, 1, 1]} : vector<1x16x16x4xf32> to vector<1x14x16x4xf32>
    %51 = tpu.concatenate %8, %50 in 1 : vector<1x2x16x4xf32>, vector<1x14x16x4xf32> -> vector<1x16x16x4xf32>
    %52 = arith.maximumf %49, %51 : vector<1x16x16x4xf32>
    %53 = arith.maximumf %47, %52 : vector<1x16x16x4xf32>
    %c0_46 = arith.constant 0 : index
    %c0_47 = arith.constant 0 : index
    %c2_48 = arith.constant 2 : index
    %c0_49 = arith.constant 0 : index
    %54 = vector.load %arg6[%c0_46, %c0_47, %c2_48, %c0_49] : memref<1x16x20x4xf32, #tpu.memory_space<vmem>>, vector<1x16x16x4xf32>
    tpu.vector_store %arg6[%c0_46, %c0_47, %c2_48, %c0_49], %53 {strides = array<i32>} : memref<1x16x20x4xf32, #tpu.memory_space<vmem>>, vector<1x16x16x4xf32>,
    %c0_50 = arith.constant 0 : index
    %c0_51 = arith.constant 0 : index
    %c0_52 = arith.constant 0 : index
    %c0_53 = arith.constant 0 : index
    %55 = vector.load %arg6[%c0_50, %c0_51, %c0_52, %c0_53] : memref<1x16x20x4xf32, #tpu.memory_space<vmem>>, vector<1x16x16x4xf32>
    %c0_54 = arith.constant 0 : index
    %c0_55 = arith.constant 0 : index
    %c1_56 = arith.constant 1 : index
    %c0_57 = arith.constant 0 : index
    %56 = vector.load %arg6[%c0_54, %c0_55, %c1_56, %c0_57] : memref<1x16x20x4xf32, #tpu.memory_space<vmem>>, vector<1x16x16x4xf32>
    %57 = arith.maximumf %55, %56 : vector<1x16x16x4xf32>
    %c0_58 = arith.constant 0 : index
    %c0_59 = arith.constant 0 : index
    %c2_60 = arith.constant 2 : index
    %c0_61 = arith.constant 0 : index
    %58 = vector.load %arg6[%c0_58, %c0_59, %c2_60, %c0_61] : memref<1x16x20x4xf32, #tpu.memory_space<vmem>>, vector<1x16x16x4xf32>
    %59 = arith.maximumf %57, %58 : vector<1x16x16x4xf32>
    %c0_62 = arith.constant 0 : index
    %c0_63 = arith.constant 0 : index
    %c3_64 = arith.constant 3 : index
    %c0_65 = arith.constant 0 : index
    %60 = vector.load %arg6[%c0_62, %c0_63, %c3_64, %c0_65] : memref<1x16x20x4xf32, #tpu.memory_space<vmem>>, vector<1x16x16x4xf32>
    %61 = arith.maximumf %59, %60 : vector<1x16x16x4xf32>
    %c0_66 = arith.constant 0 : index
    %c0_67 = arith.constant 0 : index
    %c4_68 = arith.constant 4 : index
    %c0_69 = arith.constant 0 : index
    %62 = vector.load %arg6[%c0_66, %c0_67, %c4_68, %c0_69] : memref<1x16x20x4xf32, #tpu.memory_space<vmem>>, vector<1x16x16x4xf32>
    %63 = arith.maximumf %61, %62 : vector<1x16x16x4xf32>
    %c0_70 = arith.constant 0 : index
    %c0_71 = arith.constant 0 : index
    %64 = vector.load %arg5[%c0_70, %c0_71] : memref<256x8xf32, #tpu.memory_space<vmem>>, vector<256x8xf32>
    %65 = arith.truncf %63 : vector<1x16x16x4xf32> to vector<1x16x16x4xbf16>
    %66 = vector.shape_cast %65 : vector<1x16x16x4xbf16> to vector<256x4xbf16>
    %c2_72 = arith.constant 2 : index
    %c0_73 = arith.constant 0 : index
    %c0_74 = arith.constant 0 : index
    %67 = vector.load %arg2[%c2_72, %c0_73, %c0_74] : memref<4x4x8xbf16, #tpu.memory_space<vmem>>, vector<1x4x8xbf16>
    %68 = vector.shape_cast %67 : vector<1x4x8xbf16> to vector<4x8xbf16>
    %cst_75 = arith.constant dense<0.000000e+00> : vector<256x8xf32>
    %69 = tpu.matmul %66, %68, %cst_75 {dimension_numbers = #tpu.dot_dimension_numbers<[1], [0], [0], [1], [0, 0, 1, 1], [], []>} : vector<256x4xbf16>, vector<4x8xbf16>, vector<256x8xf32> -> vector<256x8xf32>
    %70 = arith.addf %64, %69 : vector<256x8xf32>
    %c0_76 = arith.constant 0 : index
    %c0_77 = arith.constant 0 : index
    %71 = vector.load %arg5[%c0_76, %c0_77] : memref<256x8xf32, #tpu.memory_space<vmem>>, vector<256x8xf32>
    tpu.vector_store %arg5[%c0_76, %c0_77], %70 {strides = array<i32>} : memref<256x8xf32, #tpu.memory_space<vmem>>, vector<256x8xf32>,
    %72 = vector.extract_strided_slice %63 {offsets = [0, 1, 0, 0], sizes = [1, 15, 16, 4], strides = [1, 1, 1, 1]} : vector<1x16x16x4xf32> to vector<1x15x16x4xf32>
    %73 = tpu.concatenate %72, %7 in 1 : vector<1x15x16x4xf32>, vector<1x1x16x4xf32> -> vector<1x16x16x4xf32>
    %74 = vector.extract_strided_slice %63 {offsets = [0, 0, 0, 0], sizes = [1, 15, 16, 4], strides = [1, 1, 1, 1]} : vector<1x16x16x4xf32> to vector<1x15x16x4xf32>
    %75 = tpu.concatenate %7, %74 in 1 : vector<1x1x16x4xf32>, vector<1x15x16x4xf32> -> vector<1x16x16x4xf32>
    %76 = arith.maximumf %73, %75 : vector<1x16x16x4xf32>
    %77 = arith.maximumf %63, %76 : vector<1x16x16x4xf32>
    %78 = vector.extract_strided_slice %63 {offsets = [0, 2, 0, 0], sizes = [1, 14, 16, 4], strides = [1, 1, 1, 1]} : vector<1x16x16x4xf32> to vector<1x14x16x4xf32>
    %79 = tpu.concatenate %78, %8 in 1 : vector<1x14x16x4xf32>, vector<1x2x16x4xf32> -> vector<1x16x16x4xf32>
    %80 = vector.extract_strided_slice %63 {offsets = [0, 0, 0, 0], sizes = [1, 14, 16, 4], strides = [1, 1, 1, 1]} : vector<1x16x16x4xf32> to vector<1x14x16x4xf32>
    %81 = tpu.concatenate %8, %80 in 1 : vector<1x2x16x4xf32>, vector<1x14x16x4xf32> -> vector<1x16x16x4xf32>
    %82 = arith.maximumf %79, %81 : vector<1x16x16x4xf32>
    %83 = arith.maximumf %77, %82 : vector<1x16x16x4xf32>
    %c0_78 = arith.constant 0 : index
    %c0_79 = arith.constant 0 : index
    %c2_80 = arith.constant 2 : index
    %c0_81 = arith.constant 0 : index
    %84 = vector.load %arg6[%c0_78, %c0_79, %c2_80, %c0_81] : memref<1x16x20x4xf32, #tpu.memory_space<vmem>>, vector<1x16x16x4xf32>
    tpu.vector_store %arg6[%c0_78, %c0_79, %c2_80, %c0_81], %83 {strides = array<i32>} : memref<1x16x20x4xf32, #tpu.memory_space<vmem>>, vector<1x16x16x4xf32>,
    %c0_82 = arith.constant 0 : index
    %c0_83 = arith.constant 0 : index
    %c0_84 = arith.constant 0 : index
    %c0_85 = arith.constant 0 : index
    %85 = vector.load %arg6[%c0_82, %c0_83, %c0_84, %c0_85] : memref<1x16x20x4xf32, #tpu.memory_space<vmem>>, vector<1x16x16x4xf32>
    %c0_86 = arith.constant 0 : index
    %c0_87 = arith.constant 0 : index
    %c1_88 = arith.constant 1 : index
    %c0_89 = arith.constant 0 : index
    %86 = vector.load %arg6[%c0_86, %c0_87, %c1_88, %c0_89] : memref<1x16x20x4xf32, #tpu.memory_space<vmem>>, vector<1x16x16x4xf32>
    %87 = arith.maximumf %85, %86 : vector<1x16x16x4xf32>
    %c0_90 = arith.constant 0 : index
    %c0_91 = arith.constant 0 : index
    %c2_92 = arith.constant 2 : index
    %c0_93 = arith.constant 0 : index
    %88 = vector.load %arg6[%c0_90, %c0_91, %c2_92, %c0_93] : memref<1x16x20x4xf32, #tpu.memory_space<vmem>>, vector<1x16x16x4xf32>
    %89 = arith.maximumf %87, %88 : vector<1x16x16x4xf32>
    %c0_94 = arith.constant 0 : index
    %c0_95 = arith.constant 0 : index
    %c3_96 = arith.constant 3 : index
    %c0_97 = arith.constant 0 : index
    %90 = vector.load %arg6[%c0_94, %c0_95, %c3_96, %c0_97] : memref<1x16x20x4xf32, #tpu.memory_space<vmem>>, vector<1x16x16x4xf32>
    %91 = arith.maximumf %89, %90 : vector<1x16x16x4xf32>
    %c0_98 = arith.constant 0 : index
    %c0_99 = arith.constant 0 : index
    %c4_100 = arith.constant 4 : index
    %c0_101 = arith.constant 0 : index
    %92 = vector.load %arg6[%c0_98, %c0_99, %c4_100, %c0_101] : memref<1x16x20x4xf32, #tpu.memory_space<vmem>>, vector<1x16x16x4xf32>
    %93 = arith.maximumf %91, %92 : vector<1x16x16x4xf32>
    %c0_102 = arith.constant 0 : index
    %c0_103 = arith.constant 0 : index
    %94 = vector.load %arg5[%c0_102, %c0_103] : memref<256x8xf32, #tpu.memory_space<vmem>>, vector<256x8xf32>
    %95 = arith.truncf %93 : vector<1x16x16x4xf32> to vector<1x16x16x4xbf16>
    %96 = vector.shape_cast %95 : vector<1x16x16x4xbf16> to vector<256x4xbf16>
    %c3_104 = arith.constant 3 : index
    %c0_105 = arith.constant 0 : index
    %c0_106 = arith.constant 0 : index
    %97 = vector.load %arg2[%c3_104, %c0_105, %c0_106] : memref<4x4x8xbf16, #tpu.memory_space<vmem>>, vector<1x4x8xbf16>
    %98 = vector.shape_cast %97 : vector<1x4x8xbf16> to vector<4x8xbf16>
    %cst_107 = arith.constant dense<0.000000e+00> : vector<256x8xf32>
    %99 = tpu.matmul %96, %98, %cst_107 {dimension_numbers = #tpu.dot_dimension_numbers<[1], [0], [0], [1], [0, 0, 1, 1], [], []>} : vector<256x4xbf16>, vector<4x8xbf16>, vector<256x8xf32> -> vector<256x8xf32>
    %100 = arith.addf %94, %99 : vector<256x8xf32>
    %c0_108 = arith.constant 0 : index
    %c0_109 = arith.constant 0 : index
    %101 = vector.load %arg5[%c0_108, %c0_109] : memref<256x8xf32, #tpu.memory_space<vmem>>, vector<256x8xf32>
    tpu.vector_store %arg5[%c0_108, %c0_109], %100 {strides = array<i32>} : memref<256x8xf32, #tpu.memory_space<vmem>>, vector<256x8xf32>,
    %c0_110 = arith.constant 0 : index
    %c0_111 = arith.constant 0 : index
    %102 = vector.load %arg5[%c0_110, %c0_111] : memref<256x8xf32, #tpu.memory_space<vmem>>, vector<256x8xf32>
    %c0_112 = arith.constant 0 : index
    %c0_113 = arith.constant 0 : index
    %103 = vector.load %arg3[%c0_112, %c0_113] : memref<1x8xf32, #tpu.memory_space<vmem>>, vector<1x8xf32>
    %104 = vector.broadcast %103 : vector<1x8xf32> to vector<256x8xf32>
    %105 = arith.addf %102, %104 : vector<256x8xf32>
    %cst_114 = arith.constant 3.000000e+00 : f32
    %106 = vector.broadcast %cst_114 : f32 to vector<256x8xf32>
    %107 = arith.addf %105, %106 : vector<256x8xf32>
    %cst_115 = arith.constant 0.000000e+00 : f32
    %cst_116 = arith.constant 6.000000e+00 : f32
    %108 = vector.broadcast %cst_115 : f32 to vector<256x8xf32>
    %109 = arith.maximumf %108, %107 : vector<256x8xf32>
    %110 = vector.broadcast %cst_116 : f32 to vector<256x8xf32>
    %111 = arith.minimumf %110, %109 : vector<256x8xf32>
    %112 = arith.mulf %105, %111 : vector<256x8xf32>
    %cst_117 = arith.constant 0.166666672 : f32
    %113 = vector.broadcast %cst_117 : f32 to vector<256x8xf32>
    %114 = arith.mulf %112, %113 : vector<256x8xf32>
    %c0_118 = arith.constant 0 : index
    %c0_119 = arith.constant 0 : index
    %c0_120 = arith.constant 0 : index
    %115 = vector.load %arg4[%c0_118, %c0_119, %c0_120] : memref<1x256x8xf32, #tpu.memory_space<vmem>>, vector<1x256x8xf32>
    %116 = vector.shape_cast %115 : vector<1x256x8xf32> to vector<256x8xf32>
    %117 = vector.shape_cast %114 : vector<256x8xf32> to vector<1x256x8xf32>
    tpu.vector_store %arg4[%c0_118, %c0_119, %c0_120], %117 {strides = array<i32>} : memref<1x256x8xf32, #tpu.memory_space<vmem>>, vector<1x256x8xf32>,
    return
  }
  func.func @transform_0(%arg0: i32) -> (i32, i32, i32, i32) {
    %c0_i32 = arith.constant 0 : i32
    %c0_i32_0 = arith.constant 0 : i32
    %c0_i32_1 = arith.constant 0 : i32
    %c0_i32_2 = arith.constant 0 : i32
    return %arg0, %c0_i32, %c0_i32_0, %c0_i32_1 : i32, i32, i32, i32
  }
  func.func @transform_1(%arg0: i32) -> (i32, i32, i32) {
    %c0_i32 = arith.constant 0 : i32
    %c0_i32_0 = arith.constant 0 : i32
    %c0_i32_1 = arith.constant 0 : i32
    %c0_i32_2 = arith.constant 0 : i32
    return %c0_i32, %c0_i32_0, %c0_i32_1 : i32, i32, i32
  }
  func.func @transform_2(%arg0: i32) -> (i32, i32) {
    %c0_i32 = arith.constant 0 : i32
    %c0_i32_0 = arith.constant 0 : i32
    %c0_i32_1 = arith.constant 0 : i32
    return %c0_i32, %c0_i32_0 : i32, i32
  }
  func.func @transform_3(%arg0: i32) -> (i32, i32, i32) {
    %c0_i32 = arith.constant 0 : i32
    %c0_i32_0 = arith.constant 0 : i32
    %c0_i32_1 = arith.constant 0 : i32
    return %arg0, %c0_i32, %c0_i32_0 : i32, i32, i32
  }
}

</mosaic_0001>

<llo_original>
// kernel: tpu_custom_call.1
$region0: #{tpu_custom_call.1}
  #allocation0 [shape = 'u32[]', space=smem, size = 0x4, offset = 0x4, fixed_abs, tag = 'smem constant byte address 0x4 - core index']
  #allocation1 [shape = 'u32[144,128]{1,0:T(1,128)}', space=vmem, size = 0x12000, scoped, tag = 'internal scratch']
  %s0 = inlined_call_operand.vmem [shape: f32[1,2,16,8], index: 0, kind: input, shape index: {}]
  %s1 = inlined_call_operand.vmem [shape: f32[1,2,16,8], index: 1, kind: output, shape index: {}]
  %s2 = sld [smem:[#allocation0]]
  $region14: #{tpu_custom_call.1} parent=0
    _
  %s4 = ssub.s32 1, %s2
  %s5 = scalar_select 0, %s4, %s2
  // Predicated region
  $region2: #{tpu_custom_call.1} parent=0 // pred_check
    _
  $region3: #{tpu_custom_call.1} parent=0 // pred_check_branch
    %7 = sbr.rel (0) target = $region5
  $region4: #{tpu_custom_call.1} parent=0 // pred_region
    _
  $region5: #{tpu_custom_call.1} parent=0 // pred_fallthru
    _
  %v8 = vld [vmem:[%s0] sm:$0xff]
  %v9 = vld [vmem:[%s0 + $0x8] sm:$0xff]
  %v10 = vld [vmem:[%s0 + $0x10] sm:$0xff]
  %v11 = vld [vmem:[%s0 + $0x18] sm:$0xff]
  %v12 = vrot.slane %v8, 7
  %v13 = vrot.slane %v10, 7
  %v14 = vrot.slane %v9, 7
  %v15 = vrot.slane %v11, 7
  %v16 = vlaneseq
  %v17 = vshrl.u32 %v16, 7
  %vm18 = vcmp.lt.s32.totalorder %v17, 1
  %v19 = vsel %vm18, %v12, %v14
  %v20 = vsel %vm18, %v13, %v15
  %v21 = vsel %vm18, %v14, %v12
  %v22 = vsel %vm18, %v15, %v13
  %vm23 = vcmask 64512
  %24 = vst.msk [vmem:[%s1] sm:$0xff] %vm23, %v21
  %25 = vst.msk [vmem:[%s1 + $0x8] sm:$0xff] %vm23, %v19
  %26 = vst.msk [vmem:[%s1 + $0x10] sm:$0xff] %vm23, %v22
  %27 = vst.msk [vmem:[%s1 + $0x18] sm:$0xff] %vm23, %v20
  // Predicated region
  $region6: #{tpu_custom_call.1} parent=0 // pred_check
    _
  $region7: #{tpu_custom_call.1} parent=0 // pred_check_branch
    %29 = sbr.rel (0) target = $region9
  $region8: #{tpu_custom_call.1} parent=0 // pred_region
    _
  $region9: #{tpu_custom_call.1} parent=0 // pred_fallthru
    _
  // Predicated region
  $region10: #{tpu_custom_call.1} parent=0 // pred_check
    _
  $region11: #{tpu_custom_call.1} parent=0 // pred_check_branch
    %31 = sbr.rel (0) target = $region13
  $region12: #{tpu_custom_call.1} parent=0 // pred_region
    _
  $region13: #{tpu_custom_call.1} parent=0 // pred_fallthru
    _

// kernel: _spp_forward_jit.2
$region0: #{_spp_forward_jit.2}
  #allocation0 [shape = 'u32[]', space=smem, size = 0x4, offset = 0x4, fixed_abs, tag = 'smem constant byte address 0x4 - core index']
  #allocation1 [shape = 'u32[144,128]{1,0:T(1,128)}', space=vmem, size = 0x12000, scoped, tag = 'internal scratch']
  %s0 = inlined_call_operand.vmem [shape: bf16[512,8], index: 0, kind: input, shape index: {}]
  %s1 = inlined_call_operand.vmem [shape: bf16[8,4], index: 1, kind: input, shape index: {}]
  %s2 = inlined_call_operand.vmem [shape: f32[1,4], index: 2, kind: input, shape index: {}]
  %s3 = inlined_call_operand.vmem [shape: bf16[512,4], index: 3, kind: output, shape index: {}]
  %s4 = sld [smem:[#allocation0]]
  $region22: #{_spp_forward_jit.2} parent=0
    _
  %s6 = ssub.s32 1, %s4
  %s7 = scalar_select 0, %s6, %s4
  // Predicated region
  $region2: #{_spp_forward_jit.2} parent=0 // pred_check
    _
  $region3: #{_spp_forward_jit.2} parent=0 // pred_check_branch
    %9 = sbr.rel (0) target = $region5
  $region4: #{_spp_forward_jit.2} parent=0 // pred_region
    _
  $region5: #{_spp_forward_jit.2} parent=0 // pred_fallthru
    _
  // Predicated region
  $region6: #{_spp_forward_jit.2} parent=0 // pred_check
    _
  $region7: #{_spp_forward_jit.2} parent=0 // pred_check_branch
    %11 = sbr.rel (0) target = $region9
  $region8: #{_spp_forward_jit.2} parent=0 // pred_region
    _
  $region9: #{_spp_forward_jit.2} parent=0 // pred_fallthru
    _
  // Predicated region
  $region10: #{_spp_forward_jit.2} parent=0 // pred_check
    _
  $region11: #{_spp_forward_jit.2} parent=0 // pred_check_branch
    %13 = sbr.rel (0) target = $region13
  $region12: #{_spp_forward_jit.2} parent=0 // pred_region
    _
  $region13: #{_spp_forward_jit.2} parent=0 // pred_fallthru
    _
  %v15 = vld [vmem:[%s0] sm:$0xf]
  %v16 = vld [vmem:[%s0 + $0x4] sm:$0xf]
  %v17 = vld [vmem:[%s0 + $0x8] sm:$0xf]
  %v18 = vld [vmem:[%s0 + $0xc] sm:$0xf]
  %v19 = vld [vmem:[%s0 + $0x10] sm:$0xf]
  %v20 = vld [vmem:[%s0 + $0x14] sm:$0xf]
  %v21 = vld [vmem:[%s0 + $0x18] sm:$0xf]
  %v22 = vld [vmem:[%s0 + $0x1c] sm:$0xf]
  %v23 = vld [vmem:[%s0 + $0x20] sm:$0xf]
  %v24 = vld [vmem:[%s0 + $0x24] sm:$0xf]
  %v25 = vld [vmem:[%s0 + $0x28] sm:$0xf]
  %v26 = vld [vmem:[%s0 + $0x2c] sm:$0xf]
  %v27 = vld [vmem:[%s0 + $0x30] sm:$0xf]
  %v28 = vld [vmem:[%s0 + $0x34] sm:$0xf]
  %v29 = vld [vmem:[%s0 + $0x38] sm:$0xf]
  %v30 = vld [vmem:[%s0 + $0x3c] sm:$0xf]
  %v31 = vld [vmem:[%s0 + $0x40] sm:$0xf]
  %v32 = vld [vmem:[%s0 + $0x44] sm:$0xf]
  %v33 = vld [vmem:[%s0 + $0x48] sm:$0xf]
  %v34 = vld [vmem:[%s0 + $0x4c] sm:$0xf]
  %v35 = vld [vmem:[%s0 + $0x50] sm:$0xf]
  %v36 = vld [vmem:[%s0 + $0x54] sm:$0xf]
  %v37 = vld [vmem:[%s0 + $0x58] sm:$0xf]
  %v38 = vld [vmem:[%s0 + $0x5c] sm:$0xf]
  %v39 = vld [vmem:[%s0 + $0x60] sm:$0xf]
  %v40 = vld [vmem:[%s0 + $0x64] sm:$0xf]
  %v41 = vld [vmem:[%s0 + $0x68] sm:$0xf]
  %v42 = vld [vmem:[%s0 + $0x6c] sm:$0xf]
  %v43 = vld [vmem:[%s0 + $0x70] sm:$0xf]
  %v44 = vld [vmem:[%s0 + $0x74] sm:$0xf]
  %v45 = vld [vmem:[%s0 + $0x78] sm:$0xf]
  %v46 = vld [vmem:[%s0 + $0x7c] sm:$0xf]
  %v47 = vld [vmem:[%s0 + $0x80] sm:$0xf]
  %v48 = vld [vmem:[%s0 + $0x84] sm:$0xf]
  %v49 = vld [vmem:[%s0 + $0x88] sm:$0xf]
  %v50 = vld [vmem:[%s0 + $0x8c] sm:$0xf]
  %v51 = vld [vmem:[%s0 + $0x90] sm:$0xf]
  %v52 = vld [vmem:[%s0 + $0x94] sm:$0xf]
  %v53 = vld [vmem:[%s0 + $0x98] sm:$0xf]
  %v54 = vld [vmem:[%s0 + $0x9c] sm:$0xf]
  %v55 = vld [vmem:[%s0 + $0xa0] sm:$0xf]
  %v56 = vld [vmem:[%s0 + $0xa4] sm:$0xf]
  %v57 = vld [vmem:[%s0 + $0xa8] sm:$0xf]
  %v58 = vld [vmem:[%s0 + $0xac] sm:$0xf]
  %v59 = vld [vmem:[%s0 + $0xb0] sm:$0xf]
  %v60 = vld [vmem:[%s0 + $0xb4] sm:$0xf]
  %v61 = vld [vmem:[%s0 + $0xb8] sm:$0xf]
  %v62 = vld [vmem:[%s0 + $0xbc] sm:$0xf]
  %v63 = vld [vmem:[%s0 + $0xc0] sm:$0xf]
  %v64 = vld [vmem:[%s0 + $0xc4] sm:$0xf]
  %v65 = vld [vmem:[%s0 + $0xc8] sm:$0xf]
  %v66 = vld [vmem:[%s0 + $0xcc] sm:$0xf]
  %v67 = vld [vmem:[%s0 + $0xd0] sm:$0xf]
  %v68 = vld [vmem:[%s0 + $0xd4] sm:$0xf]
  %v69 = vld [vmem:[%s0 + $0xd8] sm:$0xf]
  %v70 = vld [vmem:[%s0 + $0xdc] sm:$0xf]
  %v71 = vld [vmem:[%s0 + $0xe0] sm:$0xf]
  %v72 = vld [vmem:[%s0 + $0xe4] sm:$0xf]
  %v73 = vld [vmem:[%s0 + $0xe8] sm:$0xf]
  %v74 = vld [vmem:[%s0 + $0xec] sm:$0xf]
  %v75 = vld [vmem:[%s0 + $0xf0] sm:$0xf]
  %v76 = vld [vmem:[%s0 + $0xf4] sm:$0xf]
  %v77 = vld [vmem:[%s0 + $0xf8] sm:$0xf]
  %v78 = vld [vmem:[%s0 + $0xfc] sm:$0xf]
  %v79 = vld [vmem:[%s1] sm:$0xf]
  %v80 = vld [vmem:[%s2] sm:$0x1]
  %v82 = vlaneseq
  %v83 = vshrl.u32 %v82, 7
  %v84 = vsub.s32 0, %v83
  %v85 = vrot.slane %v80, %v84
  %v151 = vunpack.c.l.b16 %v15
  %v152 = vunpack.c.l.b16 %v16
  %v153 = vunpack.c.l.b16 %v17
  %v154 = vunpack.c.l.b16 %v18
  %v155 = vunpack.c.l.b16 %v19
  %v156 = vunpack.c.l.b16 %v20
  %v157 = vunpack.c.l.b16 %v21
  %v158 = vunpack.c.l.b16 %v22
  %v159 = vunpack.c.l.b16 %v23
  %v160 = vunpack.c.l.b16 %v24
  %v161 = vunpack.c.l.b16 %v25
  %v162 = vunpack.c.l.b16 %v26
  %v163 = vunpack.c.l.b16 %v27
  %v164 = vunpack.c.l.b16 %v28
  %v165 = vunpack.c.l.b16 %v29
  %v166 = vunpack.c.l.b16 %v30
  %v167 = vunpack.c.l.b16 %v31
  %v168 = vunpack.c.l.b16 %v32
  %v169 = vunpack.c.l.b16 %v33
  %v170 = vunpack.c.l.b16 %v34
  %v171 = vunpack.c.l.b16 %v35
  %v172 = vunpack.c.l.b16 %v36
  %v173 = vunpack.c.l.b16 %v37
  %v174 = vunpack.c.l.b16 %v38
  %v175 = vunpack.c.l.b16 %v39
  %v176 = vunpack.c.l.b16 %v40
  %v177 = vunpack.c.l.b16 %v41
  %v178 = vunpack.c.l.b16 %v42
  %v179 = vunpack.c.l.b16 %v43
  %v180 = vunpack.c.l.b16 %v44
  %v181 = vunpack.c.l.b16 %v45
  %v182 = vunpack.c.l.b16 %v46
  %v183 = vunpack.c.l.b16 %v47
  %v184 = vunpack.c.l.b16 %v48
  %v185 = vunpack.c.l.b16 %v49
  %v186 = vunpack.c.l.b16 %v50
  %v187 = vunpack.c.l.b16 %v51
  %v188 = vunpack.c.l.b16 %v52
  %v189 = vunpack.c.l.b16 %v53
  %v190 = vunpack.c.l.b16 %v54
  %v191 = vunpack.c.l.b16 %v55
  %v192 = vunpack.c.l.b16 %v56
  %v193 = vunpack.c.l.b16 %v57
  %v194 = vunpack.c.l.b16 %v58
  %v195 = vunpack.c.l.b16 %v59
  %v196 = vunpack.c.l.b16 %v60
  %v197 = vunpack.c.l.b16 %v61
  %v198 = vunpack.c.l.b16 %v62
  %v199 = vunpack.c.l.b16 %v63
  %v200 = vunpack.c.l.b16 %v64
  %v201 = vunpack.c.l.b16 %v65
  %v202 = vunpack.c.l.b16 %v66
  %v203 = vunpack.c.l.b16 %v67
  %v204 = vunpack.c.l.b16 %v68
  %v205 = vunpack.c.l.b16 %v69
  %v206 = vunpack.c.l.b16 %v70
  %v207 = vunpack.c.l.b16 %v71
  %v208 = vunpack.c.l.b16 %v72
  %v209 = vunpack.c.l.b16 %v73
  %v210 = vunpack.c.l.b16 %v74
  %v211 = vunpack.c.l.b16 %v75
  %v212 = vunpack.c.l.b16 %v76
  %v213 = vunpack.c.l.b16 %v77
  %v214 = vunpack.c.l.b16 %v78
  %v215 = vpack.c.b16 %v152, %v151
  %v216 = vpack.c.b16 %v154, %v153
  %v217 = vpack.c.b16 %v156, %v155
  %v218 = vpack.c.b16 %v158, %v157
  %v219 = vpack.c.b16 %v160, %v159
  %v220 = vpack.c.b16 %v162, %v161
  %v221 = vpack.c.b16 %v164, %v163
  %v222 = vpack.c.b16 %v166, %v165
  %v223 = vpack.c.b16 %v168, %v167
  %v224 = vpack.c.b16 %v170, %v169
  %v225 = vpack.c.b16 %v172, %v171
  %v226 = vpack.c.b16 %v174, %v173
  %v227 = vpack.c.b16 %v176, %v175
  %v228 = vpack.c.b16 %v178, %v177
  %v229 = vpack.c.b16 %v180, %v179
  %v230 = vpack.c.b16 %v182, %v181
  %v231 = vpack.c.b16 %v184, %v183
  %v232 = vpack.c.b16 %v186, %v185
  %v233 = vpack.c.b16 %v188, %v187
  %v234 = vpack.c.b16 %v190, %v189
  %v235 = vpack.c.b16 %v192, %v191
  %v236 = vpack.c.b16 %v194, %v193
  %v237 = vpack.c.b16 %v196, %v195
  %v238 = vpack.c.b16 %v198, %v197
  %v239 = vpack.c.b16 %v200, %v199
  %v240 = vpack.c.b16 %v202, %v201
  %v241 = vpack.c.b16 %v204, %v203
  %v242 = vpack.c.b16 %v206, %v205
  %v243 = vpack.c.b16 %v208, %v207
  %v244 = vpack.c.b16 %v210, %v209
  %v245 = vpack.c.b16 %v212, %v211
  %v246 = vpack.c.b16 %v214, %v213
  %vm247 = vcmask 64512
  %v249 = vsel %vm247, %v215, 0
  %v252 = vsel %vm247, %v216, 0
  %v255 = vsel %vm247, %v217, 0
  %v258 = vsel %vm247, %v218, 0
  %v261 = vsel %vm247, %v219, 0
  %v264 = vsel %vm247, %v220, 0
  %v267 = vsel %vm247, %v221, 0
  %v270 = vsel %vm247, %v222, 0
  %v273 = vsel %vm247, %v223, 0
  %v276 = vsel %vm247, %v224, 0
  %v279 = vsel %vm247, %v225, 0
  %v282 = vsel %vm247, %v226, 0
  %v285 = vsel %vm247, %v227, 0
  %v288 = vsel %vm247, %v228, 0
  %v291 = vsel %vm247, %v229, 0
  %v294 = vsel %vm247, %v230, 0
  %v297 = vsel %vm247, %v231, 0
  %v300 = vsel %vm247, %v232, 0
  %v303 = vsel %vm247, %v233, 0
  %v306 = vsel %vm247, %v234, 0
  %v309 = vsel %vm247, %v235, 0
  %v312 = vsel %vm247, %v236, 0
  %v315 = vsel %vm247, %v237, 0
  %v318 = vsel %vm247, %v238, 0
  %v321 = vsel %vm247, %v239, 0
  %v324 = vsel %vm247, %v240, 0
  %v327 = vsel %vm247, %v241, 0
  %v330 = vsel %vm247, %v242, 0
  %v333 = vsel %vm247, %v243, 0
  %v336 = vsel %vm247, %v244, 0
  %v339 = vsel %vm247, %v245, 0
  %v342 = vsel %vm247, %v246, 0
  %vm344 = vcmask 1043456
  %v346 = vsel %vm344, %v79, 0
  %348 = vmatprep.subr.bf16.mxu0 0
  %349 = vmatpush1.bf16.msra.mxu0 %v346
  %350 = vmatprep.subr.bf16.mxu0 0
  %351 = vmatpush1.bf16.msra.mxu0 0
  %352 = vmatprep.subr.bf16.mxu0 0
  %353 = vmatpush1.bf16.msra.mxu0 0
  %354 = vmatprep.subr.bf16.mxu0 0
  %355 = vmatpush1.bf16.msra.mxu0 0
  %356 = vmatprep.subr.bf16.mxu0 0
  %357 = vmatpush1.bf16.msra.mxu0 0
  %358 = vmatprep.subr.bf16.mxu0 0
  %359 = vmatpush1.bf16.msra.mxu0 0
  %360 = vmatprep.subr.bf16.mxu0 0
  %361 = vmatpush1.bf16.msra.mxu0 0
  %362 = vmatprep.subr.bf16.mxu0 0
  %363 = vmatpush1.bf16.msra.mxu0 0
  %364 = vmatprep.subr.bf16.mxu0 0
  %365 = vmatpush1.bf16.msra.mxu0 0
  %366 = vmatprep.subr.bf16.mxu0 0
  %367 = vmatpush1.bf16.msra.mxu0 0
  %368 = vmatprep.subr.bf16.mxu0 0
  %369 = vmatpush1.bf16.msra.mxu0 0
  %370 = vmatprep.subr.bf16.mxu0 0
  %371 = vmatpush1.bf16.msra.mxu0 0
  %372 = vmatprep.subr.bf16.mxu0 0
  %373 = vmatpush1.bf16.msra.mxu0 0
  %374 = vmatprep.subr.bf16.mxu0 0
  %375 = vmatpush1.bf16.msra.mxu0 0
  %376 = vmatprep.subr.bf16.mxu0 0
  %377 = vmatpush1.bf16.msra.mxu0 0
  %378 = vmatprep.subr.bf16.mxu0 0
  %379 = vmatpush1.bf16.msra.mxu0 0
  %380 = vmatprep.mubr.bf16.mxu0 0
  %381 = vmatmul.mubr.bf16.gmra.mrb[0].mxu0 %v249
  %v382 = vpop.f32.mrb[0].mxu0
  %v383 = vadd.f32 %v85, %v382
  %v384 = vpop.f32.mrb[0].mxu0
  %v385 = vpop.f32.mrb[0].mxu0
  %v386 = vadd.f32 %v85, %v385
  %v387 = vpop.f32.mrb[0].mxu0
  %388 = vmatprep.mubr.bf16.mxu0 0
  %389 = vmatmul.mubr.bf16.gmra.mrb[0].mxu0 %v252
  %v390 = vpop.f32.mrb[0].mxu0
  %v391 = vadd.f32 %v85, %v390
  %v392 = vpop.f32.mrb[0].mxu0
  %v393 = vpop.f32.mrb[0].mxu0
  %v394 = vadd.f32 %v85, %v393
  %v395 = vpop.f32.mrb[0].mxu0
  %396 = vmatprep.mubr.bf16.mxu0 0
  %397 = vmatmul.mubr.bf16.gmra.mrb[0].mxu0 %v255
  %v398 = vpop.f32.mrb[0].mxu0
  %v399 = vadd.f32 %v85, %v398
  %v400 = vpop.f32.mrb[0].mxu0
  %v401 = vpop.f32.mrb[0].mxu0
  %v402 = vadd.f32 %v85, %v401
  %v403 = vpop.f32.mrb[0].mxu0
  %404 = vmatprep.mubr.bf16.mxu0 0
  %405 = vmatmul.mubr.bf16.gmra.mrb[0].mxu0 %v258
  %v406 = vpop.f32.mrb[0].mxu0
  %v407 = vadd.f32 %v85, %v406
  %v408 = vpop.f32.mrb[0].mxu0
  %v409 = vpop.f32.mrb[0].mxu0
  %v410 = vadd.f32 %v85, %v409
  %v411 = vpop.f32.mrb[0].mxu0
  %412 = vmatprep.mubr.bf16.mxu0 0
  %413 = vmatmul.mubr.bf16.gmra.mrb[0].mxu0 %v261
  %v414 = vpop.f32.mrb[0].mxu0
  %v415 = vadd.f32 %v85, %v414
  %v416 = vpop.f32.mrb[0].mxu0
  %v417 = vpop.f32.mrb[0].mxu0
  %v418 = vadd.f32 %v85, %v417
  %v419 = vpop.f32.mrb[0].mxu0
  %420 = vmatprep.mubr.bf16.mxu0 0
  %421 = vmatmul.mubr.bf16.gmra.mrb[0].mxu0 %v264
  %v422 = vpop.f32.mrb[0].mxu0
  %v423 = vadd.f32 %v85, %v422
  %v424 = vpop.f32.mrb[0].mxu0
  %v425 = vpop.f32.mrb[0].mxu0
  %v426 = vadd.f32 %v85, %v425
  %v427 = vpop.f32.mrb[0].mxu0
  %428 = vmatprep.mubr.bf16.mxu0 0
  %429 = vmatmul.mubr.bf16.gmra.mrb[0].mxu0 %v267
  %v430 = vpop.f32.mrb[0].mxu0
  %v431 = vadd.f32 %v85, %v430
  %v432 = vpop.f32.mrb[0].mxu0
  %v433 = vpop.f32.mrb[0].mxu0
  %v434 = vadd.f32 %v85, %v433
  %v435 = vpop.f32.mrb[0].mxu0
  %436 = vmatprep.mubr.bf16.mxu0 0
  %437 = vmatmul.mubr.bf16.gmra.mrb[0].mxu0 %v270
  %v438 = vpop.f32.mrb[0].mxu0
  %v439 = vadd.f32 %v85, %v438
  %v440 = vpop.f32.mrb[0].mxu0
  %v441 = vpop.f32.mrb[0].mxu0
  %v442 = vadd.f32 %v85, %v441
  %v443 = vpop.f32.mrb[0].mxu0
  %444 = vmatprep.mubr.bf16.mxu0 0
  %445 = vmatmul.mubr.bf16.gmra.mrb[0].mxu0 %v273
  %v446 = vpop.f32.mrb[0].mxu0
  %v447 = vadd.f32 %v85, %v446
  %v448 = vpop.f32.mrb[0].mxu0
  %v449 = vpop.f32.mrb[0].mxu0
  %v450 = vadd.f32 %v85, %v449
  %v451 = vpop.f32.mrb[0].mxu0
  %452 = vmatprep.mubr.bf16.mxu0 0
  %453 = vmatmul.mubr.bf16.gmra.mrb[0].mxu0 %v276
  %v454 = vpop.f32.mrb[0].mxu0
  %v455 = vadd.f32 %v85, %v454
  %v456 = vpop.f32.mrb[0].mxu0
  %v457 = vpop.f32.mrb[0].mxu0
  %v458 = vadd.f32 %v85, %v457
  %v459 = vpop.f32.mrb[0].mxu0
  %460 = vmatprep.mubr.bf16.mxu0 0
  %461 = vmatmul.mubr.bf16.gmra.mrb[0].mxu0 %v279
  %v462 = vpop.f32.mrb[0].mxu0
  %v463 = vadd.f32 %v85, %v462
  %v464 = vpop.f32.mrb[0].mxu0
  %v465 = vpop.f32.mrb[0].mxu0
  %v466 = vadd.f32 %v85, %v465
  %v467 = vpop.f32.mrb[0].mxu0
  %468 = vmatprep.mubr.bf16.mxu0 0
  %469 = vmatmul.mubr.bf16.gmra.mrb[0].mxu0 %v282
  %v470 = vpop.f32.mrb[0].mxu0
  %v471 = vadd.f32 %v85, %v470
  %v472 = vpop.f32.mrb[0].mxu0
  %v473 = vpop.f32.mrb[0].mxu0
  %v474 = vadd.f32 %v85, %v473
  %v475 = vpop.f32.mrb[0].mxu0
  %476 = vmatprep.mubr.bf16.mxu0 0
  %477 = vmatmul.mubr.bf16.gmra.mrb[0].mxu0 %v285
  %v478 = vpop.f32.mrb[0].mxu0
  %v479 = vadd.f32 %v85, %v478
  %v480 = vpop.f32.mrb[0].mxu0
  %v481 = vpop.f32.mrb[0].mxu0
  %v482 = vadd.f32 %v85, %v481
  %v483 = vpop.f32.mrb[0].mxu0
  %484 = vmatprep.mubr.bf16.mxu0 0
  %485 = vmatmul.mubr.bf16.gmra.mrb[0].mxu0 %v288
  %v486 = vpop.f32.mrb[0].mxu0
  %v487 = vadd.f32 %v85, %v486
  %v488 = vpop.f32.mrb[0].mxu0
  %v489 = vpop.f32.mrb[0].mxu0
  %v490 = vadd.f32 %v85, %v489
  %v491 = vpop.f32.mrb[0].mxu0
  %492 = vmatprep.mubr.bf16.mxu0 0
  %493 = vmatmul.mubr.bf16.gmra.mrb[0].mxu0 %v291
  %v494 = vpop.f32.mrb[0].mxu0
  %v495 = vadd.f32 %v85, %v494
  %v496 = vpop.f32.mrb[0].mxu0
  %v497 = vpop.f32.mrb[0].mxu0
  %v498 = vadd.f32 %v85, %v497
  %v499 = vpop.f32.mrb[0].mxu0
  %500 = vmatprep.mubr.bf16.mxu0 0
  %501 = vmatmul.mubr.bf16.gmra.mrb[0].mxu0 %v294
  %v502 = vpop.f32.mrb[0].mxu0
  %v503 = vadd.f32 %v85, %v502
  %v504 = vpop.f32.mrb[0].mxu0
  %v505 = vpop.f32.mrb[0].mxu0
  %v506 = vadd.f32 %v85, %v505
  %v507 = vpop.f32.mrb[0].mxu0
  %508 = vmatprep.mubr.bf16.mxu0 0
  %509 = vmatmul.mubr.bf16.gmra.mrb[0].mxu0 %v297
  %v510 = vpop.f32.mrb[0].mxu0
  %v511 = vadd.f32 %v85, %v510
  %v512 = vpop.f32.mrb[0].mxu0
  %v513 = vpop.f32.mrb[0].mxu0
  %v514 = vadd.f32 %v85, %v513
  %v515 = vpop.f32.mrb[0].mxu0
  %516 = vmatprep.mubr.bf16.mxu0 0
  %517 = vmatmul.mubr.bf16.gmra.mrb[0].mxu0 %v300
  %v518 = vpop.f32.mrb[0].mxu0
  %v519 = vadd.f32 %v85, %v518
  %v520 = vpop.f32.mrb[0].mxu0
  %v521 = vpop.f32.mrb[0].mxu0
  %v522 = vadd.f32 %v85, %v521
  %v523 = vpop.f32.mrb[0].mxu0
  %524 = vmatprep.mubr.bf16.mxu0 0
  %525 = vmatmul.mubr.bf16.gmra.mrb[0].mxu0 %v303
  %v526 = vpop.f32.mrb[0].mxu0
  %v527 = vadd.f32 %v85, %v526
  %v528 = vpop.f32.mrb[0].mxu0
  %v529 = vpop.f32.mrb[0].mxu0
  %v530 = vadd.f32 %v85, %v529
  %v531 = vpop.f32.mrb[0].mxu0
  %532 = vmatprep.mubr.bf16.mxu0 0
  %533 = vmatmul.mubr.bf16.gmra.mrb[0].mxu0 %v306
  %v534 = vpop.f32.mrb[0].mxu0
  %v535 = vadd.f32 %v85, %v534
  %v536 = vpop.f32.mrb[0].mxu0
  %v537 = vpop.f32.mrb[0].mxu0
  %v538 = vadd.f32 %v85, %v537
  %v539 = vpop.f32.mrb[0].mxu0
  %540 = vmatprep.mubr.bf16.mxu0 0
  %541 = vmatmul.mubr.bf16.gmra.mrb[0].mxu0 %v309
  %v542 = vpop.f32.mrb[0].mxu0
  %v543 = vadd.f32 %v85, %v542
  %v544 = vpop.f32.mrb[0].mxu0
  %v545 = vpop.f32.mrb[0].mxu0
  %v546 = vadd.f32 %v85, %v545
  %v547 = vpop.f32.mrb[0].mxu0
  %548 = vmatprep.mubr.bf16.mxu0 0
  %549 = vmatmul.mubr.bf16.gmra.mrb[0].mxu0 %v312
  %v550 = vpop.f32.mrb[0].mxu0
  %v551 = vadd.f32 %v85, %v550
  %v552 = vpop.f32.mrb[0].mxu0
  %v553 = vpop.f32.mrb[0].mxu0
  %v554 = vadd.f32 %v85, %v553
  %v555 = vpop.f32.mrb[0].mxu0
  %556 = vmatprep.mubr.bf16.mxu0 0
  %557 = vmatmul.mubr.bf16.gmra.mrb[0].mxu0 %v315
  %v558 = vpop.f32.mrb[0].mxu0
  %v559 = vadd.f32 %v85, %v558
  %v560 = vpop.f32.mrb[0].mxu0
  %v561 = vpop.f32.mrb[0].mxu0
  %v562 = vadd.f32 %v85, %v561
  %v563 = vpop.f32.mrb[0].mxu0
  %564 = vmatprep.mubr.bf16.mxu0 0
  %565 = vmatmul.mubr.bf16.gmra.mrb[0].mxu0 %v318
  %v566 = vpop.f32.mrb[0].mxu0
  %v567 = vadd.f32 %v85, %v566
  %v568 = vpop.f32.mrb[0].mxu0
  %v569 = vpop.f32.mrb[0].mxu0
  %v570 = vadd.f32 %v85, %v569
  %v571 = vpop.f32.mrb[0].mxu0
  %572 = vmatprep.mubr.bf16.mxu0 0
  %573 = vmatmul.mubr.bf16.gmra.mrb[0].mxu0 %v321
  %v574 = vpop.f32.mrb[0].mxu0
  %v575 = vadd.f32 %v85, %v574
  %v576 = vpop.f32.mrb[0].mxu0
  %v577 = vpop.f32.mrb[0].mxu0
  %v578 = vadd.f32 %v85, %v577
  %v579 = vpop.f32.mrb[0].mxu0
  %580 = vmatprep.mubr.bf16.mxu0 0
  %581 = vmatmul.mubr.bf16.gmra.mrb[0].mxu0 %v324
  %v582 = vpop.f32.mrb[0].mxu0
  %v583 = vadd.f32 %v85, %v582
  %v584 = vpop.f32.mrb[0].mxu0
  %v585 = vpop.f32.mrb[0].mxu0
  %v586 = vadd.f32 %v85, %v585
  %v587 = vpop.f32.mrb[0].mxu0
  %588 = vmatprep.mubr.bf16.mxu0 0
  %589 = vmatmul.mubr.bf16.gmra.mrb[0].mxu0 %v327
  %v590 = vpop.f32.mrb[0].mxu0
  %v591 = vadd.f32 %v85, %v590
  %v592 = vpop.f32.mrb[0].mxu0
  %v593 = vpop.f32.mrb[0].mxu0
  %v594 = vadd.f32 %v85, %v593
  %v595 = vpop.f32.mrb[0].mxu0
  %596 = vmatprep.mubr.bf16.mxu0 0
  %597 = vmatmul.mubr.bf16.gmra.mrb[0].mxu0 %v330
  %v598 = vpop.f32.mrb[0].mxu0
  %v599 = vadd.f32 %v85, %v598
  %v600 = vpop.f32.mrb[0].mxu0
  %v601 = vpop.f32.mrb[0].mxu0
  %v602 = vadd.f32 %v85, %v601
  %v603 = vpop.f32.mrb[0].mxu0
  %604 = vmatprep.mubr.bf16.mxu0 0
  %605 = vmatmul.mubr.bf16.gmra.mrb[0].mxu0 %v333
  %v606 = vpop.f32.mrb[0].mxu0
  %v607 = vadd.f32 %v85, %v606
  %v608 = vpop.f32.mrb[0].mxu0
  %v609 = vpop.f32.mrb[0].mxu0
  %v610 = vadd.f32 %v85, %v609
  %v611 = vpop.f32.mrb[0].mxu0
  %612 = vmatprep.mubr.bf16.mxu0 0
  %613 = vmatmul.mubr.bf16.gmra.mrb[0].mxu0 %v336
  %v614 = vpop.f32.mrb[0].mxu0
  %v615 = vadd.f32 %v85, %v614
  %v616 = vpop.f32.mrb[0].mxu0
  %v617 = vpop.f32.mrb[0].mxu0
  %v618 = vadd.f32 %v85, %v617
  %v619 = vpop.f32.mrb[0].mxu0
  %620 = vmatprep.mubr.bf16.mxu0 0
  %621 = vmatmul.mubr.bf16.gmra.mrb[0].mxu0 %v339
  %v622 = vpop.f32.mrb[0].mxu0
  %v623 = vadd.f32 %v85, %v622
  %v624 = vpop.f32.mrb[0].mxu0
  %v625 = vpop.f32.mrb[0].mxu0
  %v626 = vadd.f32 %v85, %v625
  %v627 = vpop.f32.mrb[0].mxu0
  %628 = vmatprep.mubr.bf16.mxu0 0
  %629 = vmatmul.mubr.bf16.gmra.mrb[0].mxu0 %v342
  %v630 = vpop.f32.mrb[0].mxu0
  %v631 = vadd.f32 %v85, %v630
  %v632 = vpop.f32.mrb[0].mxu0
  %v633 = vpop.f32.mrb[0].mxu0
  %v634 = vadd.f32 %v85, %v633
  %v635 = vpop.f32.mrb[0].mxu0
  %636 = vdwg.mxu0
  %v637 = vadd.f32 %v383, 3.0
  %v638 = vadd.f32 %v386, 3.0
  %v639 = vadd.f32 %v391, 3.0
  %v640 = vadd.f32 %v394, 3.0
  %v641 = vadd.f32 %v399, 3.0
  %v642 = vadd.f32 %v402, 3.0
  %v643 = vadd.f32 %v407, 3.0
  %v644 = vadd.f32 %v410, 3.0
  %v645 = vadd.f32 %v415, 3.0
  %v646 = vadd.f32 %v418, 3.0
  %v647 = vadd.f32 %v423, 3.0
  %v648 = vadd.f32 %v426, 3.0
  %v649 = vadd.f32 %v431, 3.0
  %v650 = vadd.f32 %v434, 3.0
  %v651 = vadd.f32 %v439, 3.0
  %v652 = vadd.f32 %v442, 3.0
  %v653 = vadd.f32 %v447, 3.0
  %v654 = vadd.f32 %v450, 3.0
  %v655 = vadd.f32 %v455, 3.0
  %v656 = vadd.f32 %v458, 3.0
  %v657 = vadd.f32 %v463, 3.0
  %v658 = vadd.f32 %v466, 3.0
  %v659 = vadd.f32 %v471, 3.0
  %v660 = vadd.f32 %v474, 3.0
  %v661 = vadd.f32 %v479, 3.0
  %v662 = vadd.f32 %v482, 3.0
  %v663 = vadd.f32 %v487, 3.0
  %v664 = vadd.f32 %v490, 3.0
  %v665 = vadd.f32 %v495, 3.0
  %v666 = vadd.f32 %v498, 3.0
  %v667 = vadd.f32 %v503, 3.0
  %v668 = vadd.f32 %v506, 3.0
  %v669 = vadd.f32 %v511, 3.0
  %v670 = vadd.f32 %v514, 3.0
  %v671 = vadd.f32 %v519, 3.0
  %v672 = vadd.f32 %v522, 3.0
  %v673 = vadd.f32 %v527, 3.0
  %v674 = vadd.f32 %v530, 3.0
  %v675 = vadd.f32 %v535, 3.0
  %v676 = vadd.f32 %v538, 3.0
  %v677 = vadd.f32 %v543, 3.0
  %v678 = vadd.f32 %v546, 3.0
  %v679 = vadd.f32 %v551, 3.0
  %v680 = vadd.f32 %v554, 3.0
  %v681 = vadd.f32 %v559, 3.0
  %v682 = vadd.f32 %v562, 3.0
  %v683 = vadd.f32 %v567, 3.0
  %v684 = vadd.f32 %v570, 3.0
  %v685 = vadd.f32 %v575, 3.0
  %v686 = vadd.f32 %v578, 3.0
  %v687 = vadd.f32 %v583, 3.0
  %v688 = vadd.f32 %v586, 3.0
  %v689 = vadd.f32 %v591, 3.0
  %v690 = vadd.f32 %v594, 3.0
  %v691 = vadd.f32 %v599, 3.0
  %v692 = vadd.f32 %v602, 3.0
  %v693 = vadd.f32 %v607, 3.0
  %v694 = vadd.f32 %v610, 3.0
  %v695 = vadd.f32 %v615, 3.0
  %v696 = vadd.f32 %v618, 3.0
  %v697 = vadd.f32 %v623, 3.0
  %v698 = vadd.f32 %v626, 3.0
  %v699 = vadd.f32 %v631, 3.0
  %v700 = vadd.f32 %v634, 3.0
  %v701 = vmax.f32 %v637, 0.0
  %v702 = vmax.f32 %v638, 0.0
  %v703 = vmax.f32 %v639, 0.0
  %v704 = vmax.f32 %v640, 0.0
  %v705 = vmax.f32 %v641, 0.0
  %v706 = vmax.f32 %v642, 0.0
  %v707 = vmax.f32 %v643, 0.0
  %v708 = vmax.f32 %v644, 0.0
  %v709 = vmax.f32 %v645, 0.0
  %v710 = vmax.f32 %v646, 0.0
  %v711 = vmax.f32 %v647, 0.0
  %v712 = vmax.f32 %v648, 0.0
  %v713 = vmax.f32 %v649, 0.0
  %v714 = vmax.f32 %v650, 0.0
  %v715 = vmax.f32 %v651, 0.0
  %v716 = vmax.f32 %v652, 0.0
  %v717 = vmax.f32 %v653, 0.0
  %v718 = vmax.f32 %v654, 0.0
  %v719 = vmax.f32 %v655, 0.0
  %v720 = vmax.f32 %v656, 0.0
  %v721 = vmax.f32 %v657, 0.0
  %v722 = vmax.f32 %v658, 0.0
  %v723 = vmax.f32 %v659, 0.0
  %v724 = vmax.f32 %v660, 0.0
  %v725 = vmax.f32 %v661, 0.0
  %v726 = vmax.f32 %v662, 0.0
  %v727 = vmax.f32 %v663, 0.0
  %v728 = vmax.f32 %v664, 0.0
  %v729 = vmax.f32 %v665, 0.0
  %v730 = vmax.f32 %v666, 0.0
  %v731 = vmax.f32 %v667, 0.0
  %v732 = vmax.f32 %v668, 0.0
  %v733 = vmax.f32 %v669, 0.0
  %v734 = vmax.f32 %v670, 0.0
  %v735 = vmax.f32 %v671, 0.0
  %v736 = vmax.f32 %v672, 0.0
  %v737 = vmax.f32 %v673, 0.0
  %v738 = vmax.f32 %v674, 0.0
  %v739 = vmax.f32 %v675, 0.0
  %v740 = vmax.f32 %v676, 0.0
  %v741 = vmax.f32 %v677, 0.0
  %v742 = vmax.f32 %v678, 0.0
  %v743 = vmax.f32 %v679, 0.0
  %v744 = vmax.f32 %v680, 0.0
  %v745 = vmax.f32 %v681, 0.0
  %v746 = vmax.f32 %v682, 0.0
  %v747 = vmax.f32 %v683, 0.0
  %v748 = vmax.f32 %v684, 0.0
  %v749 = vmax.f32 %v685, 0.0
  %v750 = vmax.f32 %v686, 0.0
  %v751 = vmax.f32 %v687, 0.0
  %v752 = vmax.f32 %v688, 0.0
  %v753 = vmax.f32 %v689, 0.0
  %v754 = vmax.f32 %v690, 0.0
  %v755 = vmax.f32 %v691, 0.0
  %v756 = vmax.f32 %v692, 0.0
  %v757 = vmax.f32 %v693, 0.0
  %v758 = vmax.f32 %v694, 0.0
  %v759 = vmax.f32 %v695, 0.0
  %v760 = vmax.f32 %v696, 0.0
  %v761 = vmax.f32 %v697, 0.0
  %v762 = vmax.f32 %v698, 0.0
  %v763 = vmax.f32 %v699, 0.0
  %v764 = vmax.f32 %v700, 0.0
  %v765 = vmin.f32 %v701, 6.0
  %v766 = vmin.f32 %v702, 6.0
  %v767 = vmin.f32 %v703, 6.0
  %v768 = vmin.f32 %v704, 6.0
  %v769 = vmin.f32 %v705, 6.0
  %v770 = vmin.f32 %v706, 6.0
  %v771 = vmin.f32 %v707, 6.0
  %v772 = vmin.f32 %v708, 6.0
  %v773 = vmin.f32 %v709, 6.0
  %v774 = vmin.f32 %v710, 6.0
  %v775 = vmin.f32 %v711, 6.0
  %v776 = vmin.f32 %v712, 6.0
  %v777 = vmin.f32 %v713, 6.0
  %v778 = vmin.f32 %v714, 6.0
  %v779 = vmin.f32 %v715, 6.0
  %v780 = vmin.f32 %v716, 6.0
  %v781 = vmin.f32 %v717, 6.0
  %v782 = vmin.f32 %v718, 6.0
  %v783 = vmin.f32 %v719, 6.0
  %v784 = vmin.f32 %v720, 6.0
  %v785 = vmin.f32 %v721, 6.0
  %v786 = vmin.f32 %v722, 6.0
  %v787 = vmin.f32 %v723, 6.0
  %v788 = vmin.f32 %v724, 6.0
  %v789 = vmin.f32 %v725, 6.0
  %v790 = vmin.f32 %v726, 6.0
  %v791 = vmin.f32 %v727, 6.0
  %v792 = vmin.f32 %v728, 6.0
  %v793 = vmin.f32 %v729, 6.0
  %v794 = vmin.f32 %v730, 6.0
  %v795 = vmin.f32 %v731, 6.0
  %v796 = vmin.f32 %v732, 6.0
  %v797 = vmin.f32 %v733, 6.0
  %v798 = vmin.f32 %v734, 6.0
  %v799 = vmin.f32 %v735, 6.0
  %v800 = vmin.f32 %v736, 6.0
  %v801 = vmin.f32 %v737, 6.0
  %v802 = vmin.f32 %v738, 6.0
  %v803 = vmin.f32 %v739, 6.0
  %v804 = vmin.f32 %v740, 6.0
  %v805 = vmin.f32 %v741, 6.0
  %v806 = vmin.f32 %v742, 6.0
  %v807 = vmin.f32 %v743, 6.0
  %v808 = vmin.f32 %v744, 6.0
  %v809 = vmin.f32 %v745, 6.0
  %v810 = vmin.f32 %v746, 6.0
  %v811 = vmin.f32 %v747, 6.0
  %v812 = vmin.f32 %v748, 6.0
  %v813 = vmin.f32 %v749, 6.0
  %v814 = vmin.f32 %v750, 6.0
  %v815 = vmin.f32 %v751, 6.0
  %v816 = vmin.f32 %v752, 6.0
  %v817 = vmin.f32 %v753, 6.0
  %v818 = vmin.f32 %v754, 6.0
  %v819 = vmin.f32 %v755, 6.0
  %v820 = vmin.f32 %v756, 6.0
  %v821 = vmin.f32 %v757, 6.0
  %v822 = vmin.f32 %v758, 6.0
  %v823 = vmin.f32 %v759, 6.0
  %v824 = vmin.f32 %v760, 6.0
  %v825 = vmin.f32 %v761, 6.0
  %v826 = vmin.f32 %v762, 6.0
  %v827 = vmin.f32 %v763, 6.0
  %v828 = vmin.f32 %v764, 6.0
  %v829 = vmul.f32 %v383, %v765
  %v830 = vmul.f32 %v386, %v766
  %v831 = vmul.f32 %v391, %v767
  %v832 = vmul.f32 %v394, %v768
  %v833 = vmul.f32 %v399, %v769
  %v834 = vmul.f32 %v402, %v770
  %v835 = vmul.f32 %v407, %v771
  %v836 = vmul.f32 %v410, %v772
  %v837 = vmul.f32 %v415, %v773
  %v838 = vmul.f32 %v418, %v774
  %v839 = vmul.f32 %v423, %v775
  %v840 = vmul.f32 %v426, %v776
  %v841 = vmul.f32 %v431, %v777
  %v842 = vmul.f32 %v434, %v778
  %v843 = vmul.f32 %v439, %v779
  %v844 = vmul.f32 %v442, %v780
  %v845 = vmul.f32 %v447, %v781
  %v846 = vmul.f32 %v450, %v782
  %v847 = vmul.f32 %v455, %v783
  %v848 = vmul.f32 %v458, %v784
  %v849 = vmul.f32 %v463, %v785
  %v850 = vmul.f32 %v466, %v786
  %v851 = vmul.f32 %v471, %v787
  %v852 = vmul.f32 %v474, %v788
  %v853 = vmul.f32 %v479, %v789
  %v854 = vmul.f32 %v482, %v790
  %v855 = vmul.f32 %v487, %v791
  %v856 = vmul.f32 %v490, %v792
  %v857 = vmul.f32 %v495, %v793
  %v858 = vmul.f32 %v498, %v794
  %v859 = vmul.f32 %v503, %v795
  %v860 = vmul.f32 %v506, %v796
  %v861 = vmul.f32 %v511, %v797
  %v862 = vmul.f32 %v514, %v798
  %v863 = vmul.f32 %v519, %v799
  %v864 = vmul.f32 %v522, %v800
  %v865 = vmul.f32 %v527, %v801
  %v866 = vmul.f32 %v530, %v802
  %v867 = vmul.f32 %v535, %v803
  %v868 = vmul.f32 %v538, %v804
  %v869 = vmul.f32 %v543, %v805
  %v870 = vmul.f32 %v546, %v806
  %v871 = vmul.f32 %v551, %v807
  %v872 = vmul.f32 %v554, %v808
  %v873 = vmul.f32 %v559, %v809
  %v874 = vmul.f32 %v562, %v810
  %v875 = vmul.f32 %v567, %v811
  %v876 = vmul.f32 %v570, %v812
  %v877 = vmul.f32 %v575, %v813
  %v878 = vmul.f32 %v578, %v814
  %v879 = vmul.f32 %v583, %v815
  %v880 = vmul.f32 %v586, %v816
  %v881 = vmul.f32 %v591, %v817
  %v882 = vmul.f32 %v594, %v818
  %v883 = vmul.f32 %v599, %v819
  %v884 = vmul.f32 %v602, %v820
  %v885 = vmul.f32 %v607, %v821
  %v886 = vmul.f32 %v610, %v822
  %v887 = vmul.f32 %v615, %v823
  %v888 = vmul.f32 %v618, %v824
  %v889 = vmul.f32 %v623, %v825
  %v890 = vmul.f32 %v626, %v826
  %v891 = vmul.f32 %v631, %v827
  %v892 = vmul.f32 %v634, %v828
  %v893 = vmul.f32 %v829, 0.16666667
  %v894 = vmul.f32 %v830, 0.16666667
  %v895 = vmul.f32 %v831, 0.16666667
  %v896 = vmul.f32 %v832, 0.16666667
  %v897 = vmul.f32 %v833, 0.16666667
  %v898 = vmul.f32 %v834, 0.16666667
  %v899 = vmul.f32 %v835, 0.16666667
  %v900 = vmul.f32 %v836, 0.16666667
  %v901 = vmul.f32 %v837, 0.16666667
  %v902 = vmul.f32 %v838, 0.16666667
  %v903 = vmul.f32 %v839, 0.16666667
  %v904 = vmul.f32 %v840, 0.16666667
  %v905 = vmul.f32 %v841, 0.16666667
  %v906 = vmul.f32 %v842, 0.16666667
  %v907 = vmul.f32 %v843, 0.16666667
  %v908 = vmul.f32 %v844, 0.16666667
  %v909 = vmul.f32 %v845, 0.16666667
  %v910 = vmul.f32 %v846, 0.16666667
  %v911 = vmul.f32 %v847, 0.16666667
  %v912 = vmul.f32 %v848, 0.16666667
  %v913 = vmul.f32 %v849, 0.16666667
  %v914 = vmul.f32 %v850, 0.16666667
  %v915 = vmul.f32 %v851, 0.16666667
  %v916 = vmul.f32 %v852, 0.16666667
  %v917 = vmul.f32 %v853, 0.16666667
  %v918 = vmul.f32 %v854, 0.16666667
  %v919 = vmul.f32 %v855, 0.16666667
  %v920 = vmul.f32 %v856, 0.16666667
  %v921 = vmul.f32 %v857, 0.16666667
  %v922 = vmul.f32 %v858, 0.16666667
  %v923 = vmul.f32 %v859, 0.16666667
  %v924 = vmul.f32 %v860, 0.16666667
  %v925 = vmul.f32 %v861, 0.16666667
  %v926 = vmul.f32 %v862, 0.16666667
  %v927 = vmul.f32 %v863, 0.16666667
  %v928 = vmul.f32 %v864, 0.16666667
  %v929 = vmul.f32 %v865, 0.16666667
  %v930 = vmul.f32 %v866, 0.16666667
  %v931 = vmul.f32 %v867, 0.16666667
  %v932 = vmul.f32 %v868, 0.16666667
  %v933 = vmul.f32 %v869, 0.16666667
  %v934 = vmul.f32 %v870, 0.16666667
  %v935 = vmul.f32 %v871, 0.16666667
  %v936 = vmul.f32 %v872, 0.16666667
  %v937 = vmul.f32 %v873, 0.16666667
  %v938 = vmul.f32 %v874, 0.16666667
  %v939 = vmul.f32 %v875, 0.16666667
  %v940 = vmul.f32 %v876, 0.16666667
  %v941 = vmul.f32 %v877, 0.16666667
  %v942 = vmul.f32 %v878, 0.16666667
  %v943 = vmul.f32 %v879, 0.16666667
  %v944 = vmul.f32 %v880, 0.16666667
  %v945 = vmul.f32 %v881, 0.16666667
  %v946 = vmul.f32 %v882, 0.16666667
  %v947 = vmul.f32 %v883, 0.16666667
  %v948 = vmul.f32 %v884, 0.16666667
  %v949 = vmul.f32 %v885, 0.16666667
  %v950 = vmul.f32 %v886, 0.16666667
  %v951 = vmul.f32 %v887, 0.16666667
  %v952 = vmul.f32 %v888, 0.16666667
  %v953 = vmul.f32 %v889, 0.16666667
  %v954 = vmul.f32 %v890, 0.16666667
  %v955 = vmul.f32 %v891, 0.16666667
  %v956 = vmul.f32 %v892, 0.16666667
  %v957 = vpack.c.bf16 %v894, %v893
  %v958 = vpack.c.bf16 %v896, %v895
  %v959 = vpack.c.bf16 %v898, %v897
  %v960 = vpack.c.bf16 %v900, %v899
  %v961 = vpack.c.bf16 %v902, %v901
  %v962 = vpack.c.bf16 %v904, %v903
  %v963 = vpack.c.bf16 %v906, %v905
  %v964 = vpack.c.bf16 %v908, %v907
  %v965 = vpack.c.bf16 %v910, %v909
  %v966 = vpack.c.bf16 %v912, %v911
  %v967 = vpack.c.bf16 %v914, %v913
  %v968 = vpack.c.bf16 %v916, %v915
  %v969 = vpack.c.bf16 %v918, %v917
  %v970 = vpack.c.bf16 %v920, %v919
  %v971 = vpack.c.bf16 %v922, %v921
  %v972 = vpack.c.bf16 %v924, %v923
  %v973 = vpack.c.bf16 %v926, %v925
  %v974 = vpack.c.bf16 %v928, %v927
  %v975 = vpack.c.bf16 %v930, %v929
  %v976 = vpack.c.bf16 %v932, %v931
  %v977 = vpack.c.bf16 %v934, %v933
  %v978 = vpack.c.bf16 %v936, %v935
  %v979 = vpack.c.bf16 %v938, %v937
  %v980 = vpack.c.bf16 %v940, %v939
  %v981 = vpack.c.bf16 %v942, %v941
  %v982 = vpack.c.bf16 %v944, %v943
  %v983 = vpack.c.bf16 %v946, %v945
  %v984 = vpack.c.bf16 %v948, %v947
  %v985 = vpack.c.bf16 %v950, %v949
  %v986 = vpack.c.bf16 %v952, %v951
  %v987 = vpack.c.bf16 %v954, %v953
  %v988 = vpack.c.bf16 %v956, %v955
  %v1021 = vunpack.c.l.b16 %v957
  %v1022 = vunpack.c.h.b16 %v957
  %v1023 = vunpack.c.l.b16 %v958
  %v1024 = vunpack.c.h.b16 %v958
  %v1025 = vunpack.c.l.b16 %v959
  %v1026 = vunpack.c.h.b16 %v959
  %v1027 = vunpack.c.l.b16 %v960
  %v1028 = vunpack.c.h.b16 %v960
  %v1029 = vunpack.c.l.b16 %v961
  %v1030 = vunpack.c.h.b16 %v961
  %v1031 = vunpack.c.l.b16 %v962
  %v1032 = vunpack.c.h.b16 %v962
  %v1033 = vunpack.c.l.b16 %v963
  %v1034 = vunpack.c.h.b16 %v963
  %v1035 = vunpack.c.l.b16 %v964
  %v1036 = vunpack.c.h.b16 %v964
  %v1037 = vunpack.c.l.b16 %v965
  %v1038 = vunpack.c.h.b16 %v965
  %v1039 = vunpack.c.l.b16 %v966
  %v1040 = vunpack.c.h.b16 %v966
  %v1041 = vunpack.c.l.b16 %v967
  %v1042 = vunpack.c.h.b16 %v967
  %v1043 = vunpack.c.l.b16 %v968
  %v1044 = vunpack.c.h.b16 %v968
  %v1045 = vunpack.c.l.b16 %v969
  %v1046 = vunpack.c.h.b16 %v969
  %v1047 = vunpack.c.l.b16 %v970
  %v1048 = vunpack.c.h.b16 %v970
  %v1049 = vunpack.c.l.b16 %v971
  %v1050 = vunpack.c.h.b16 %v971
  %v1051 = vunpack.c.l.b16 %v972
  %v1052 = vunpack.c.h.b16 %v972
  %v1053 = vunpack.c.l.b16 %v973
  %v1054 = vunpack.c.h.b16 %v973
  %v1055 = vunpack.c.l.b16 %v974
  %v1056 = vunpack.c.h.b16 %v974
  %v1057 = vunpack.c.l.b16 %v975
  %v1058 = vunpack.c.h.b16 %v975
  %v1059 = vunpack.c.l.b16 %v976
  %v1060 = vunpack.c.h.b16 %v976
  %v1061 = vunpack.c.l.b16 %v977
  %v1062 = vunpack.c.h.b16 %v977
  %v1063 = vunpack.c.l.b16 %v978
  %v1064 = vunpack.c.h.b16 %v978
  %v1065 = vunpack.c.l.b16 %v979
  %v1066 = vunpack.c.h.b16 %v979
  %v1067 = vunpack.c.l.b16 %v980
  %v1068 = vunpack.c.h.b16 %v980
  %v1069 = vunpack.c.l.b16 %v981
  %v1070 = vunpack.c.h.b16 %v981
  %v1071 = vunpack.c.l.b16 %v982
  %v1072 = vunpack.c.h.b16 %v982
  %v1073 = vunpack.c.l.b16 %v983
  %v1074 = vunpack.c.h.b16 %v983
  %v1075 = vunpack.c.l.b16 %v984
  %v1076 = vunpack.c.h.b16 %v984
  %v1077 = vunpack.c.l.b16 %v985
  %v1078 = vunpack.c.h.b16 %v985
  %v1079 = vunpack.c.l.b16 %v986
  %v1080 = vunpack.c.h.b16 %v986
  %v1081 = vunpack.c.l.b16 %v987
  %v1082 = vunpack.c.h.b16 %v987
  %v1083 = vunpack.c.l.b16 %v988
  %v1084 = vunpack.c.h.b16 %v988
  %v1085 = vpack.c.b16 %v1021, %v1021
  %v1086 = vpack.c.b16 %v1022, %v1022
  %v1087 = vpack.c.b16 %v1023, %v1023
  %v1088 = vpack.c.b16 %v1024, %v1024
  %v1089 = vpack.c.b16 %v1025, %v1025
  %v1090 = vpack.c.b16 %v1026, %v1026
  %v1091 = vpack.c.b16 %v1027, %v1027
  %v1092 = vpack.c.b16 %v1028, %v1028
  %v1093 = vpack.c.b16 %v1029, %v1029
  %v1094 = vpack.c.b16 %v1030, %v1030
  %v1095 = vpack.c.b16 %v1031, %v1031
  %v1096 = vpack.c.b16 %v1032, %v1032
  %v1097 = vpack.c.b16 %v1033, %v1033
  %v1098 = vpack.c.b16 %v1034, %v1034
  %v1099 = vpack.c.b16 %v1035, %v1035
  %v1100 = vpack.c.b16 %v1036, %v1036
  %v1101 = vpack.c.b16 %v1037, %v1037
  %v1102 = vpack.c.b16 %v1038, %v1038
  %v1103 = vpack.c.b16 %v1039, %v1039
  %v1104 = vpack.c.b16 %v1040, %v1040
  %v1105 = vpack.c.b16 %v1041, %v1041
  %v1106 = vpack.c.b16 %v1042, %v1042
  %v1107 = vpack.c.b16 %v1043, %v1043
  %v1108 = vpack.c.b16 %v1044, %v1044
  %v1109 = vpack.c.b16 %v1045, %v1045
  %v1110 = vpack.c.b16 %v1046, %v1046
  %v1111 = vpack.c.b16 %v1047, %v1047
  %v1112 = vpack.c.b16 %v1048, %v1048
  %v1113 = vpack.c.b16 %v1049, %v1049
  %v1114 = vpack.c.b16 %v1050, %v1050
  %v1115 = vpack.c.b16 %v1051, %v1051
  %v1116 = vpack.c.b16 %v1052, %v1052
  %v1117 = vpack.c.b16 %v1053, %v1053
  %v1118 = vpack.c.b16 %v1054, %v1054
  %v1119 = vpack.c.b16 %v1055, %v1055
  %v1120 = vpack.c.b16 %v1056, %v1056
  %v1121 = vpack.c.b16 %v1057, %v1057
  %v1122 = vpack.c.b16 %v1058, %v1058
  %v1123 = vpack.c.b16 %v1059, %v1059
  %v1124 = vpack.c.b16 %v1060, %v1060
  %v1125 = vpack.c.b16 %v1061, %v1061
  %v1126 = vpack.c.b16 %v1062, %v1062
  %v1127 = vpack.c.b16 %v1063, %v1063
  %v1128 = vpack.c.b16 %v1064, %v1064
  %v1129 = vpack.c.b16 %v1065, %v1065
  %v1130 = vpack.c.b16 %v1066, %v1066
  %v1131 = vpack.c.b16 %v1067, %v1067
  %v1132 = vpack.c.b16 %v1068, %v1068
  %v1133 = vpack.c.b16 %v1069, %v1069
  %v1134 = vpack.c.b16 %v1070, %v1070
  %v1135 = vpack.c.b16 %v1071, %v1071
  %v1136 = vpack.c.b16 %v1072, %v1072
  %v1137 = vpack.c.b16 %v1073, %v1073
  %v1138 = vpack.c.b16 %v1074, %v1074
  %v1139 = vpack.c.b16 %v1075, %v1075
  %v1140 = vpack.c.b16 %v1076, %v1076
  %v1141 = vpack.c.b16 %v1077, %v1077
  %v1142 = vpack.c.b16 %v1078, %v1078
  %v1143 = vpack.c.b16 %v1079, %v1079
  %v1144 = vpack.c.b16 %v1080, %v1080
  %v1145 = vpack.c.b16 %v1081, %v1081
  %v1146 = vpack.c.b16 %v1082, %v1082
  %v1147 = vpack.c.b16 %v1083, %v1083
  %v1148 = vpack.c.b16 %v1084, %v1084
  %vm1213 = vcmask 27648
  %1214 = vst.msk [vmem:[%s3] sm:$0xf] %vm1213, %v1085
  %1215 = vst.msk [vmem:[%s3 + $0x4] sm:$0xf] %vm1213, %v1086
  %1216 = vst.msk [vmem:[%s3 + $0x8] sm:$0xf] %vm1213, %v1087
  %1217 = vst.msk [vmem:[%s3 + $0xc] sm:$0xf] %vm1213, %v1088
  %1218 = vst.msk [vmem:[%s3 + $0x10] sm:$0xf] %vm1213, %v1089
  %1219 = vst.msk [vmem:[%s3 + $0x14] sm:$0xf] %vm1213, %v1090
  %1220 = vst.msk [vmem:[%s3 + $0x18] sm:$0xf] %vm1213, %v1091
  %1221 = vst.msk [vmem:[%s3 + $0x1c] sm:$0xf] %vm1213, %v1092
  %1222 = vst.msk [vmem:[%s3 + $0x20] sm:$0xf] %vm1213, %v1093
  %1223 = vst.msk [vmem:[%s3 + $0x24] sm:$0xf] %vm1213, %v1094
  %1224 = vst.msk [vmem:[%s3 + $0x28] sm:$0xf] %vm1213, %v1095
  %1225 = vst.msk [vmem:[%s3 + $0x2c] sm:$0xf] %vm1213, %v1096
  %1226 = vst.msk [vmem:[%s3 + $0x30] sm:$0xf] %vm1213, %v1097
  %1227 = vst.msk [vmem:[%s3 + $0x34] sm:$0xf] %vm1213, %v1098
  %1228 = vst.msk [vmem:[%s3 + $0x38] sm:$0xf] %vm1213, %v1099
  %1229 = vst.msk [vmem:[%s3 + $0x3c] sm:$0xf] %vm1213, %v1100
  %1230 = vst.msk [vmem:[%s3 + $0x40] sm:$0xf] %vm1213, %v1101
  %1231 = vst.msk [vmem:[%s3 + $0x44] sm:$0xf] %vm1213, %v1102
  %1232 = vst.msk [vmem:[%s3 + $0x48] sm:$0xf] %vm1213, %v1103
  %1233 = vst.msk [vmem:[%s3 + $0x4c] sm:$0xf] %vm1213, %v1104
  %1234 = vst.msk [vmem:[%s3 + $0x50] sm:$0xf] %vm1213, %v1105
  %1235 = vst.msk [vmem:[%s3 + $0x54] sm:$0xf] %vm1213, %v1106
  %1236 = vst.msk [vmem:[%s3 + $0x58] sm:$0xf] %vm1213, %v1107
  %1237 = vst.msk [vmem:[%s3 + $0x5c] sm:$0xf] %vm1213, %v1108
  %1238 = vst.msk [vmem:[%s3 + $0x60] sm:$0xf] %vm1213, %v1109
  %1239 = vst.msk [vmem:[%s3 + $0x64] sm:$0xf] %vm1213, %v1110
  %1240 = vst.msk [vmem:[%s3 + $0x68] sm:$0xf] %vm1213, %v1111
  %1241 = vst.msk [vmem:[%s3 + $0x6c] sm:$0xf] %vm1213, %v1112
  %1242 = vst.msk [vmem:[%s3 + $0x70] sm:$0xf] %vm1213, %v1113
  %1243 = vst.msk [vmem:[%s3 + $0x74] sm:$0xf] %vm1213, %v1114
  %1244 = vst.msk [vmem:[%s3 + $0x78] sm:$0xf] %vm1213, %v1115
  %1245 = vst.msk [vmem:[%s3 + $0x7c] sm:$0xf] %vm1213, %v1116
  %1246 = vst.msk [vmem:[%s3 + $0x80] sm:$0xf] %vm1213, %v1117
  %1247 = vst.msk [vmem:[%s3 + $0x84] sm:$0xf] %vm1213, %v1118
  %1248 = vst.msk [vmem:[%s3 + $0x88] sm:$0xf] %vm1213, %v1119
  %1249 = vst.msk [vmem:[%s3 + $0x8c] sm:$0xf] %vm1213, %v1120
  %1250 = vst.msk [vmem:[%s3 + $0x90] sm:$0xf] %vm1213, %v1121
  %1251 = vst.msk [vmem:[%s3 + $0x94] sm:$0xf] %vm1213, %v1122
  %1252 = vst.msk [vmem:[%s3 + $0x98] sm:$0xf] %vm1213, %v1123
  %1253 = vst.msk [vmem:[%s3 + $0x9c] sm:$0xf] %vm1213, %v1124
  %1254 = vst.msk [vmem:[%s3 + $0xa0] sm:$0xf] %vm1213, %v1125
  %1255 = vst.msk [vmem:[%s3 + $0xa4] sm:$0xf] %vm1213, %v1126
  %1256 = vst.msk [vmem:[%s3 + $0xa8] sm:$0xf] %vm1213, %v1127
  %1257 = vst.msk [vmem:[%s3 + $0xac] sm:$0xf] %vm1213, %v1128
  %1258 = vst.msk [vmem:[%s3 + $0xb0] sm:$0xf] %vm1213, %v1129
  %1259 = vst.msk [vmem:[%s3 + $0xb4] sm:$0xf] %vm1213, %v1130
  %1260 = vst.msk [vmem:[%s3 + $0xb8] sm:$0xf] %vm1213, %v1131
  %1261 = vst.msk [vmem:[%s3 + $0xbc] sm:$0xf] %vm1213, %v1132
  %1262 = vst.msk [vmem:[%s3 + $0xc0] sm:$0xf] %vm1213, %v1133
  %1263 = vst.msk [vmem:[%s3 + $0xc4] sm:$0xf] %vm1213, %v1134
  %1264 = vst.msk [vmem:[%s3 + $0xc8] sm:$0xf] %vm1213, %v1135
  %1265 = vst.msk [vmem:[%s3 + $0xcc] sm:$0xf] %vm1213, %v1136
  %1266 = vst.msk [vmem:[%s3 + $0xd0] sm:$0xf] %vm1213, %v1137
  %1267 = vst.msk [vmem:[%s3 + $0xd4] sm:$0xf] %vm1213, %v1138
  %1268 = vst.msk [vmem:[%s3 + $0xd8] sm:$0xf] %vm1213, %v1139
  %1269 = vst.msk [vmem:[%s3 + $0xdc] sm:$0xf] %vm1213, %v1140
  %1270 = vst.msk [vmem:[%s3 + $0xe0] sm:$0xf] %vm1213, %v1141
  %1271 = vst.msk [vmem:[%s3 + $0xe4] sm:$0xf] %vm1213, %v1142
  %1272 = vst.msk [vmem:[%s3 + $0xe8] sm:$0xf] %vm1213, %v1143
  %1273 = vst.msk [vmem:[%s3 + $0xec] sm:$0xf] %vm1213, %v1144
  %1274 = vst.msk [vmem:[%s3 + $0xf0] sm:$0xf] %vm1213, %v1145
  %1275 = vst.msk [vmem:[%s3 + $0xf4] sm:$0xf] %vm1213, %v1146
  %1276 = vst.msk [vmem:[%s3 + $0xf8] sm:$0xf] %vm1213, %v1147
  %1277 = vst.msk [vmem:[%s3 + $0xfc] sm:$0xf] %vm1213, %v1148
  // Predicated region
  $region14: #{_spp_forward_jit.2} parent=0 // pred_check
    _
  $region15: #{_spp_forward_jit.2} parent=0 // pred_check_branch
    %1279 = sbr.rel (0) target = $region17
  $region16: #{_spp_forward_jit.2} parent=0 // pred_region
    _
  $region17: #{_spp_forward_jit.2} parent=0 // pred_fallthru
    _
  // Predicated region
  $region18: #{_spp_forward_jit.2} parent=0 // pred_check
    _
  $region19: #{_spp_forward_jit.2} parent=0 // pred_check_branch
    %1281 = sbr.rel (0) target = $region21
  $region20: #{_spp_forward_jit.2} parent=0 // pred_region
    _
  $region21: #{_spp_forward_jit.2} parent=0 // pred_fallthru
    _

// kernel: _spp_forward_jit.3
$region0: #{_spp_forward_jit.3}
  #allocation0 [shape = 'u32[]', space=smem, size = 0x4, offset = 0x4, fixed_abs, tag = 'smem constant byte address 0x4 - core index']
  #allocation1 [shape = 'u32[144,128]{1,0:T(1,128)}', space=vmem, size = 0x12000, scoped, tag = 'internal scratch']
  #allocation2 [shape = 'f32[256,8]{1,0:T(8,128)}', space=vmem, size = 0x20000, scoped, tag = 'scratch operand']
  #allocation3 [shape = 'f32[1,16,20,4]{3,2,1,0:T(8,128)}', space=vmem, size = 0x30000, scoped, tag = 'scratch operand']
  %s0 = inlined_call_operand.vmem [shape: bf16[2,16,16,4], index: 0, kind: input, shape index: {}]
  %s1 = inlined_call_operand.vmem [shape: bf16[4,4,8], index: 1, kind: input, shape index: {}]
  %s2 = inlined_call_operand.vmem [shape: f32[1,8], index: 2, kind: input, shape index: {}]
  %s3 = inlined_call_operand.vmem [shape: f32[2,256,8], index: 3, kind: output, shape index: {}]
  %s4 = sld [smem:[#allocation0]]
  $region45: #{_spp_forward_jit.3} parent=0
    _
  %s6 = ssub.s32 1, %s4
  %s7 = scalar_select 0, %s6, %s4
  loop: start=0, step=1, limit=4
  $region2: #{_spp_forward_jit.3} parent=0 // loop_pre_header
    _
  $region3: #{_spp_forward_jit.3} parent=0 // loop_header
    %s9 = sphi 0, %s13
    %p10 = scmp.ge.s32.totalorder %s9, 4
    %s19 = sphi 0, %s21
    %s22 = sphi 0, %s19
    %s23 = sphi 0, %s22
    %s39 = sphi 0, %s23
    %s43 = sphi 0, %s43
    %s45 = sphi 0, %s43
    %s46 = sphi 0, %s45
    %s60 = sphi 0, %s46
    %s64 = sphi 0, %s64
    %s66 = sphi 0, %s64
    %s67 = sphi 0, %s66
    %s81 = sphi 0, %s67
    %s87 = sphi 0, %s89
    %s90 = sphi 0, %s87
    %s91 = sphi 0, %s90
    %s107 = sphi 0, %s91
  $region4: #{_spp_forward_jit.3} parent=0 // loop_header_branch
    %12 = sbr.rel (%p10) target = $region8
  $region5: #{_spp_forward_jit.3} parent=0 // loop_body
    %s14 = ssub.s32 %s9, 1
    %s15 = ssub.s32 %s9, 2
    %s16 = sadd.s32 %s9, 1
    %s17 = ssub.s32 %s9, %s16
    %p18 = scmp.eq.s32.totalorder %s17, 0
    %s20 = sadd.s32 %s19, 1
    %s21 = scalar_select %p18, %s19, %s20
    %p24 = pneg %p18
    %p25 = scmp.eq.s32.totalorder %s9, 1
    %p26 = por %p24, %p25
    %p27 = scmp.ne.s32.totalorder %s19, %s22
    %p28 = scmp.eq.s32.totalorder %s9, 0
    %p29 = por %p27, %p28
    %p30 = scmp.ne.s32.totalorder %s19, %s22
    %p31 = scmp.eq.s32.totalorder %s14, 1
    %p32 = por %p30, %p31
    %p33 = scmp.ne.s32.totalorder %s22, %s23
    %p34 = scmp.eq.s32.totalorder %s14, 0
    %p35 = por %p33, %p34
    %p36 = scmp.ne.s32.totalorder %s22, %s23
    %p37 = scmp.eq.s32.totalorder %s15, 1
    %p38 = por %p36, %p37
    %p40 = scmp.ne.s32.totalorder %s23, %s39
    %p41 = scmp.eq.s32.totalorder %s15, 0
    %p42 = por %p40, %p41
    %s44 = sadd.s32 %s43, 1
    %p47 = scmp.eq.s32.totalorder %s9, 1
    %p48 = scmp.ne.s32.totalorder %s43, %s45
    %p49 = scmp.eq.s32.totalorder %s9, 0
    %p50 = por %p48, %p49
    %p51 = scmp.ne.s32.totalorder %s43, %s45
    %p52 = scmp.eq.s32.totalorder %s14, 1
    %p53 = por %p51, %p52
    %p54 = scmp.ne.s32.totalorder %s45, %s46
    %p55 = scmp.eq.s32.totalorder %s14, 0
    %p56 = por %p54, %p55
    %p57 = scmp.ne.s32.totalorder %s45, %s46
    %p58 = scmp.eq.s32.totalorder %s15, 1
    %p59 = por %p57, %p58
    %p61 = scmp.ne.s32.totalorder %s46, %s60
    %p62 = scmp.eq.s32.totalorder %s15, 0
    %p63 = por %p61, %p62
    %s65 = sadd.s32 %s64, 1
    %p68 = scmp.eq.s32.totalorder %s9, 1
    %p69 = scmp.ne.s32.totalorder %s64, %s66
    %p70 = scmp.eq.s32.totalorder %s9, 0
    %p71 = por %p69, %p70
    %p72 = scmp.ne.s32.totalorder %s64, %s66
    %p73 = scmp.eq.s32.totalorder %s14, 1
    %p74 = por %p72, %p73
    %p75 = scmp.ne.s32.totalorder %s66, %s67
    %p76 = scmp.eq.s32.totalorder %s14, 0
    %p77 = por %p75, %p76
    %p78 = scmp.ne.s32.totalorder %s66, %s67
    %p79 = scmp.eq.s32.totalorder %s15, 1
    %p80 = por %p78, %p79
    %p82 = scmp.ne.s32.totalorder %s67, %s81
    %p83 = scmp.eq.s32.totalorder %s15, 0
    %p84 = por %p82, %p83
    %s85 = ssub.s32 %s9, %s16
    %p86 = scmp.eq.s32.totalorder %s85, 0
    %s88 = sadd.s32 %s87, 1
    %s89 = scalar_select %p86, %s87, %s88
    %p92 = pneg %p86
    %p93 = scmp.eq.s32.totalorder %s9, 1
    %p94 = por %p92, %p93
    %p95 = scmp.ne.s32.totalorder %s87, %s90
    %p96 = scmp.eq.s32.totalorder %s9, 0
    %p97 = por %p95, %p96
    %p98 = scmp.ne.s32.totalorder %s87, %s90
    %p99 = scmp.eq.s32.totalorder %s14, 1
    %p100 = por %p98, %p99
    %p101 = scmp.ne.s32.totalorder %s90, %s91
    %p102 = scmp.eq.s32.totalorder %s14, 0
    %p103 = por %p101, %p102
    %p104 = scmp.ne.s32.totalorder %s90, %s91
    %p105 = scmp.eq.s32.totalorder %s15, 1
    %p106 = por %p104, %p105
    %p108 = scmp.ne.s32.totalorder %s91, %s107
    %p109 = scmp.eq.s32.totalorder %s15, 0
    %p110 = por %p108, %p109
    %p111 = scmp.le.s32.totalorder 1, %s9
    %p112 = scmp.lt.s32.totalorder %s9, 3
    %p113 = pnand %p111, %p112
    %p114 = pneg %p113
    // Predicated region
    $region9: #{_spp_forward_jit.3} parent=5 // pred_check
      _
    $region10: #{_spp_forward_jit.3} parent=5 // pred_check_branch
      %116 = sbr.rel (%p113) target = $region12
    $region11: #{_spp_forward_jit.3} parent=5 // pred_region
      %s117 = ssub.s32 %s9, 1
      // Predicated region
      $region13: #{_spp_forward_jit.3} parent=11 // pred_check
        %p118 = pneg %p56
      $region14: #{_spp_forward_jit.3} parent=11 // pred_check_branch
        %120 = sbr.rel (%p118) target = $region16
      $region15: #{_spp_forward_jit.3} parent=11 // pred_region
        _
      $region16: #{_spp_forward_jit.3} parent=11 // pred_fallthru
        _
      // Predicated region
      $region17: #{_spp_forward_jit.3} parent=11 // pred_check
        %p121 = pneg %p77
      $region18: #{_spp_forward_jit.3} parent=11 // pred_check_branch
        %123 = sbr.rel (%p121) target = $region20
      $region19: #{_spp_forward_jit.3} parent=11 // pred_region
        _
      $region20: #{_spp_forward_jit.3} parent=11 // pred_fallthru
        _
    $region12: #{_spp_forward_jit.3} parent=5 // pred_fallthru
      _
    %p124 = scmp.lt.s32.totalorder %s9, 2
    // Predicated region
    $region21: #{_spp_forward_jit.3} parent=5 // pred_check
      %p125 = pneg %p124
    $region22: #{_spp_forward_jit.3} parent=5 // pred_check_branch
      %127 = sbr.rel (%p125) target = $region24
    $region23: #{_spp_forward_jit.3} parent=5 // pred_region
      // Predicated region
      $region25: #{_spp_forward_jit.3} parent=23 // pred_check
        %p128 = pneg %p29
      $region26: #{_spp_forward_jit.3} parent=23 // pred_check_branch
        %130 = sbr.rel (%p128) target = $region28
      $region27: #{_spp_forward_jit.3} parent=23 // pred_region
        %p131 = scmp.lt.s32.totalorder %s9, 1
        %s132 = scalar_select %p131, %s9, 1
        %s133 = smul.addr %s132, 32
        %s134 = smul.addr %s133, 4
        %s135 = scalar_lea.vmem %s0, %s134
      $region28: #{_spp_forward_jit.3} parent=23 // pred_fallthru
        _
    $region24: #{_spp_forward_jit.3} parent=5 // pred_fallthru
      _
    %p136 = scmp.le.s32.totalorder 1, %s9
    %p137 = scmp.lt.s32.totalorder %s9, 3
    %p138 = pnand %p136, %p137
    %p139 = pneg %p138
    // Predicated region
    $region29: #{_spp_forward_jit.3} parent=5 // pred_check
      _
    $region30: #{_spp_forward_jit.3} parent=5 // pred_check_branch
      %141 = sbr.rel (%p138) target = $region32
    $region31: #{_spp_forward_jit.3} parent=5 // pred_region
      %s142 = ssub.s32 %s9, 1
      %p143 = scmp.lt.s32.totalorder %s14, 1
      %s144 = scalar_select %p143, %s14, 1
      %s145 = smul.addr %s144, 32
      %s146 = smul.addr %s145, 4
      %s147 = scalar_lea.vmem %s0, %s146
      %p148 = pneg %p35
      %p149 = pneg %p32
      %p150 = pneg %p56
      %p151 = pneg %p53
      %p152 = pneg %p77
      %p153 = pneg %p74
      %p154 = pneg %p103
      %p155 = pneg %p100
      %p156 = scmp.lt.s32.totalorder %s14, 1
      %s157 = scalar_select %p156, %s14, 1
      %s158 = smul.addr %s157, 32
      %s159 = smul.addr %s158, 8
      %s160 = scalar_lea.vmem %s3, %s159
      %p161 = scmp.lt.s32.totalorder %s14, 1
      %s162 = scalar_select %p161, %s14, 1
      %s163 = smul.addr %s162, 32
      %s164 = smul.addr %s163, 4
      %s165 = scalar_lea.vmem %s0, %s164
      %p166 = scmp.lt.s32.totalorder %s14, 1
      %s167 = scalar_select %p166, %s14, 1
      %s168 = smul.addr %s167, 32
      %s169 = smul.addr %s168, 8
      %s170 = scalar_lea.vmem %s3, %s169
      %v172 = vld [vmem:[%s165] sm:$0xf]
      %v173 = vld [vmem:[%s165 + $0x4] sm:$0xf]
      %v174 = vld [vmem:[%s165 + $0x8] sm:$0xf]
      %v175 = vld [vmem:[%s165 + $0xc] sm:$0xf]
      %v176 = vld [vmem:[%s165 + $0x10] sm:$0xf]
      %v177 = vld [vmem:[%s165 + $0x14] sm:$0xf]
      %v178 = vld [vmem:[%s165 + $0x18] sm:$0xf]
      %v179 = vld [vmem:[%s165 + $0x1c] sm:$0xf]
      %v180 = vld [vmem:[%s165 + $0x20] sm:$0xf]
      %v181 = vld [vmem:[%s165 + $0x24] sm:$0xf]
      %v182 = vld [vmem:[%s165 + $0x28] sm:$0xf]
      %v183 = vld [vmem:[%s165 + $0x2c] sm:$0xf]
      %v184 = vld [vmem:[%s165 + $0x30] sm:$0xf]
      %v185 = vld [vmem:[%s165 + $0x34] sm:$0xf]
      %v186 = vld [vmem:[%s165 + $0x38] sm:$0xf]
      %v187 = vld [vmem:[%s165 + $0x3c] sm:$0xf]
      %v188 = vld [vmem:[%s165 + $0x40] sm:$0xf]
      %v189 = vld [vmem:[%s165 + $0x44] sm:$0xf]
      %v190 = vld [vmem:[%s165 + $0x48] sm:$0xf]
      %v191 = vld [vmem:[%s165 + $0x4c] sm:$0xf]
      %v192 = vld [vmem:[%s165 + $0x50] sm:$0xf]
      %v193 = vld [vmem:[%s165 + $0x54] sm:$0xf]
      %v194 = vld [vmem:[%s165 + $0x58] sm:$0xf]
      %v195 = vld [vmem:[%s165 + $0x5c] sm:$0xf]
      %v196 = vld [vmem:[%s165 + $0x60] sm:$0xf]
      %v197 = vld [vmem:[%s165 + $0x64] sm:$0xf]
      %v198 = vld [vmem:[%s165 + $0x68] sm:$0xf]
      %v199 = vld [vmem:[%s165 + $0x6c] sm:$0xf]
      %v200 = vld [vmem:[%s165 + $0x70] sm:$0xf]
      %v201 = vld [vmem:[%s165 + $0x74] sm:$0xf]
      %v202 = vld [vmem:[%s165 + $0x78] sm:$0xf]
      %v203 = vld [vmem:[%s165 + $0x7c] sm:$0xf]
      %v204 = vld [vmem:[%s1] sm:$0x3]
      %v237 = vunpack.c.l.b16 %v172
      %v238 = vunpack.c.l.b16 %v173
      %v239 = vunpack.c.l.b16 %v174
      %v240 = vunpack.c.l.b16 %v175
      %v241 = vunpack.c.l.b16 %v176
      %v242 = vunpack.c.l.b16 %v177
      %v243 = vunpack.c.l.b16 %v178
      %v244 = vunpack.c.l.b16 %v179
      %v245 = vunpack.c.l.b16 %v180
      %v246 = vunpack.c.l.b16 %v181
      %v247 = vunpack.c.l.b16 %v182
      %v248 = vunpack.c.l.b16 %v183
      %v249 = vunpack.c.l.b16 %v184
      %v250 = vunpack.c.l.b16 %v185
      %v251 = vunpack.c.l.b16 %v186
      %v252 = vunpack.c.l.b16 %v187
      %v253 = vunpack.c.l.b16 %v188
      %v254 = vunpack.c.l.b16 %v189
      %v255 = vunpack.c.l.b16 %v190
      %v256 = vunpack.c.l.b16 %v191
      %v257 = vunpack.c.l.b16 %v192
      %v258 = vunpack.c.l.b16 %v193
      %v259 = vunpack.c.l.b16 %v194
      %v260 = vunpack.c.l.b16 %v195
      %v261 = vunpack.c.l.b16 %v196
      %v262 = vunpack.c.l.b16 %v197
      %v263 = vunpack.c.l.b16 %v198
      %v264 = vunpack.c.l.b16 %v199
      %v265 = vunpack.c.l.b16 %v200
      %v266 = vunpack.c.l.b16 %v201
      %v267 = vunpack.c.l.b16 %v202
      %v268 = vunpack.c.l.b16 %v203
      %v269 = vpack.c.b16 %v238, %v237
      %v270 = vpack.c.b16 %v240, %v239
      %v271 = vpack.c.b16 %v242, %v241
      %v272 = vpack.c.b16 %v244, %v243
      %v273 = vpack.c.b16 %v246, %v245
      %v274 = vpack.c.b16 %v248, %v247
      %v275 = vpack.c.b16 %v250, %v249
      %v276 = vpack.c.b16 %v252, %v251
      %v277 = vpack.c.b16 %v254, %v253
      %v278 = vpack.c.b16 %v256, %v255
      %v279 = vpack.c.b16 %v258, %v257
      %v280 = vpack.c.b16 %v260, %v259
      %v281 = vpack.c.b16 %v262, %v261
      %v282 = vpack.c.b16 %v264, %v263
      %v283 = vpack.c.b16 %v266, %v265
      %v284 = vpack.c.b16 %v268, %v267
      %vm285 = vcmask 31744
      %v287 = vsel %vm285, %v269, 0
      %v290 = vsel %vm285, %v270, 0
      %v293 = vsel %vm285, %v271, 0
      %v296 = vsel %vm285, %v272, 0
      %v299 = vsel %vm285, %v273, 0
      %v302 = vsel %vm285, %v274, 0
      %v305 = vsel %vm285, %v275, 0
      %v308 = vsel %vm285, %v276, 0
      %v311 = vsel %vm285, %v277, 0
      %v314 = vsel %vm285, %v278, 0
      %v317 = vsel %vm285, %v279, 0
      %v320 = vsel %vm285, %v280, 0
      %v323 = vsel %vm285, %v281, 0
      %v326 = vsel %vm285, %v282, 0
      %v329 = vsel %vm285, %v283, 0
      %v332 = vsel %vm285, %v284, 0
      %vm334 = vcmask 1041408
      %v336 = vsel %vm334, %v204, 0
      %338 = vmatprep.subr.bf16.mxu0 0
      %339 = vmatpush1.bf16.msra.mxu0 %v336
      %340 = vmatprep.subr.bf16.mxu0 0
      %341 = vmatpush1.bf16.msra.mxu0 0
      %342 = vmatprep.subr.bf16.mxu0 0
      %343 = vmatpush1.bf16.msra.mxu0 0
      %344 = vmatprep.subr.bf16.mxu0 0
      %345 = vmatpush1.bf16.msra.mxu0 0
      %346 = vmatprep.subr.bf16.mxu0 0
      %347 = vmatpush1.bf16.msra.mxu0 0
      %348 = vmatprep.subr.bf16.mxu0 0
      %349 = vmatpush1.bf16.msra.mxu0 0
      %350 = vmatprep.subr.bf16.mxu0 0
      %351 = vmatpush1.bf16.msra.mxu0 0
      %352 = vmatprep.subr.bf16.mxu0 0
      %353 = vmatpush1.bf16.msra.mxu0 0
      %354 = vmatprep.subr.bf16.mxu0 0
      %355 = vmatpush1.bf16.msra.mxu0 0
      %356 = vmatprep.subr.bf16.mxu0 0
      %357 = vmatpush1.bf16.msra.mxu0 0
      %358 = vmatprep.subr.bf16.mxu0 0
      %359 = vmatpush1.bf16.msra.mxu0 0
      %360 = vmatprep.subr.bf16.mxu0 0
      %361 = vmatpush1.bf16.msra.mxu0 0
      %362 = vmatprep.subr.bf16.mxu0 0
      %363 = vmatpush1.bf16.msra.mxu0 0
      %364 = vmatprep.subr.bf16.mxu0 0
      %365 = vmatpush1.bf16.msra.mxu0 0
      %366 = vmatprep.subr.bf16.mxu0 0
      %367 = vmatpush1.bf16.msra.mxu0 0
      %368 = vmatprep.subr.bf16.mxu0 0
      %369 = vmatpush1.bf16.msra.mxu0 0
      %370 = vmatprep.mubr.bf16.mxu0 0
      %371 = vmatmul.mubr.bf16.gmra.mrb[0].mxu0 %v287
      %v372 = vpop.f32.mrb[0].mxu0
      %v373 = vadd.f32 0.0, %v372
      %v374 = vpop.f32.mrb[0].mxu0
      %v375 = vpop.f32.mrb[0].mxu0
      %v376 = vadd.f32 0.0, %v375
      %v377 = vpop.f32.mrb[0].mxu0
      %378 = vmatprep.mubr.bf16.mxu0 0
      %379 = vmatmul.mubr.bf16.gmra.mrb[0].mxu0 %v290
      %v380 = vpop.f32.mrb[0].mxu0
      %v381 = vadd.f32 0.0, %v380
      %v382 = vpop.f32.mrb[0].mxu0
      %v383 = vpop.f32.mrb[0].mxu0
      %v384 = vadd.f32 0.0, %v383
      %v385 = vpop.f32.mrb[0].mxu0
      %386 = vmatprep.mubr.bf16.mxu0 0
      %387 = vmatmul.mubr.bf16.gmra.mrb[0].mxu0 %v293
      %v388 = vpop.f32.mrb[0].mxu0
      %v389 = vadd.f32 0.0, %v388
      %v390 = vpop.f32.mrb[0].mxu0
      %v391 = vpop.f32.mrb[0].mxu0
      %v392 = vadd.f32 0.0, %v391
      %v393 = vpop.f32.mrb[0].mxu0
      %394 = vmatprep.mubr.bf16.mxu0 0
      %395 = vmatmul.mubr.bf16.gmra.mrb[0].mxu0 %v296
      %v396 = vpop.f32.mrb[0].mxu0
      %v397 = vadd.f32 0.0, %v396
      %v398 = vpop.f32.mrb[0].mxu0
      %v399 = vpop.f32.mrb[0].mxu0
      %v400 = vadd.f32 0.0, %v399
      %v401 = vpop.f32.mrb[0].mxu0
      %402 = vmatprep.mubr.bf16.mxu0 0
      %403 = vmatmul.mubr.bf16.gmra.mrb[0].mxu0 %v299
      %v404 = vpop.f32.mrb[0].mxu0
      %v405 = vadd.f32 0.0, %v404
      %v406 = vpop.f32.mrb[0].mxu0
      %v407 = vpop.f32.mrb[0].mxu0
      %v408 = vadd.f32 0.0, %v407
      %v409 = vpop.f32.mrb[0].mxu0
      %410 = vmatprep.mubr.bf16.mxu0 0
      %411 = vmatmul.mubr.bf16.gmra.mrb[0].mxu0 %v302
      %v412 = vpop.f32.mrb[0].mxu0
      %v413 = vadd.f32 0.0, %v412
      %v414 = vpop.f32.mrb[0].mxu0
      %v415 = vpop.f32.mrb[0].mxu0
      %v416 = vadd.f32 0.0, %v415
      %v417 = vpop.f32.mrb[0].mxu0
      %418 = vmatprep.mubr.bf16.mxu0 0
      %419 = vmatmul.mubr.bf16.gmra.mrb[0].mxu0 %v305
      %v420 = vpop.f32.mrb[0].mxu0
      %v421 = vadd.f32 0.0, %v420
      %v422 = vpop.f32.mrb[0].mxu0
      %v423 = vpop.f32.mrb[0].mxu0
      %v424 = vadd.f32 0.0, %v423
      %v425 = vpop.f32.mrb[0].mxu0
      %426 = vmatprep.mubr.bf16.mxu0 0
      %427 = vmatmul.mubr.bf16.gmra.mrb[0].mxu0 %v308
      %v428 = vpop.f32.mrb[0].mxu0
      %v429 = vadd.f32 0.0, %v428
      %v430 = vpop.f32.mrb[0].mxu0
      %v431 = vpop.f32.mrb[0].mxu0
      %v432 = vadd.f32 0.0, %v431
      %v433 = vpop.f32.mrb[0].mxu0
      %434 = vmatprep.mubr.bf16.mxu0 0
      %435 = vmatmul.mubr.bf16.gmra.mrb[0].mxu0 %v311
      %v436 = vpop.f32.mrb[0].mxu0
      %v437 = vadd.f32 0.0, %v436
      %v438 = vpop.f32.mrb[0].mxu0
      %v439 = vpop.f32.mrb[0].mxu0
      %v440 = vadd.f32 0.0, %v439
      %v441 = vpop.f32.mrb[0].mxu0
      %442 = vmatprep.mubr.bf16.mxu0 0
      %443 = vmatmul.mubr.bf16.gmra.mrb[0].mxu0 %v314
      %v444 = vpop.f32.mrb[0].mxu0
      %v445 = vadd.f32 0.0, %v444
      %v446 = vpop.f32.mrb[0].mxu0
      %v447 = vpop.f32.mrb[0].mxu0
      %v448 = vadd.f32 0.0, %v447
      %v449 = vpop.f32.mrb[0].mxu0
      %450 = vmatprep.mubr.bf16.mxu0 0
      %451 = vmatmul.mubr.bf16.gmra.mrb[0].mxu0 %v317
      %v452 = vpop.f32.mrb[0].mxu0
      %v453 = vadd.f32 0.0, %v452
      %v454 = vpop.f32.mrb[0].mxu0
      %v455 = vpop.f32.mrb[0].mxu0
      %v456 = vadd.f32 0.0, %v455
      %v457 = vpop.f32.mrb[0].mxu0
      %458 = vmatprep.mubr.bf16.mxu0 0
      %459 = vmatmul.mubr.bf16.gmra.mrb[0].mxu0 %v320
      %v460 = vpop.f32.mrb[0].mxu0
      %v461 = vadd.f32 0.0, %v460
      %v462 = vpop.f32.mrb[0].mxu0
      %v463 = vpop.f32.mrb[0].mxu0
      %v464 = vadd.f32 0.0, %v463
      %v465 = vpop.f32.mrb[0].mxu0
      %466 = vmatprep.mubr.bf16.mxu0 0
      %467 = vmatmul.mubr.bf16.gmra.mrb[0].mxu0 %v323
      %v468 = vpop.f32.mrb[0].mxu0
      %v469 = vadd.f32 0.0, %v468
      %v470 = vpop.f32.mrb[0].mxu0
      %v471 = vpop.f32.mrb[0].mxu0
      %v472 = vadd.f32 0.0, %v471
      %v473 = vpop.f32.mrb[0].mxu0
      %474 = vmatprep.mubr.bf16.mxu0 0
      %475 = vmatmul.mubr.bf16.gmra.mrb[0].mxu0 %v326
      %v476 = vpop.f32.mrb[0].mxu0
      %v477 = vadd.f32 0.0, %v476
      %v478 = vpop.f32.mrb[0].mxu0
      %v479 = vpop.f32.mrb[0].mxu0
      %v480 = vadd.f32 0.0, %v479
      %v481 = vpop.f32.mrb[0].mxu0
      %482 = vmatprep.mubr.bf16.mxu0 0
      %483 = vmatmul.mubr.bf16.gmra.mrb[0].mxu0 %v329
      %v484 = vpop.f32.mrb[0].mxu0
      %v485 = vadd.f32 0.0, %v484
      %v486 = vpop.f32.mrb[0].mxu0
      %v487 = vpop.f32.mrb[0].mxu0
      %v488 = vadd.f32 0.0, %v487
      %v489 = vpop.f32.mrb[0].mxu0
      %490 = vmatprep.mubr.bf16.mxu0 0
      %491 = vmatmul.mubr.bf16.gmra.mrb[0].mxu0 %v332
      %v492 = vpop.f32.mrb[0].mxu0
      %v493 = vadd.f32 0.0, %v492
      %v494 = vpop.f32.mrb[0].mxu0
      %v495 = vpop.f32.mrb[0].mxu0
      %v496 = vadd.f32 0.0, %v495
      %v497 = vpop.f32.mrb[0].mxu0
      %498 = vdwg.mxu0
      %vm499 = vcmask 64512
      %500 = vst.msk [vmem:[#allocation2] sm:$0xff] %vm499, %v373
      %501 = vst.msk [vmem:[#allocation2 + $0x8] sm:$0xff] %vm499, %v376
      %502 = vst.msk [vmem:[#allocation2 + $0x10] sm:$0xff] %vm499, %v381
      %503 = vst.msk [vmem:[#allocation2 + $0x18] sm:$0xff] %vm499, %v384
      %504 = vst.msk [vmem:[#allocation2 + $0x20] sm:$0xff] %vm499, %v389
      %505 = vst.msk [vmem:[#allocation2 + $0x28] sm:$0xff] %vm499, %v392
      %506 = vst.msk [vmem:[#allocation2 + $0x30] sm:$0xff] %vm499, %v397
      %507 = vst.msk [vmem:[#allocation2 + $0x38] sm:$0xff] %vm499, %v400
      %508 = vst.msk [vmem:[#allocation2 + $0x40] sm:$0xff] %vm499, %v405
      %509 = vst.msk [vmem:[#allocation2 + $0x48] sm:$0xff] %vm499, %v408
      %510 = vst.msk [vmem:[#allocation2 + $0x50] sm:$0xff] %vm499, %v413
      %511 = vst.msk [vmem:[#allocation2 + $0x58] sm:$0xff] %vm499, %v416
      %512 = vst.msk [vmem:[#allocation2 + $0x60] sm:$0xff] %vm499, %v421
      %513 = vst.msk [vmem:[#allocation2 + $0x68] sm:$0xff] %vm499, %v424
      %514 = vst.msk [vmem:[#allocation2 + $0x70] sm:$0xff] %vm499, %v429
      %515 = vst.msk [vmem:[#allocation2 + $0x78] sm:$0xff] %vm499, %v432
      %516 = vst.msk [vmem:[#allocation2 + $0x80] sm:$0xff] %vm499, %v437
      %517 = vst.msk [vmem:[#allocation2 + $0x88] sm:$0xff] %vm499, %v440
      %518 = vst.msk [vmem:[#allocation2 + $0x90] sm:$0xff] %vm499, %v445
      %519 = vst.msk [vmem:[#allocation2 + $0x98] sm:$0xff] %vm499, %v448
      %520 = vst.msk [vmem:[#allocation2 + $0xa0] sm:$0xff] %vm499, %v453
      %521 = vst.msk [vmem:[#allocation2 + $0xa8] sm:$0xff] %vm499, %v456
      %522 = vst.msk [vmem:[#allocation2 + $0xb0] sm:$0xff] %vm499, %v461
      %523 = vst.msk [vmem:[#allocation2 + $0xb8] sm:$0xff] %vm499, %v464
      %524 = vst.msk [vmem:[#allocation2 + $0xc0] sm:$0xff] %vm499, %v469
      %525 = vst.msk [vmem:[#allocation2 + $0xc8] sm:$0xff] %vm499, %v472
      %526 = vst.msk [vmem:[#allocation2 + $0xd0] sm:$0xff] %vm499, %v477
      %527 = vst.msk [vmem:[#allocation2 + $0xd8] sm:$0xff] %vm499, %v480
      %528 = vst.msk [vmem:[#allocation2 + $0xe0] sm:$0xff] %vm499, %v485
      %529 = vst.msk [vmem:[#allocation2 + $0xe8] sm:$0xff] %vm499, %v488
      %530 = vst.msk [vmem:[#allocation2 + $0xf0] sm:$0xff] %vm499, %v493
      %531 = vst.msk [vmem:[#allocation2 + $0xf8] sm:$0xff] %vm499, %v496
      %v532 = vunpack.c.l.bf16 %v172
      %v533 = vunpack.c.l.bf16 %v173
      %v534 = vunpack.c.l.bf16 %v174
      %v535 = vunpack.c.l.bf16 %v175
      %v536 = vunpack.c.l.bf16 %v176
      %v537 = vunpack.c.l.bf16 %v177
      %v538 = vunpack.c.l.bf16 %v178
      %v539 = vunpack.c.l.bf16 %v179
      %v540 = vunpack.c.l.bf16 %v180
      %v541 = vunpack.c.l.bf16 %v181
      %v542 = vunpack.c.l.bf16 %v182
      %v543 = vunpack.c.l.bf16 %v183
      %v544 = vunpack.c.l.bf16 %v184
      %v545 = vunpack.c.l.bf16 %v185
      %v546 = vunpack.c.l.bf16 %v186
      %v547 = vunpack.c.l.bf16 %v187
      %v548 = vunpack.c.l.bf16 %v188
      %v549 = vunpack.c.l.bf16 %v189
      %v550 = vunpack.c.l.bf16 %v190
      %v551 = vunpack.c.l.bf16 %v191
      %v552 = vunpack.c.l.bf16 %v192
      %v553 = vunpack.c.l.bf16 %v193
      %v554 = vunpack.c.l.bf16 %v194
      %v555 = vunpack.c.l.bf16 %v195
      %v556 = vunpack.c.l.bf16 %v196
      %v557 = vunpack.c.l.bf16 %v197
      %v558 = vunpack.c.l.bf16 %v198
      %v559 = vunpack.c.l.bf16 %v199
      %v560 = vunpack.c.l.bf16 %v200
      %v561 = vunpack.c.l.bf16 %v201
      %v562 = vunpack.c.l.bf16 %v202
      %v563 = vunpack.c.l.bf16 %v203
      %vm564 = vcmask 25600
      %565 = vst.msk [vmem:[#allocation3] sm:$0x3] %vm564, -inf
      %566 = vst.msk [vmem:[#allocation3 + $0x18] sm:$0x3] %vm564, -inf
      %567 = vst.msk [vmem:[#allocation3 + $0x30] sm:$0x3] %vm564, -inf
      %568 = vst.msk [vmem:[#allocation3 + $0x48] sm:$0x3] %vm564, -inf
      %569 = vst.msk [vmem:[#allocation3 + $0x60] sm:$0x3] %vm564, -inf
      %570 = vst.msk [vmem:[#allocation3 + $0x78] sm:$0x3] %vm564, -inf
      %571 = vst.msk [vmem:[#allocation3 + $0x90] sm:$0x3] %vm564, -inf
      %572 = vst.msk [vmem:[#allocation3 + $0xa8] sm:$0x3] %vm564, -inf
      %573 = vst.msk [vmem:[#allocation3 + $0xc0] sm:$0x3] %vm564, -inf
      %574 = vst.msk [vmem:[#allocation3 + $0xd8] sm:$0x3] %vm564, -inf
      %575 = vst.msk [vmem:[#allocation3 + $0xf0] sm:$0x3] %vm564, -inf
      %576 = vst.msk [vmem:[#allocation3 + $0x108] sm:$0x3] %vm564, -inf
      %577 = vst.msk [vmem:[#allocation3 + $0x120] sm:$0x3] %vm564, -inf
      %578 = vst.msk [vmem:[#allocation3 + $0x138] sm:$0x3] %vm564, -inf
      %579 = vst.msk [vmem:[#allocation3 + $0x150] sm:$0x3] %vm564, -inf
      %580 = vst.msk [vmem:[#allocation3 + $0x168] sm:$0x3] %vm564, -inf
      %581 = vst.msk [vmem:[#allocation3 + $0x12] sm:$0x3] %vm564, -inf
      %582 = vst.msk [vmem:[#allocation3 + $0x2a] sm:$0x3] %vm564, -inf
      %583 = vst.msk [vmem:[#allocation3 + $0x42] sm:$0x3] %vm564, -inf
      %584 = vst.msk [vmem:[#allocation3 + $0x5a] sm:$0x3] %vm564, -inf
      %585 = vst.msk [vmem:[#allocation3 + $0x72] sm:$0x3] %vm564, -inf
      %586 = vst.msk [vmem:[#allocation3 + $0x8a] sm:$0x3] %vm564, -inf
      %587 = vst.msk [vmem:[#allocation3 + $0xa2] sm:$0x3] %vm564, -inf
      %588 = vst.msk [vmem:[#allocation3 + $0xba] sm:$0x3] %vm564, -inf
      %589 = vst.msk [vmem:[#allocation3 + $0xd2] sm:$0x3] %vm564, -inf
      %590 = vst.msk [vmem:[#allocation3 + $0xea] sm:$0x3] %vm564, -inf
      %591 = vst.msk [vmem:[#allocation3 + $0x102] sm:$0x3] %vm564, -inf
      %592 = vst.msk [vmem:[#allocation3 + $0x11a] sm:$0x3] %vm564, -inf
      %593 = vst.msk [vmem:[#allocation3 + $0x132] sm:$0x3] %vm564, -inf
      %594 = vst.msk [vmem:[#allocation3 + $0x14a] sm:$0x3] %vm564, -inf
      %595 = vst.msk [vmem:[#allocation3 + $0x162] sm:$0x3] %vm564, -inf
      %596 = vst.msk [vmem:[#allocation3 + $0x17a] sm:$0x3] %vm564, -inf
      %v597 = vmax.f32 %v536, %v532
      %v598 = vmax.f32 %v537, %v533
      %v599 = vmax.f32 %v538, %v534
      %v600 = vmax.f32 %v539, %v535
      %v601 = vmax.f32 %v540, %v536
      %v602 = vmax.f32 %v541, %v537
      %v603 = vmax.f32 %v542, %v538
      %v604 = vmax.f32 %v543, %v539
      %v605 = vmax.f32 %v544, %v540
      %v606 = vmax.f32 %v545, %v541
      %v607 = vmax.f32 %v546, %v542
      %v608 = vmax.f32 %v547, %v543
      %v609 = vmax.f32 %v548, %v544
      %v610 = vmax.f32 %v549, %v545
      %v611 = vmax.f32 %v550, %v546
      %v612 = vmax.f32 %v551, %v547
      %v613 = vmax.f32 %v552, %v548
      %v614 = vmax.f32 %v553, %v549
      %v615 = vmax.f32 %v554, %v550
      %v616 = vmax.f32 %v555, %v551
      %v617 = vmax.f32 %v556, %v552
      %v618 = vmax.f32 %v557, %v553
      %v619 = vmax.f32 %v558, %v554
      %v620 = vmax.f32 %v559, %v555
      %v621 = vmax.f32 %v560, %v556
      %v622 = vmax.f32 %v561, %v557
      %v623 = vmax.f32 %v562, %v558
      %v624 = vmax.f32 %v563, %v559
      %v625 = vmax.f32 %v532, %v534
      %v626 = vmax.f32 %v533, %v535
      %v627 = vmax.f32 %v534, %v597
      %v628 = vmax.f32 %v535, %v598
      %v629 = vmax.f32 %v536, %v599
      %v630 = vmax.f32 %v537, %v600
      %v631 = vmax.f32 %v538, %v601
      %v632 = vmax.f32 %v539, %v602
      %v633 = vmax.f32 %v540, %v603
      %v634 = vmax.f32 %v541, %v604
      %v635 = vmax.f32 %v542, %v605
      %v636 = vmax.f32 %v543, %v606
      %v637 = vmax.f32 %v544, %v607
      %v638 = vmax.f32 %v545, %v608
      %v639 = vmax.f32 %v546, %v609
      %v640 = vmax.f32 %v547, %v610
      %v641 = vmax.f32 %v548, %v611
      %v642 = vmax.f32 %v549, %v612
      %v643 = vmax.f32 %v550, %v613
      %v644 = vmax.f32 %v551, %v614
      %v645 = vmax.f32 %v552, %v615
      %v646 = vmax.f32 %v553, %v616
      %v647 = vmax.f32 %v554, %v617
      %v648 = vmax.f32 %v555, %v618
      %v649 = vmax.f32 %v556, %v619
      %v650 = vmax.f32 %v557, %v620
      %v651 = vmax.f32 %v558, %v621
      %v652 = vmax.f32 %v559, %v622
      %v653 = vmax.f32 %v560, %v623
      %v654 = vmax.f32 %v561, %v624
      %v655 = vmax.f32 %v562, %v560
      %v656 = vmax.f32 %v563, %v561
      %v657 = vmax.f32 %v540, %v532
      %v658 = vmax.f32 %v541, %v533
      %v659 = vmax.f32 %v542, %v534
      %v660 = vmax.f32 %v543, %v535
      %v661 = vmax.f32 %v544, %v536
      %v662 = vmax.f32 %v545, %v537
      %v663 = vmax.f32 %v546, %v538
      %v664 = vmax.f32 %v547, %v539
      %v665 = vmax.f32 %v548, %v540
      %v666 = vmax.f32 %v549, %v541
      %v667 = vmax.f32 %v550, %v542
      %v668 = vmax.f32 %v551, %v543
      %v669 = vmax.f32 %v552, %v544
      %v670 = vmax.f32 %v553, %v545
      %v671 = vmax.f32 %v554, %v546
      %v672 = vmax.f32 %v555, %v547
      %v673 = vmax.f32 %v556, %v548
      %v674 = vmax.f32 %v557, %v549
      %v675 = vmax.f32 %v558, %v550
      %v676 = vmax.f32 %v559, %v551
      %v677 = vmax.f32 %v560, %v552
      %v678 = vmax.f32 %v561, %v553
      %v679 = vmax.f32 %v562, %v554
      %v680 = vmax.f32 %v563, %v555
      %v681 = vmax.f32 %v625, %v536
      %v682 = vmax.f32 %v626, %v537
      %v683 = vmax.f32 %v627, %v538
      %v684 = vmax.f32 %v628, %v539
      %v685 = vmax.f32 %v629, %v657
      %v686 = vmax.f32 %v630, %v658
      %v687 = vmax.f32 %v631, %v659
      %v688 = vmax.f32 %v632, %v660
      %v689 = vmax.f32 %v633, %v661
      %v690 = vmax.f32 %v634, %v662
      %v691 = vmax.f32 %v635, %v663
      %v692 = vmax.f32 %v636, %v664
      %v693 = vmax.f32 %v637, %v665
      %v694 = vmax.f32 %v638, %v666
      %v695 = vmax.f32 %v639, %v667
      %v696 = vmax.f32 %v640, %v668
      %v697 = vmax.f32 %v641, %v669
      %v698 = vmax.f32 %v642, %v670
      %v699 = vmax.f32 %v643, %v671
      %v700 = vmax.f32 %v644, %v672
      %v701 = vmax.f32 %v645, %v673
      %v702 = vmax.f32 %v646, %v674
      %v703 = vmax.f32 %v647, %v675
      %v704 = vmax.f32 %v648, %v676
      %v705 = vmax.f32 %v649, %v677
      %v706 = vmax.f32 %v650, %v678
      %v707 = vmax.f32 %v651, %v679
      %v708 = vmax.f32 %v652, %v680
      %v709 = vmax.f32 %v653, %v556
      %v710 = vmax.f32 %v654, %v557
      %v711 = vmax.f32 %v655, %v558
      %v712 = vmax.f32 %v656, %v559
      %713 = vst.msk [vmem:[#allocation3 + $0x2] sm:$0xff] %vm285, %v681
      %714 = vst.msk [vmem:[#allocation3 + $0xa] sm:$0xff] %vm285, %v682
      %715 = vst.msk [vmem:[#allocation3 + $0x1a] sm:$0xff] %vm285, %v683
      %716 = vst.msk [vmem:[#allocation3 + $0x22] sm:$0xff] %vm285, %v684
      %717 = vst.msk [vmem:[#allocation3 + $0x32] sm:$0xff] %vm285, %v685
      %718 = vst.msk [vmem:[#allocation3 + $0x3a] sm:$0xff] %vm285, %v686
      %719 = vst.msk [vmem:[#allocation3 + $0x4a] sm:$0xff] %vm285, %v687
      %720 = vst.msk [vmem:[#allocation3 + $0x52] sm:$0xff] %vm285, %v688
      %721 = vst.msk [vmem:[#allocation3 + $0x62] sm:$0xff] %vm285, %v689
      %722 = vst.msk [vmem:[#allocation3 + $0x6a] sm:$0xff] %vm285, %v690
      %723 = vst.msk [vmem:[#allocation3 + $0x7a] sm:$0xff] %vm285, %v691
      %724 = vst.msk [vmem:[#allocation3 + $0x82] sm:$0xff] %vm285, %v692
      %725 = vst.msk [vmem:[#allocation3 + $0x92] sm:$0xff] %vm285, %v693
      %726 = vst.msk [vmem:[#allocation3 + $0x9a] sm:$0xff] %vm285, %v694
      %727 = vst.msk [vmem:[#allocation3 + $0xaa] sm:$0xff] %vm285, %v695
      %728 = vst.msk [vmem:[#allocation3 + $0xb2] sm:$0xff] %vm285, %v696
      %729 = vst.msk [vmem:[#allocation3 + $0xc2] sm:$0xff] %vm285, %v697
      %730 = vst.msk [vmem:[#allocation3 + $0xca] sm:$0xff] %vm285, %v698
      %731 = vst.msk [vmem:[#allocation3 + $0xda] sm:$0xff] %vm285, %v699
      %732 = vst.msk [vmem:[#allocation3 + $0xe2] sm:$0xff] %vm285, %v700
      %733 = vst.msk [vmem:[#allocation3 + $0xf2] sm:$0xff] %vm285, %v701
      %734 = vst.msk [vmem:[#allocation3 + $0xfa] sm:$0xff] %vm285, %v702
      %735 = vst.msk [vmem:[#allocation3 + $0x10a] sm:$0xff] %vm285, %v703
      %736 = vst.msk [vmem:[#allocation3 + $0x112] sm:$0xff] %vm285, %v704
      %737 = vst.msk [vmem:[#allocation3 + $0x122] sm:$0xff] %vm285, %v705
      %738 = vst.msk [vmem:[#allocation3 + $0x12a] sm:$0xff] %vm285, %v706
      %739 = vst.msk [vmem:[#allocation3 + $0x13a] sm:$0xff] %vm285, %v707
      %740 = vst.msk [vmem:[#allocation3 + $0x142] sm:$0xff] %vm285, %v708
      %741 = vst.msk [vmem:[#allocation3 + $0x152] sm:$0xff] %vm285, %v709
      %742 = vst.msk [vmem:[#allocation3 + $0x15a] sm:$0xff] %vm285, %v710
      %743 = vst.msk [vmem:[#allocation3 + $0x16a] sm:$0xff] %vm285, %v711
      %744 = vst.msk [vmem:[#allocation3 + $0x172] sm:$0xff] %vm285, %v712
      %v745 = vld [vmem:[#allocation3] sm:$0xff]
      %v746 = vld [vmem:[#allocation3 + $0x8] sm:$0xff]
      %v747 = vld [vmem:[#allocation3 + $0x18] sm:$0xff]
      %v748 = vld [vmem:[#allocation3 + $0x20] sm:$0xff]
      %v749 = vld [vmem:[#allocation3 + $0x30] sm:$0xff]
      %v750 = vld [vmem:[#allocation3 + $0x38] sm:$0xff]
      %v751 = vld [vmem:[#allocation3 + $0x48] sm:$0xff]
      %v752 = vld [vmem:[#allocation3 + $0x50] sm:$0xff]
      %v753 = vld [vmem:[#allocation3 + $0x60] sm:$0xff]
      %v754 = vld [vmem:[#allocation3 + $0x68] sm:$0xff]
      %v755 = vld [vmem:[#allocation3 + $0x78] sm:$0xff]
      %v756 = vld [vmem:[#allocation3 + $0x80] sm:$0xff]
      %v757 = vld [vmem:[#allocation3 + $0x90] sm:$0xff]
      %v758 = vld [vmem:[#allocation3 + $0x98] sm:$0xff]
      %v759 = vld [vmem:[#allocation3 + $0xa8] sm:$0xff]
      %v760 = vld [vmem:[#allocation3 + $0xb0] sm:$0xff]
      %v761 = vld [vmem:[#allocation3 + $0xc0] sm:$0xff]
      %v762 = vld [vmem:[#allocation3 + $0xc8] sm:$0xff]
      %v763 = vld [vmem:[#allocation3 + $0xd8] sm:$0xff]
      %v764 = vld [vmem:[#allocation3 + $0xe0] sm:$0xff]
      %v765 = vld [vmem:[#allocation3 + $0xf0] sm:$0xff]
      %v766 = vld [vmem:[#allocation3 + $0xf8] sm:$0xff]
      %v767 = vld [vmem:[#allocation3 + $0x108] sm:$0xff]
      %v768 = vld [vmem:[#allocation3 + $0x110] sm:$0xff]
      %v769 = vld [vmem:[#allocation3 + $0x120] sm:$0xff]
      %v770 = vld [vmem:[#allocation3 + $0x128] sm:$0xff]
      %v771 = vld [vmem:[#allocation3 + $0x138] sm:$0xff]
      %v772 = vld [vmem:[#allocation3 + $0x140] sm:$0xff]
      %v773 = vld [vmem:[#allocation3 + $0x150] sm:$0xff]
      %v774 = vld [vmem:[#allocation3 + $0x158] sm:$0xff]
      %v775 = vld [vmem:[#allocation3 + $0x168] sm:$0xff]
      %v776 = vld [vmem:[#allocation3 + $0x170] sm:$0xff]
      %v777 = vld [vmem:[#allocation3 + $0x1] sm:$0xff]
      %v778 = vld [vmem:[#allocation3 + $0x9] sm:$0xff]
      %v779 = vld [vmem:[#allocation3 + $0x19] sm:$0xff]
      %v780 = vld [vmem:[#allocation3 + $0x21] sm:$0xff]
      %v781 = vld [vmem:[#allocation3 + $0x31] sm:$0xff]
      %v782 = vld [vmem:[#allocation3 + $0x39] sm:$0xff]
      %v783 = vld [vmem:[#allocation3 + $0x49] sm:$0xff]
      %v784 = vld [vmem:[#allocation3 + $0x51] sm:$0xff]
      %v785 = vld [vmem:[#allocation3 + $0x61] sm:$0xff]
      %v786 = vld [vmem:[#allocation3 + $0x69] sm:$0xff]
      %v787 = vld [vmem:[#allocation3 + $0x79] sm:$0xff]
      %v788 = vld [vmem:[#allocation3 + $0x81] sm:$0xff]
      %v789 = vld [vmem:[#allocation3 + $0x91] sm:$0xff]
      %v790 = vld [vmem:[#allocation3 + $0x99] sm:$0xff]
      %v791 = vld [vmem:[#allocation3 + $0xa9] sm:$0xff]
      %v792 = vld [vmem:[#allocation3 + $0xb1] sm:$0xff]
      %v793 = vld [vmem:[#allocation3 + $0xc1] sm:$0xff]
      %v794 = vld [vmem:[#allocation3 + $0xc9] sm:$0xff]
      %v795 = vld [vmem:[#allocation3 + $0xd9] sm:$0xff]
      %v796 = vld [vmem:[#allocation3 + $0xe1] sm:$0xff]
      %v797 = vld [vmem:[#allocation3 + $0xf1] sm:$0xff]
      %v798 = vld [vmem:[#allocation3 + $0xf9] sm:$0xff]
      %v799 = vld [vmem:[#allocation3 + $0x109] sm:$0xff]
      %v800 = vld [vmem:[#allocation3 + $0x111] sm:$0xff]
      %v801 = vld [vmem:[#allocation3 + $0x121] sm:$0xff]
      %v802 = vld [vmem:[#allocation3 + $0x129] sm:$0xff]
      %v803 = vld [vmem:[#allocation3 + $0x139] sm:$0xff]
      %v804 = vld [vmem:[#allocation3 + $0x141] sm:$0xff]
      %v805 = vld [vmem:[#allocation3 + $0x151] sm:$0xff]
      %v806 = vld [vmem:[#allocation3 + $0x159] sm:$0xff]
      %v807 = vld [vmem:[#allocation3 + $0x169] sm:$0xff]
      %v808 = vld [vmem:[#allocation3 + $0x171] sm:$0xff]
      %v809 = vmax.f32 %v745, %v777
      %v810 = vmax.f32 %v746, %v778
      %v811 = vmax.f32 %v747, %v779
      %v812 = vmax.f32 %v748, %v780
      %v813 = vmax.f32 %v749, %v781
      %v814 = vmax.f32 %v750, %v782
      %v815 = vmax.f32 %v751, %v783
      %v816 = vmax.f32 %v752, %v784
      %v817 = vmax.f32 %v753, %v785
      %v818 = vmax.f32 %v754, %v786
      %v819 = vmax.f32 %v755, %v787
      %v820 = vmax.f32 %v756, %v788
      %v821 = vmax.f32 %v757, %v789
      %v822 = vmax.f32 %v758, %v790
      %v823 = vmax.f32 %v759, %v791
      %v824 = vmax.f32 %v760, %v792
      %v825 = vmax.f32 %v761, %v793
      %v826 = vmax.f32 %v762, %v794
      %v827 = vmax.f32 %v763, %v795
      %v828 = vmax.f32 %v764, %v796
      %v829 = vmax.f32 %v765, %v797
      %v830 = vmax.f32 %v766, %v798
      %v831 = vmax.f32 %v767, %v799
      %v832 = vmax.f32 %v768, %v800
      %v833 = vmax.f32 %v769, %v801
      %v834 = vmax.f32 %v770, %v802
      %v835 = vmax.f32 %v771, %v803
      %v836 = vmax.f32 %v772, %v804
      %v837 = vmax.f32 %v773, %v805
      %v838 = vmax.f32 %v774, %v806
      %v839 = vmax.f32 %v775, %v807
      %v840 = vmax.f32 %v776, %v808
      %v841 = vld [vmem:[#allocation3 + $0x2] sm:$0xff]
      %v842 = vld [vmem:[#allocation3 + $0xa] sm:$0xff]
      %v843 = vld [vmem:[#allocation3 + $0x1a] sm:$0xff]
      %v844 = vld [vmem:[#allocation3 + $0x22] sm:$0xff]
      %v845 = vld [vmem:[#allocation3 + $0x32] sm:$0xff]
      %v846 = vld [vmem:[#allocation3 + $0x3a] sm:$0xff]
      %v847 = vld [vmem:[#allocation3 + $0x4a] sm:$0xff]
      %v848 = vld [vmem:[#allocation3 + $0x52] sm:$0xff]
      %v849 = vld [vmem:[#allocation3 + $0x62] sm:$0xff]
      %v850 = vld [vmem:[#allocation3 + $0x6a] sm:$0xff]
      %v851 = vld [vmem:[#allocation3 + $0x7a] sm:$0xff]
      %v852 = vld [vmem:[#allocation3 + $0x82] sm:$0xff]
      %v853 = vld [vmem:[#allocation3 + $0x92] sm:$0xff]
      %v854 = vld [vmem:[#allocation3 + $0x9a] sm:$0xff]
      %v855 = vld [vmem:[#allocation3 + $0xaa] sm:$0xff]
      %v856 = vld [vmem:[#allocation3 + $0xb2] sm:$0xff]
      %v857 = vld [vmem:[#allocation3 + $0xc2] sm:$0xff]
      %v858 = vld [vmem:[#allocation3 + $0xca] sm:$0xff]
      %v859 = vld [vmem:[#allocation3 + $0xda] sm:$0xff]
      %v860 = vld [vmem:[#allocation3 + $0xe2] sm:$0xff]
      %v861 = vld [vmem:[#allocation3 + $0xf2] sm:$0xff]
      %v862 = vld [vmem:[#allocation3 + $0xfa] sm:$0xff]
      %v863 = vld [vmem:[#allocation3 + $0x10a] sm:$0xff]
      %v864 = vld [vmem:[#allocation3 + $0x112] sm:$0xff]
      %v865 = vld [vmem:[#allocation3 + $0x122] sm:$0xff]
      %v866 = vld [vmem:[#allocation3 + $0x12a] sm:$0xff]
      %v867 = vld [vmem:[#allocation3 + $0x13a] sm:$0xff]
      %v868 = vld [vmem:[#allocation3 + $0x142] sm:$0xff]
      %v869 = vld [vmem:[#allocation3 + $0x152] sm:$0xff]
      %v870 = vld [vmem:[#allocation3 + $0x15a] sm:$0xff]
      %v871 = vld [vmem:[#allocation3 + $0x16a] sm:$0xff]
      %v872 = vld [vmem:[#allocation3 + $0x172] sm:$0xff]
      %v873 = vmax.f32 %v809, %v841
      %v874 = vmax.f32 %v810, %v842
      %v875 = vmax.f32 %v811, %v843
      %v876 = vmax.f32 %v812, %v844
      %v877 = vmax.f32 %v813, %v845
      %v878 = vmax.f32 %v814, %v846
      %v879 = vmax.f32 %v815, %v847
      %v880 = vmax.f32 %v816, %v848
      %v881 = vmax.f32 %v817, %v849
      %v882 = vmax.f32 %v818, %v850
      %v883 = vmax.f32 %v819, %v851
      %v884 = vmax.f32 %v820, %v852
      %v885 = vmax.f32 %v821, %v853
      %v886 = vmax.f32 %v822, %v854
      %v887 = vmax.f32 %v823, %v855
      %v888 = vmax.f32 %v824, %v856
      %v889 = vmax.f32 %v825, %v857
      %v890 = vmax.f32 %v826, %v858
      %v891 = vmax.f32 %v827, %v859
      %v892 = vmax.f32 %v828, %v860
      %v893 = vmax.f32 %v829, %v861
      %v894 = vmax.f32 %v830, %v862
      %v895 = vmax.f32 %v831, %v863
      %v896 = vmax.f32 %v832, %v864
      %v897 = vmax.f32 %v833, %v865
      %v898 = vmax.f32 %v834, %v866
      %v899 = vmax.f32 %v835, %v867
      %v900 = vmax.f32 %v836, %v868
      %v901 = vmax.f32 %v837, %v869
      %v902 = vmax.f32 %v838, %v870
      %v903 = vmax.f32 %v839, %v871
      %v904 = vmax.f32 %v840, %v872
      %v905 = vld [vmem:[#allocation3 + $0x3] sm:$0xff]
      %v906 = vld [vmem:[#allocation3 + $0xb] sm:$0xff]
      %v907 = vld [vmem:[#allocation3 + $0x1b] sm:$0xff]
      %v908 = vld [vmem:[#allocation3 + $0x23] sm:$0xff]
      %v909 = vld [vmem:[#allocation3 + $0x33] sm:$0xff]
      %v910 = vld [vmem:[#allocation3 + $0x3b] sm:$0xff]
      %v911 = vld [vmem:[#allocation3 + $0x4b] sm:$0xff]
      %v912 = vld [vmem:[#allocation3 + $0x53] sm:$0xff]
      %v913 = vld [vmem:[#allocation3 + $0x63] sm:$0xff]
      %v914 = vld [vmem:[#allocation3 + $0x6b] sm:$0xff]
      %v915 = vld [vmem:[#allocation3 + $0x7b] sm:$0xff]
      %v916 = vld [vmem:[#allocation3 + $0x83] sm:$0xff]
      %v917 = vld [vmem:[#allocation3 + $0x93] sm:$0xff]
      %v918 = vld [vmem:[#allocation3 + $0x9b] sm:$0xff]
      %v919 = vld [vmem:[#allocation3 + $0xab] sm:$0xff]
      %v920 = vld [vmem:[#allocation3 + $0xb3] sm:$0xff]
      %v921 = vld [vmem:[#allocation3 + $0xc3] sm:$0xff]
      %v922 = vld [vmem:[#allocation3 + $0xcb] sm:$0xff]
      %v923 = vld [vmem:[#allocation3 + $0xdb] sm:$0xff]
      %v924 = vld [vmem:[#allocation3 + $0xe3] sm:$0xff]
      %v925 = vld [vmem:[#allocation3 + $0xf3] sm:$0xff]
      %v926 = vld [vmem:[#allocation3 + $0xfb] sm:$0xff]
      %v927 = vld [vmem:[#allocation3 + $0x10b] sm:$0xff]
      %v928 = vld [vmem:[#allocation3 + $0x113] sm:$0xff]
      %v929 = vld [vmem:[#allocation3 + $0x123] sm:$0xff]
      %v930 = vld [vmem:[#allocation3 + $0x12b] sm:$0xff]
      %v931 = vld [vmem:[#allocation3 + $0x13b] sm:$0xff]
      %v932 = vld [vmem:[#allocation3 + $0x143] sm:$0xff]
      %v933 = vld [vmem:[#allocation3 + $0x153] sm:$0xff]
      %v934 = vld [vmem:[#allocation3 + $0x15b] sm:$0xff]
      %v935 = vld [vmem:[#allocation3 + $0x16b] sm:$0xff]
      %v936 = vld [vmem:[#allocation3 + $0x173] sm:$0xff]
      %v937 = vmax.f32 %v873, %v905
      %v938 = vmax.f32 %v874, %v906
      %v939 = vmax.f32 %v875, %v907
      %v940 = vmax.f32 %v876, %v908
      %v941 = vmax.f32 %v877, %v909
      %v942 = vmax.f32 %v878, %v910
      %v943 = vmax.f32 %v879, %v911
      %v944 = vmax.f32 %v880, %v912
      %v945 = vmax.f32 %v881, %v913
      %v946 = vmax.f32 %v882, %v914
      %v947 = vmax.f32 %v883, %v915
      %v948 = vmax.f32 %v884, %v916
      %v949 = vmax.f32 %v885, %v917
      %v950 = vmax.f32 %v886, %v918
      %v951 = vmax.f32 %v887, %v919
      %v952 = vmax.f32 %v888, %v920
      %v953 = vmax.f32 %v889, %v921
      %v954 = vmax.f32 %v890, %v922
      %v955 = vmax.f32 %v891, %v923
      %v956 = vmax.f32 %v892, %v924
      %v957 = vmax.f32 %v893, %v925
      %v958 = vmax.f32 %v894, %v926
      %v959 = vmax.f32 %v895, %v927
      %v960 = vmax.f32 %v896, %v928
      %v961 = vmax.f32 %v897, %v929
      %v962 = vmax.f32 %v898, %v930
      %v963 = vmax.f32 %v899, %v931
      %v964 = vmax.f32 %v900, %v932
      %v965 = vmax.f32 %v901, %v933
      %v966 = vmax.f32 %v902, %v934
      %v967 = vmax.f32 %v903, %v935
      %v968 = vmax.f32 %v904, %v936
      %v969 = vld [vmem:[#allocation3 + $0x4] sm:$0xff]
      %v970 = vld [vmem:[#allocation3 + $0xc] sm:$0xff]
      %v971 = vld [vmem:[#allocation3 + $0x1c] sm:$0xff]
      %v972 = vld [vmem:[#allocation3 + $0x24] sm:$0xff]
      %v973 = vld [vmem:[#allocation3 + $0x34] sm:$0xff]
      %v974 = vld [vmem:[#allocation3 + $0x3c] sm:$0xff]
      %v975 = vld [vmem:[#allocation3 + $0x4c] sm:$0xff]
      %v976 = vld [vmem:[#allocation3 + $0x54] sm:$0xff]
      %v977 = vld [vmem:[#allocation3 + $0x64] sm:$0xff]
      %v978 = vld [vmem:[#allocation3 + $0x6c] sm:$0xff]
      %v979 = vld [vmem:[#allocation3 + $0x7c] sm:$0xff]
      %v980 = vld [vmem:[#allocation3 + $0x84] sm:$0xff]
      %v981 = vld [vmem:[#allocation3 + $0x94] sm:$0xff]
      %v982 = vld [vmem:[#allocation3 + $0x9c] sm:$0xff]
      %v983 = vld [vmem:[#allocation3 + $0xac] sm:$0xff]
      %v984 = vld [vmem:[#allocation3 + $0xb4] sm:$0xff]
      %v985 = vld [vmem:[#allocation3 + $0xc4] sm:$0xff]
      %v986 = vld [vmem:[#allocation3 + $0xcc] sm:$0xff]
      %v987 = vld [vmem:[#allocation3 + $0xdc] sm:$0xff]
      %v988 = vld [vmem:[#allocation3 + $0xe4] sm:$0xff]
      %v989 = vld [vmem:[#allocation3 + $0xf4] sm:$0xff]
      %v990 = vld [vmem:[#allocation3 + $0xfc] sm:$0xff]
      %v991 = vld [vmem:[#allocation3 + $0x10c] sm:$0xff]
      %v992 = vld [vmem:[#allocation3 + $0x114] sm:$0xff]
      %v993 = vld [vmem:[#allocation3 + $0x124] sm:$0xff]
      %v994 = vld [vmem:[#allocation3 + $0x12c] sm:$0xff]
      %v995 = vld [vmem:[#allocation3 + $0x13c] sm:$0xff]
      %v996 = vld [vmem:[#allocation3 + $0x144] sm:$0xff]
      %v997 = vld [vmem:[#allocation3 + $0x154] sm:$0xff]
      %v998 = vld [vmem:[#allocation3 + $0x15c] sm:$0xff]
      %v999 = vld [vmem:[#allocation3 + $0x16c] sm:$0xff]
      %v1000 = vld [vmem:[#allocation3 + $0x174] sm:$0xff]
      %v1001 = vmax.f32 %v937, %v969
      %v1002 = vmax.f32 %v938, %v970
      %v1003 = vmax.f32 %v939, %v971
      %v1004 = vmax.f32 %v940, %v972
      %v1005 = vmax.f32 %v941, %v973
      %v1006 = vmax.f32 %v942, %v974
      %v1007 = vmax.f32 %v943, %v975
      %v1008 = vmax.f32 %v944, %v976
      %v1009 = vmax.f32 %v945, %v977
      %v1010 = vmax.f32 %v946, %v978
      %v1011 = vmax.f32 %v947, %v979
      %v1012 = vmax.f32 %v948, %v980
      %v1013 = vmax.f32 %v949, %v981
      %v1014 = vmax.f32 %v950, %v982
      %v1015 = vmax.f32 %v951, %v983
      %v1016 = vmax.f32 %v952, %v984
      %v1017 = vmax.f32 %v953, %v985
      %v1018 = vmax.f32 %v954, %v986
      %v1019 = vmax.f32 %v955, %v987
      %v1020 = vmax.f32 %v956, %v988
      %v1021 = vmax.f32 %v957, %v989
      %v1022 = vmax.f32 %v958, %v990
      %v1023 = vmax.f32 %v959, %v991
      %v1024 = vmax.f32 %v960, %v992
      %v1025 = vmax.f32 %v961, %v993
      %v1026 = vmax.f32 %v962, %v994
      %v1027 = vmax.f32 %v963, %v995
      %v1028 = vmax.f32 %v964, %v996
      %v1029 = vmax.f32 %v965, %v997
      %v1030 = vmax.f32 %v966, %v998
      %v1031 = vmax.f32 %v967, %v999
      %v1032 = vmax.f32 %v968, %v1000
      %v1033 = vld [vmem:[#allocation2] sm:$0xff]
      %v1034 = vld [vmem:[#allocation2 + $0x8] sm:$0xff]
      %v1035 = vld [vmem:[#allocation2 + $0x10] sm:$0xff]
      %v1036 = vld [vmem:[#allocation2 + $0x18] sm:$0xff]
      %v1037 = vld [vmem:[#allocation2 + $0x20] sm:$0xff]
      %v1038 = vld [vmem:[#allocation2 + $0x28] sm:$0xff]
      %v1039 = vld [vmem:[#allocation2 + $0x30] sm:$0xff]
      %v1040 = vld [vmem:[#allocation2 + $0x38] sm:$0xff]
      %v1041 = vld [vmem:[#allocation2 + $0x40] sm:$0xff]
      %v1042 = vld [vmem:[#allocation2 + $0x48] sm:$0xff]
      %v1043 = vld [vmem:[#allocation2 + $0x50] sm:$0xff]
      %v1044 = vld [vmem:[#allocation2 + $0x58] sm:$0xff]
      %v1045 = vld [vmem:[#allocation2 + $0x60] sm:$0xff]
      %v1046 = vld [vmem:[#allocation2 + $0x68] sm:$0xff]
      %v1047 = vld [vmem:[#allocation2 + $0x70] sm:$0xff]
      %v1048 = vld [vmem:[#allocation2 + $0x78] sm:$0xff]
      %v1049 = vld [vmem:[#allocation2 + $0x80] sm:$0xff]
      %v1050 = vld [vmem:[#allocation2 + $0x88] sm:$0xff]
      %v1051 = vld [vmem:[#allocation2 + $0x90] sm:$0xff]
      %v1052 = vld [vmem:[#allocation2 + $0x98] sm:$0xff]
      %v1053 = vld [vmem:[#allocation2 + $0xa0] sm:$0xff]
      %v1054 = vld [vmem:[#allocation2 + $0xa8] sm:$0xff]
      %v1055 = vld [vmem:[#allocation2 + $0xb0] sm:$0xff]
      %v1056 = vld [vmem:[#allocation2 + $0xb8] sm:$0xff]
      %v1057 = vld [vmem:[#allocation2 + $0xc0] sm:$0xff]
      %v1058 = vld [vmem:[#allocation2 + $0xc8] sm:$0xff]
      %v1059 = vld [vmem:[#allocation2 + $0xd0] sm:$0xff]
      %v1060 = vld [vmem:[#allocation2 + $0xd8] sm:$0xff]
      %v1061 = vld [vmem:[#allocation2 + $0xe0] sm:$0xff]
      %v1062 = vld [vmem:[#allocation2 + $0xe8] sm:$0xff]
      %v1063 = vld [vmem:[#allocation2 + $0xf0] sm:$0xff]
      %v1064 = vld [vmem:[#allocation2 + $0xf8] sm:$0xff]
      %v1065 = vpack.c.bf16 %v1002, %v1001
      %v1066 = vpack.c.bf16 %v1004, %v1003
      %v1067 = vpack.c.bf16 %v1006, %v1005
      %v1068 = vpack.c.bf16 %v1008, %v1007
      %v1069 = vpack.c.bf16 %v1010, %v1009
      %v1070 = vpack.c.bf16 %v1012, %v1011
      %v1071 = vpack.c.bf16 %v1014, %v1013
      %v1072 = vpack.c.bf16 %v1016, %v1015
      %v1073 = vpack.c.bf16 %v1018, %v1017
      %v1074 = vpack.c.bf16 %v1020, %v1019
      %v1075 = vpack.c.bf16 %v1022, %v1021
      %v1076 = vpack.c.bf16 %v1024, %v1023
      %v1077 = vpack.c.bf16 %v1026, %v1025
      %v1078 = vpack.c.bf16 %v1028, %v1027
      %v1079 = vpack.c.bf16 %v1030, %v1029
      %v1080 = vpack.c.bf16 %v1032, %v1031
      %s1081 = scalar_lea.vmem %s1, 2
      %v1082 = vld [vmem:[%s1081] sm:$0x3]
      %v1084 = vsel %vm285, %v1065, 0
      %v1087 = vsel %vm285, %v1066, 0
      %v1090 = vsel %vm285, %v1067, 0
      %v1093 = vsel %vm285, %v1068, 0
      %v1096 = vsel %vm285, %v1069, 0
      %v1099 = vsel %vm285, %v1070, 0
      %v1102 = vsel %vm285, %v1071, 0
      %v1105 = vsel %vm285, %v1072, 0
      %v1108 = vsel %vm285, %v1073, 0
      %v1111 = vsel %vm285, %v1074, 0
      %v1114 = vsel %vm285, %v1075, 0
      %v1117 = vsel %vm285, %v1076, 0
      %v1120 = vsel %vm285, %v1077, 0
      %v1123 = vsel %vm285, %v1078, 0
      %v1126 = vsel %vm285, %v1079, 0
      %v1129 = vsel %vm285, %v1080, 0
      %v1132 = vsel %vm334, %v1082, 0
      %1134 = vmatprep.subr.bf16.mxu0 0
      %1135 = vmatpush1.bf16.msra.mxu0 %v1132
      %1136 = vmatprep.subr.bf16.mxu0 0
      %1137 = vmatpush1.bf16.msra.mxu0 0
      %1138 = vmatprep.subr.bf16.mxu0 0
      %1139 = vmatpush1.bf16.msra.mxu0 0
      %1140 = vmatprep.subr.bf16.mxu0 0
      %1141 = vmatpush1.bf16.msra.mxu0 0
      %1142 = vmatprep.subr.bf16.mxu0 0
      %1143 = vmatpush1.bf16.msra.mxu0 0
      %1144 = vmatprep.subr.bf16.mxu0 0
      %1145 = vmatpush1.bf16.msra.mxu0 0
      %1146 = vmatprep.subr.bf16.mxu0 0
      %1147 = vmatpush1.bf16.msra.mxu0 0
      %1148 = vmatprep.subr.bf16.mxu0 0
      %1149 = vmatpush1.bf16.msra.mxu0 0
      %1150 = vmatprep.subr.bf16.mxu0 0
      %1151 = vmatpush1.bf16.msra.mxu0 0
      %1152 = vmatprep.subr.bf16.mxu0 0
      %1153 = vmatpush1.bf16.msra.mxu0 0
      %1154 = vmatprep.subr.bf16.mxu0 0
      %1155 = vmatpush1.bf16.msra.mxu0 0
      %1156 = vmatprep.subr.bf16.mxu0 0
      %1157 = vmatpush1.bf16.msra.mxu0 0
      %1158 = vmatprep.subr.bf16.mxu0 0
      %1159 = vmatpush1.bf16.msra.mxu0 0
      %1160 = vmatprep.subr.bf16.mxu0 0
      %1161 = vmatpush1.bf16.msra.mxu0 0
      %1162 = vmatprep.subr.bf16.mxu0 0
      %1163 = vmatpush1.bf16.msra.mxu0 0
      %1164 = vmatprep.subr.bf16.mxu0 0
      %1165 = vmatpush1.bf16.msra.mxu0 0
      %1166 = vmatprep.mubr.bf16.mxu0 0
      %1167 = vmatmul.mubr.bf16.gmra.mrb[0].mxu0 %v1084
      %v1168 = vpop.f32.mrb[0].mxu0
      %v1169 = vadd.f32 0.0, %v1168
      %v1170 = vpop.f32.mrb[0].mxu0
      %v1171 = vpop.f32.mrb[0].mxu0
      %v1172 = vadd.f32 0.0, %v1171
      %v1173 = vpop.f32.mrb[0].mxu0
      %1174 = vmatprep.mubr.bf16.mxu0 0
      %1175 = vmatmul.mubr.bf16.gmra.mrb[0].mxu0 %v1087
      %v1176 = vpop.f32.mrb[0].mxu0
      %v1177 = vadd.f32 0.0, %v1176
      %v1178 = vpop.f32.mrb[0].mxu0
      %v1179 = vpop.f32.mrb[0].mxu0
      %v1180 = vadd.f32 0.0, %v1179
      %v1181 = vpop.f32.mrb[0].mxu0
      %1182 = vmatprep.mubr.bf16.mxu0 0
      %1183 = vmatmul.mubr.bf16.gmra.mrb[0].mxu0 %v1090
      %v1184 = vpop.f32.mrb[0].mxu0
      %v1185 = vadd.f32 0.0, %v1184
      %v1186 = vpop.f32.mrb[0].mxu0
      %v1187 = vpop.f32.mrb[0].mxu0
      %v1188 = vadd.f32 0.0, %v1187
      %v1189 = vpop.f32.mrb[0].mxu0
      %1190 = vmatprep.mubr.bf16.mxu0 0
      %1191 = vmatmul.mubr.bf16.gmra.mrb[0].mxu0 %v1093
      %v1192 = vpop.f32.mrb[0].mxu0
      %v1193 = vadd.f32 0.0, %v1192
      %v1194 = vpop.f32.mrb[0].mxu0
      %v1195 = vpop.f32.mrb[0].mxu0
      %v1196 = vadd.f32 0.0, %v1195
      %v1197 = vpop.f32.mrb[0].mxu0
      %1198 = vmatprep.mubr.bf16.mxu0 0
      %1199 = vmatmul.mubr.bf16.gmra.mrb[0].mxu0 %v1096
      %v1200 = vpop.f32.mrb[0].mxu0
      %v1201 = vadd.f32 0.0, %v1200
      %v1202 = vpop.f32.mrb[0].mxu0
      %v1203 = vpop.f32.mrb[0].mxu0
      %v1204 = vadd.f32 0.0, %v1203
      %v1205 = vpop.f32.mrb[0].mxu0
      %1206 = vmatprep.mubr.bf16.mxu0 0
      %1207 = vmatmul.mubr.bf16.gmra.mrb[0].mxu0 %v1099
      %v1208 = vpop.f32.mrb[0].mxu0
      %v1209 = vadd.f32 0.0, %v1208
      %v1210 = vpop.f32.mrb[0].mxu0
      %v1211 = vpop.f32.mrb[0].mxu0
      %v1212 = vadd.f32 0.0, %v1211
      %v1213 = vpop.f32.mrb[0].mxu0
      %1214 = vmatprep.mubr.bf16.mxu0 0
      %1215 = vmatmul.mubr.bf16.gmra.mrb[0].mxu0 %v1102
      %v1216 = vpop.f32.mrb[0].mxu0
      %v1217 = vadd.f32 0.0, %v1216
      %v1218 = vpop.f32.mrb[0].mxu0
      %v1219 = vpop.f32.mrb[0].mxu0
      %v1220 = vadd.f32 0.0, %v1219
      %v1221 = vpop.f32.mrb[0].mxu0
      %1222 = vmatprep.mubr.bf16.mxu0 0
      %1223 = vmatmul.mubr.bf16.gmra.mrb[0].mxu0 %v1105
      %v1224 = vpop.f32.mrb[0].mxu0
      %v1225 = vadd.f32 0.0, %v1224
      %v1226 = vpop.f32.mrb[0].mxu0
      %v1227 = vpop.f32.mrb[0].mxu0
      %v1228 = vadd.f32 0.0, %v1227
      %v1229 = vpop.f32.mrb[0].mxu0
      %1230 = vmatprep.mubr.bf16.mxu0 0
      %1231 = vmatmul.mubr.bf16.gmra.mrb[0].mxu0 %v1108
      %v1232 = vpop.f32.mrb[0].mxu0
      %v1233 = vadd.f32 0.0, %v1232
      %v1234 = vpop.f32.mrb[0].mxu0
      %v1235 = vpop.f32.mrb[0].mxu0
      %v1236 = vadd.f32 0.0, %v1235
      %v1237 = vpop.f32.mrb[0].mxu0
      %1238 = vmatprep.mubr.bf16.mxu0 0
      %1239 = vmatmul.mubr.bf16.gmra.mrb[0].mxu0 %v1111
      %v1240 = vpop.f32.mrb[0].mxu0
      %v1241 = vadd.f32 0.0, %v1240
      %v1242 = vpop.f32.mrb[0].mxu0
      %v1243 = vpop.f32.mrb[0].mxu0
      %v1244 = vadd.f32 0.0, %v1243
      %v1245 = vpop.f32.mrb[0].mxu0
      %1246 = vmatprep.mubr.bf16.mxu0 0
      %1247 = vmatmul.mubr.bf16.gmra.mrb[0].mxu0 %v1114
      %v1248 = vpop.f32.mrb[0].mxu0
      %v1249 = vadd.f32 0.0, %v1248
      %v1250 = vpop.f32.mrb[0].mxu0
      %v1251 = vpop.f32.mrb[0].mxu0
      %v1252 = vadd.f32 0.0, %v1251
      %v1253 = vpop.f32.mrb[0].mxu0
      %1254 = vmatprep.mubr.bf16.mxu0 0
      %1255 = vmatmul.mubr.bf16.gmra.mrb[0].mxu0 %v1117
      %v1256 = vpop.f32.mrb[0].mxu0
      %v1257 = vadd.f32 0.0, %v1256
      %v1258 = vpop.f32.mrb[0].mxu0
      %v1259 = vpop.f32.mrb[0].mxu0
      %v1260 = vadd.f32 0.0, %v1259
      %v1261 = vpop.f32.mrb[0].mxu0
      %1262 = vmatprep.mubr.bf16.mxu0 0
      %1263 = vmatmul.mubr.bf16.gmra.mrb[0].mxu0 %v1120
      %v1264 = vpop.f32.mrb[0].mxu0
      %v1265 = vadd.f32 0.0, %v1264
      %v1266 = vpop.f32.mrb[0].mxu0
      %v1267 = vpop.f32.mrb[0].mxu0
      %v1268 = vadd.f32 0.0, %v1267
      %v1269 = vpop.f32.mrb[0].mxu0
      %1270 = vmatprep.mubr.bf16.mxu0 0
      %1271 = vmatmul.mubr.bf16.gmra.mrb[0].mxu0 %v1123
      %v1272 = vpop.f32.mrb[0].mxu0
      %v1273 = vadd.f32 0.0, %v1272
      %v1274 = vpop.f32.mrb[0].mxu0
      %v1275 = vpop.f32.mrb[0].mxu0
      %v1276 = vadd.f32 0.0, %v1275
      %v1277 = vpop.f32.mrb[0].mxu0
      %1278 = vmatprep.mubr.bf16.mxu0 0
      %1279 = vmatmul.mubr.bf16.gmra.mrb[0].mxu0 %v1126
      %v1280 = vpop.f32.mrb[0].mxu0
      %v1281 = vadd.f32 0.0, %v1280
      %v1282 = vpop.f32.mrb[0].mxu0
      %v1283 = vpop.f32.mrb[0].mxu0
      %v1284 = vadd.f32 0.0, %v1283
      %v1285 = vpop.f32.mrb[0].mxu0
      %1286 = vmatprep.mubr.bf16.mxu0 0
      %1287 = vmatmul.mubr.bf16.gmra.mrb[0].mxu0 %v1129
      %v1288 = vpop.f32.mrb[0].mxu0
      %v1289 = vadd.f32 0.0, %v1288
      %v1290 = vpop.f32.mrb[0].mxu0
      %v1291 = vpop.f32.mrb[0].mxu0
      %v1292 = vadd.f32 0.0, %v1291
      %v1293 = vpop.f32.mrb[0].mxu0
      %1294 = vdwg.mxu0
      %v1295 = vadd.f32 %v1033, %v1169
      %v1296 = vadd.f32 %v1034, %v1172
      %v1297 = vadd.f32 %v1035, %v1177
      %v1298 = vadd.f32 %v1036, %v1180
      %v1299 = vadd.f32 %v1037, %v1185
      %v1300 = vadd.f32 %v1038, %v1188
      %v1301 = vadd.f32 %v1039, %v1193
      %v1302 = vadd.f32 %v1040, %v1196
      %v1303 = vadd.f32 %v1041, %v1201
      %v1304 = vadd.f32 %v1042, %v1204
      %v1305 = vadd.f32 %v1043, %v1209
      %v1306 = vadd.f32 %v1044, %v1212
      %v1307 = vadd.f32 %v1045, %v1217
      %v1308 = vadd.f32 %v1046, %v1220
      %v1309 = vadd.f32 %v1047, %v1225
      %v1310 = vadd.f32 %v1048, %v1228
      %v1311 = vadd.f32 %v1049, %v1233
      %v1312 = vadd.f32 %v1050, %v1236
      %v1313 = vadd.f32 %v1051, %v1241
      %v1314 = vadd.f32 %v1052, %v1244
      %v1315 = vadd.f32 %v1053, %v1249
      %v1316 = vadd.f32 %v1054, %v1252
      %v1317 = vadd.f32 %v1055, %v1257
      %v1318 = vadd.f32 %v1056, %v1260
      %v1319 = vadd.f32 %v1057, %v1265
      %v1320 = vadd.f32 %v1058, %v1268
      %v1321 = vadd.f32 %v1059, %v1273
      %v1322 = vadd.f32 %v1060, %v1276
      %v1323 = vadd.f32 %v1061, %v1281
      %v1324 = vadd.f32 %v1062, %v1284
      %v1325 = vadd.f32 %v1063, %v1289
      %v1326 = vadd.f32 %v1064, %v1292
      %1327 = vst.msk [vmem:[#allocation2] sm:$0xff] %vm499, %v1295
      %1328 = vst.msk [vmem:[#allocation2 + $0x8] sm:$0xff] %vm499, %v1296
      %1329 = vst.msk [vmem:[#allocation2 + $0x10] sm:$0xff] %vm499, %v1297
      %1330 = vst.msk [vmem:[#allocation2 + $0x18] sm:$0xff] %vm499, %v1298
      %1331 = vst.msk [vmem:[#allocation2 + $0x20] sm:$0xff] %vm499, %v1299
      %1332 = vst.msk [vmem:[#allocation2 + $0x28] sm:$0xff] %vm499, %v1300
      %1333 = vst.msk [vmem:[#allocation2 + $0x30] sm:$0xff] %vm499, %v1301
      %1334 = vst.msk [vmem:[#allocation2 + $0x38] sm:$0xff] %vm499, %v1302
      %1335 = vst.msk [vmem:[#allocation2 + $0x40] sm:$0xff] %vm499, %v1303
      %1336 = vst.msk [vmem:[#allocation2 + $0x48] sm:$0xff] %vm499, %v1304
      %1337 = vst.msk [vmem:[#allocation2 + $0x50] sm:$0xff] %vm499, %v1305
      %1338 = vst.msk [vmem:[#allocation2 + $0x58] sm:$0xff] %vm499, %v1306
      %1339 = vst.msk [vmem:[#allocation2 + $0x60] sm:$0xff] %vm499, %v1307
      %1340 = vst.msk [vmem:[#allocation2 + $0x68] sm:$0xff] %vm499, %v1308
      %1341 = vst.msk [vmem:[#allocation2 + $0x70] sm:$0xff] %vm499, %v1309
      %1342 = vst.msk [vmem:[#allocation2 + $0x78] sm:$0xff] %vm499, %v1310
      %1343 = vst.msk [vmem:[#allocation2 + $0x80] sm:$0xff] %vm499, %v1311
      %1344 = vst.msk [vmem:[#allocation2 + $0x88] sm:$0xff] %vm499, %v1312
      %1345 = vst.msk [vmem:[#allocation2 + $0x90] sm:$0xff] %vm499, %v1313
      %1346 = vst.msk [vmem:[#allocation2 + $0x98] sm:$0xff] %vm499, %v1314
      %1347 = vst.msk [vmem:[#allocation2 + $0xa0] sm:$0xff] %vm499, %v1315
      %1348 = vst.msk [vmem:[#allocation2 + $0xa8] sm:$0xff] %vm499, %v1316
      %1349 = vst.msk [vmem:[#allocation2 + $0xb0] sm:$0xff] %vm499, %v1317
      %1350 = vst.msk [vmem:[#allocation2 + $0xb8] sm:$0xff] %vm499, %v1318
      %1351 = vst.msk [vmem:[#allocation2 + $0xc0] sm:$0xff] %vm499, %v1319
      %1352 = vst.msk [vmem:[#allocation2 + $0xc8] sm:$0xff] %vm499, %v1320
      %1353 = vst.msk [vmem:[#allocation2 + $0xd0] sm:$0xff] %vm499, %v1321
      %1354 = vst.msk [vmem:[#allocation2 + $0xd8] sm:$0xff] %vm499, %v1322
      %1355 = vst.msk [vmem:[#allocation2 + $0xe0] sm:$0xff] %vm499, %v1323
      %1356 = vst.msk [vmem:[#allocation2 + $0xe8] sm:$0xff] %vm499, %v1324
      %1357 = vst.msk [vmem:[#allocation2 + $0xf0] sm:$0xff] %vm499, %v1325
      %1358 = vst.msk [vmem:[#allocation2 + $0xf8] sm:$0xff] %vm499, %v1326
      %v1359 = vmax.f32 %v1005, %v1001
      %v1360 = vmax.f32 %v1006, %v1002
      %v1361 = vmax.f32 %v1007, %v1003
      %v1362 = vmax.f32 %v1008, %v1004
      %v1363 = vmax.f32 %v1009, %v1005
      %v1364 = vmax.f32 %v1010, %v1006
      %v1365 = vmax.f32 %v1011, %v1007
      %v1366 = vmax.f32 %v1012, %v1008
      %v1367 = vmax.f32 %v1013, %v1009
      %v1368 = vmax.f32 %v1014, %v1010
      %v1369 = vmax.f32 %v1015, %v1011
      %v1370 = vmax.f32 %v1016, %v1012
      %v1371 = vmax.f32 %v1017, %v1013
      %v1372 = vmax.f32 %v1018, %v1014
      %v1373 = vmax.f32 %v1019, %v1015
      %v1374 = vmax.f32 %v1020, %v1016
      %v1375 = vmax.f32 %v1021, %v1017
      %v1376 = vmax.f32 %v1022, %v1018
      %v1377 = vmax.f32 %v1023, %v1019
      %v1378 = vmax.f32 %v1024, %v1020
      %v1379 = vmax.f32 %v1025, %v1021
      %v1380 = vmax.f32 %v1026, %v1022
      %v1381 = vmax.f32 %v1027, %v1023
      %v1382 = vmax.f32 %v1028, %v1024
      %v1383 = vmax.f32 %v1029, %v1025
      %v1384 = vmax.f32 %v1030, %v1026
      %v1385 = vmax.f32 %v1031, %v1027
      %v1386 = vmax.f32 %v1032, %v1028
      %v1387 = vmax.f32 %v1001, %v1003
      %v1388 = vmax.f32 %v1002, %v1004
      %v1389 = vmax.f32 %v1003, %v1359
      %v1390 = vmax.f32 %v1004, %v1360
      %v1391 = vmax.f32 %v1005, %v1361
      %v1392 = vmax.f32 %v1006, %v1362
      %v1393 = vmax.f32 %v1007, %v1363
      %v1394 = vmax.f32 %v1008, %v1364
      %v1395 = vmax.f32 %v1009, %v1365
      %v1396 = vmax.f32 %v1010, %v1366
      %v1397 = vmax.f32 %v1011, %v1367
      %v1398 = vmax.f32 %v1012, %v1368
      %v1399 = vmax.f32 %v1013, %v1369
      %v1400 = vmax.f32 %v1014, %v1370
      %v1401 = vmax.f32 %v1015, %v1371
      %v1402 = vmax.f32 %v1016, %v1372
      %v1403 = vmax.f32 %v1017, %v1373
      %v1404 = vmax.f32 %v1018, %v1374
      %v1405 = vmax.f32 %v1019, %v1375
      %v1406 = vmax.f32 %v1020, %v1376
      %v1407 = vmax.f32 %v1021, %v1377
      %v1408 = vmax.f32 %v1022, %v1378
      %v1409 = vmax.f32 %v1023, %v1379
      %v1410 = vmax.f32 %v1024, %v1380
      %v1411 = vmax.f32 %v1025, %v1381
      %v1412 = vmax.f32 %v1026, %v1382
      %v1413 = vmax.f32 %v1027, %v1383
      %v1414 = vmax.f32 %v1028, %v1384
      %v1415 = vmax.f32 %v1029, %v1385
      %v1416 = vmax.f32 %v1030, %v1386
      %v1417 = vmax.f32 %v1031, %v1029
      %v1418 = vmax.f32 %v1032, %v1030
      %v1419 = vmax.f32 %v1009, %v1001
      %v1420 = vmax.f32 %v1010, %v1002
      %v1421 = vmax.f32 %v1011, %v1003
      %v1422 = vmax.f32 %v1012, %v1004
      %v1423 = vmax.f32 %v1013, %v1005
      %v1424 = vmax.f32 %v1014, %v1006
      %v1425 = vmax.f32 %v1015, %v1007
      %v1426 = vmax.f32 %v1016, %v1008
      %v1427 = vmax.f32 %v1017, %v1009
      %v1428 = vmax.f32 %v1018, %v1010
      %v1429 = vmax.f32 %v1019, %v1011
      %v1430 = vmax.f32 %v1020, %v1012
      %v1431 = vmax.f32 %v1021, %v1013
      %v1432 = vmax.f32 %v1022, %v1014
      %v1433 = vmax.f32 %v1023, %v1015
      %v1434 = vmax.f32 %v1024, %v1016
      %v1435 = vmax.f32 %v1025, %v1017
      %v1436 = vmax.f32 %v1026, %v1018
      %v1437 = vmax.f32 %v1027, %v1019
      %v1438 = vmax.f32 %v1028, %v1020
      %v1439 = vmax.f32 %v1029, %v1021
      %v1440 = vmax.f32 %v1030, %v1022
      %v1441 = vmax.f32 %v1031, %v1023
      %v1442 = vmax.f32 %v1032, %v1024
      %v1443 = vmax.f32 %v1387, %v1005
      %v1444 = vmax.f32 %v1388, %v1006
      %v1445 = vmax.f32 %v1389, %v1007
      %v1446 = vmax.f32 %v1390, %v1008
      %v1447 = vmax.f32 %v1391, %v1419
      %v1448 = vmax.f32 %v1392, %v1420
      %v1449 = vmax.f32 %v1393, %v1421
      %v1450 = vmax.f32 %v1394, %v1422
      %v1451 = vmax.f32 %v1395, %v1423
      %v1452 = vmax.f32 %v1396, %v1424
      %v1453 = vmax.f32 %v1397, %v1425
      %v1454 = vmax.f32 %v1398, %v1426
      %v1455 = vmax.f32 %v1399, %v1427
      %v1456 = vmax.f32 %v1400, %v1428
      %v1457 = vmax.f32 %v1401, %v1429
      %v1458 = vmax.f32 %v1402, %v1430
      %v1459 = vmax.f32 %v1403, %v1431
      %v1460 = vmax.f32 %v1404, %v1432
      %v1461 = vmax.f32 %v1405, %v1433
      %v1462 = vmax.f32 %v1406, %v1434
      %v1463 = vmax.f32 %v1407, %v1435
      %v1464 = vmax.f32 %v1408, %v1436
      %v1465 = vmax.f32 %v1409, %v1437
      %v1466 = vmax.f32 %v1410, %v1438
      %v1467 = vmax.f32 %v1411, %v1439
      %v1468 = vmax.f32 %v1412, %v1440
      %v1469 = vmax.f32 %v1413, %v1441
      %v1470 = vmax.f32 %v1414, %v1442
      %v1471 = vmax.f32 %v1415, %v1025
      %v1472 = vmax.f32 %v1416, %v1026
      %v1473 = vmax.f32 %v1417, %v1027
      %v1474 = vmax.f32 %v1418, %v1028
      %1475 = vst.msk [vmem:[#allocation3 + $0x2] sm:$0xff] %vm285, %v1443
      %1476 = vst.msk [vmem:[#allocation3 + $0xa] sm:$0xff] %vm285, %v1444
      %1477 = vst.msk [vmem:[#allocation3 + $0x1a] sm:$0xff] %vm285, %v1445
      %1478 = vst.msk [vmem:[#allocation3 + $0x22] sm:$0xff] %vm285, %v1446
      %1479 = vst.msk [vmem:[#allocation3 + $0x32] sm:$0xff] %vm285, %v1447
      %1480 = vst.msk [vmem:[#allocation3 + $0x3a] sm:$0xff] %vm285, %v1448
      %1481 = vst.msk [vmem:[#allocation3 + $0x4a] sm:$0xff] %vm285, %v1449
      %1482 = vst.msk [vmem:[#allocation3 + $0x52] sm:$0xff] %vm285, %v1450
      %1483 = vst.msk [vmem:[#allocation3 + $0x62] sm:$0xff] %vm285, %v1451
      %1484 = vst.msk [vmem:[#allocation3 + $0x6a] sm:$0xff] %vm285, %v1452
      %1485 = vst.msk [vmem:[#allocation3 + $0x7a] sm:$0xff] %vm285, %v1453
      %1486 = vst.msk [vmem:[#allocation3 + $0x82] sm:$0xff] %vm285, %v1454
      %1487 = vst.msk [vmem:[#allocation3 + $0x92] sm:$0xff] %vm285, %v1455
      %1488 = vst.msk [vmem:[#allocation3 + $0x9a] sm:$0xff] %vm285, %v1456
      %1489 = vst.msk [vmem:[#allocation3 + $0xaa] sm:$0xff] %vm285, %v1457
      %1490 = vst.msk [vmem:[#allocation3 + $0xb2] sm:$0xff] %vm285, %v1458
      %1491 = vst.msk [vmem:[#allocation3 + $0xc2] sm:$0xff] %vm285, %v1459
      %1492 = vst.msk [vmem:[#allocation3 + $0xca] sm:$0xff] %vm285, %v1460
      %1493 = vst.msk [vmem:[#allocation3 + $0xda] sm:$0xff] %vm285, %v1461
      %1494 = vst.msk [vmem:[#allocation3 + $0xe2] sm:$0xff] %vm285, %v1462
      %1495 = vst.msk [vmem:[#allocation3 + $0xf2] sm:$0xff] %vm285, %v1463
      %1496 = vst.msk [vmem:[#allocation3 + $0xfa] sm:$0xff] %vm285, %v1464
      %1497 = vst.msk [vmem:[#allocation3 + $0x10a] sm:$0xff] %vm285, %v1465
      %1498 = vst.msk [vmem:[#allocation3 + $0x112] sm:$0xff] %vm285, %v1466
      %1499 = vst.msk [vmem:[#allocation3 + $0x122] sm:$0xff] %vm285, %v1467
      %1500 = vst.msk [vmem:[#allocation3 + $0x12a] sm:$0xff] %vm285, %v1468
      %1501 = vst.msk [vmem:[#allocation3 + $0x13a] sm:$0xff] %vm285, %v1469
      %1502 = vst.msk [vmem:[#allocation3 + $0x142] sm:$0xff] %vm285, %v1470
      %1503 = vst.msk [vmem:[#allocation3 + $0x152] sm:$0xff] %vm285, %v1471
      %1504 = vst.msk [vmem:[#allocation3 + $0x15a] sm:$0xff] %vm285, %v1472
      %1505 = vst.msk [vmem:[#allocation3 + $0x16a] sm:$0xff] %vm285, %v1473
      %1506 = vst.msk [vmem:[#allocation3 + $0x172] sm:$0xff] %vm285, %v1474
      %v1507 = vld [vmem:[#allocation3] sm:$0xff]
      %v1508 = vld [vmem:[#allocation3 + $0x8] sm:$0xff]
      %v1509 = vld [vmem:[#allocation3 + $0x18] sm:$0xff]
      %v1510 = vld [vmem:[#allocation3 + $0x20] sm:$0xff]
      %v1511 = vld [vmem:[#allocation3 + $0x30] sm:$0xff]
      %v1512 = vld [vmem:[#allocation3 + $0x38] sm:$0xff]
      %v1513 = vld [vmem:[#allocation3 + $0x48] sm:$0xff]
      %v1514 = vld [vmem:[#allocation3 + $0x50] sm:$0xff]
      %v1515 = vld [vmem:[#allocation3 + $0x60] sm:$0xff]
      %v1516 = vld [vmem:[#allocation3 + $0x68] sm:$0xff]
      %v1517 = vld [vmem:[#allocation3 + $0x78] sm:$0xff]
      %v1518 = vld [vmem:[#allocation3 + $0x80] sm:$0xff]
      %v1519 = vld [vmem:[#allocation3 + $0x90] sm:$0xff]
      %v1520 = vld [vmem:[#allocation3 + $0x98] sm:$0xff]
      %v1521 = vld [vmem:[#allocation3 + $0xa8] sm:$0xff]
      %v1522 = vld [vmem:[#allocation3 + $0xb0] sm:$0xff]
      %v1523 = vld [vmem:[#allocation3 + $0xc0] sm:$0xff]
      %v1524 = vld [vmem:[#allocation3 + $0xc8] sm:$0xff]
      %v1525 = vld [vmem:[#allocation3 + $0xd8] sm:$0xff]
      %v1526 = vld [vmem:[#allocation3 + $0xe0] sm:$0xff]
      %v1527 = vld [vmem:[#allocation3 + $0xf0] sm:$0xff]
      %v1528 = vld [vmem:[#allocation3 + $0xf8] sm:$0xff]
      %v1529 = vld [vmem:[#allocation3 + $0x108] sm:$0xff]
      %v1530 = vld [vmem:[#allocation3 + $0x110] sm:$0xff]
      %v1531 = vld [vmem:[#allocation3 + $0x120] sm:$0xff]
      %v1532 = vld [vmem:[#allocation3 + $0x128] sm:$0xff]
      %v1533 = vld [vmem:[#allocation3 + $0x138] sm:$0xff]
      %v1534 = vld [vmem:[#allocation3 + $0x140] sm:$0xff]
      %v1535 = vld [vmem:[#allocation3 + $0x150] sm:$0xff]
      %v1536 = vld [vmem:[#allocation3 + $0x158] sm:$0xff]
      %v1537 = vld [vmem:[#allocation3 + $0x168] sm:$0xff]
      %v1538 = vld [vmem:[#allocation3 + $0x170] sm:$0xff]
      %v1539 = vld [vmem:[#allocation3 + $0x1] sm:$0xff]
      %v1540 = vld [vmem:[#allocation3 + $0x9] sm:$0xff]
      %v1541 = vld [vmem:[#allocation3 + $0x19] sm:$0xff]
      %v1542 = vld [vmem:[#allocation3 + $0x21] sm:$0xff]
      %v1543 = vld [vmem:[#allocation3 + $0x31] sm:$0xff]
      %v1544 = vld [vmem:[#allocation3 + $0x39] sm:$0xff]
      %v1545 = vld [vmem:[#allocation3 + $0x49] sm:$0xff]
      %v1546 = vld [vmem:[#allocation3 + $0x51] sm:$0xff]
      %v1547 = vld [vmem:[#allocation3 + $0x61] sm:$0xff]
      %v1548 = vld [vmem:[#allocation3 + $0x69] sm:$0xff]
      %v1549 = vld [vmem:[#allocation3 + $0x79] sm:$0xff]
      %v1550 = vld [vmem:[#allocation3 + $0x81] sm:$0xff]
      %v1551 = vld [vmem:[#allocation3 + $0x91] sm:$0xff]
      %v1552 = vld [vmem:[#allocation3 + $0x99] sm:$0xff]
      %v1553 = vld [vmem:[#allocation3 + $0xa9] sm:$0xff]
      %v1554 = vld [vmem:[#allocation3 + $0xb1] sm:$0xff]
      %v1555 = vld [vmem:[#allocation3 + $0xc1] sm:$0xff]
      %v1556 = vld [vmem:[#allocation3 + $0xc9] sm:$0xff]
      %v1557 = vld [vmem:[#allocation3 + $0xd9] sm:$0xff]
      %v1558 = vld [vmem:[#allocation3 + $0xe1] sm:$0xff]
      %v1559 = vld [vmem:[#allocation3 + $0xf1] sm:$0xff]
      %v1560 = vld [vmem:[#allocation3 + $0xf9] sm:$0xff]
      %v1561 = vld [vmem:[#allocation3 + $0x109] sm:$0xff]
      %v1562 = vld [vmem:[#allocation3 + $0x111] sm:$0xff]
      %v1563 = vld [vmem:[#allocation3 + $0x121] sm:$0xff]
      %v1564 = vld [vmem:[#allocation3 + $0x129] sm:$0xff]
      %v1565 = vld [vmem:[#allocation3 + $0x139] sm:$0xff]
      %v1566 = vld [vmem:[#allocation3 + $0x141] sm:$0xff]
      %v1567 = vld [vmem:[#allocation3 + $0x151] sm:$0xff]
      %v1568 = vld [vmem:[#allocation3 + $0x159] sm:$0xff]
      %v1569 = vld [vmem:[#allocation3 + $0x169] sm:$0xff]
      %v1570 = vld [vmem:[#allocation3 + $0x171] sm:$0xff]
      %v1571 = vmax.f32 %v1507, %v1539
      %v1572 = vmax.f32 %v1508, %v1540
      %v1573 = vmax.f32 %v1509, %v1541
      %v1574 = vmax.f32 %v1510, %v1542
      %v1575 = vmax.f32 %v1511, %v1543
      %v1576 = vmax.f32 %v1512, %v1544
      %v1577 = vmax.f32 %v1513, %v1545
      %v1578 = vmax.f32 %v1514, %v1546
      %v1579 = vmax.f32 %v1515, %v1547
      %v1580 = vmax.f32 %v1516, %v1548
      %v1581 = vmax.f32 %v1517, %v1549
      %v1582 = vmax.f32 %v1518, %v1550
      %v1583 = vmax.f32 %v1519, %v1551
      %v1584 = vmax.f32 %v1520, %v1552
      %v1585 = vmax.f32 %v1521, %v1553
      %v1586 = vmax.f32 %v1522, %v1554
      %v1587 = vmax.f32 %v1523, %v1555
      %v1588 = vmax.f32 %v1524, %v1556
      %v1589 = vmax.f32 %v1525, %v1557
      %v1590 = vmax.f32 %v1526, %v1558
      %v1591 = vmax.f32 %v1527, %v1559
      %v1592 = vmax.f32 %v1528, %v1560
      %v1593 = vmax.f32 %v1529, %v1561
      %v1594 = vmax.f32 %v1530, %v1562
      %v1595 = vmax.f32 %v1531, %v1563
      %v1596 = vmax.f32 %v1532, %v1564
      %v1597 = vmax.f32 %v1533, %v1565
      %v1598 = vmax.f32 %v1534, %v1566
      %v1599 = vmax.f32 %v1535, %v1567
      %v1600 = vmax.f32 %v1536, %v1568
      %v1601 = vmax.f32 %v1537, %v1569
      %v1602 = vmax.f32 %v1538, %v1570
      %v1603 = vld [vmem:[#allocation3 + $0x2] sm:$0xff]
      %v1604 = vld [vmem:[#allocation3 + $0xa] sm:$0xff]
      %v1605 = vld [vmem:[#allocation3 + $0x1a] sm:$0xff]
      %v1606 = vld [vmem:[#allocation3 + $0x22] sm:$0xff]
      %v1607 = vld [vmem:[#allocation3 + $0x32] sm:$0xff]
      %v1608 = vld [vmem:[#allocation3 + $0x3a] sm:$0xff]
      %v1609 = vld [vmem:[#allocation3 + $0x4a] sm:$0xff]
      %v1610 = vld [vmem:[#allocation3 + $0x52] sm:$0xff]
      %v1611 = vld [vmem:[#allocation3 + $0x62] sm:$0xff]
      %v1612 = vld [vmem:[#allocation3 + $0x6a] sm:$0xff]
      %v1613 = vld [vmem:[#allocation3 + $0x7a] sm:$0xff]
      %v1614 = vld [vmem:[#allocation3 + $0x82] sm:$0xff]
      %v1615 = vld [vmem:[#allocation3 + $0x92] sm:$0xff]
      %v1616 = vld [vmem:[#allocation3 + $0x9a] sm:$0xff]
      %v1617 = vld [vmem:[#allocation3 + $0xaa] sm:$0xff]
      %v1618 = vld [vmem:[#allocation3 + $0xb2] sm:$0xff]
      %v1619 = vld [vmem:[#allocation3 + $0xc2] sm:$0xff]
      %v1620 = vld [vmem:[#allocation3 + $0xca] sm:$0xff]
      %v1621 = vld [vmem:[#allocation3 + $0xda] sm:$0xff]
      %v1622 = vld [vmem:[#allocation3 + $0xe2] sm:$0xff]
      %v1623 = vld [vmem:[#allocation3 + $0xf2] sm:$0xff]
      %v1624 = vld [vmem:[#allocation3 + $0xfa] sm:$0xff]
      %v1625 = vld [vmem:[#allocation3 + $0x10a] sm:$0xff]
      %v1626 = vld [vmem:[#allocation3 + $0x112] sm:$0xff]
      %v1627 = vld [vmem:[#allocation3 + $0x122] sm:$0xff]
      %v1628 = vld [vmem:[#allocation3 + $0x12a] sm:$0xff]
      %v1629 = vld [vmem:[#allocation3 + $0x13a] sm:$0xff]
      %v1630 = vld [vmem:[#allocation3 + $0x142] sm:$0xff]
      %v1631 = vld [vmem:[#allocation3 + $0x152] sm:$0xff]
      %v1632 = vld [vmem:[#allocation3 + $0x15a] sm:$0xff]
      %v1633 = vld [vmem:[#allocation3 + $0x16a] sm:$0xff]
      %v1634 = vld [vmem:[#allocation3 + $0x172] sm:$0xff]
      %v1635 = vmax.f32 %v1571, %v1603
      %v1636 = vmax.f32 %v1572, %v1604
      %v1637 = vmax.f32 %v1573, %v1605
      %v1638 = vmax.f32 %v1574, %v1606
      %v1639 = vmax.f32 %v1575, %v1607
      %v1640 = vmax.f32 %v1576, %v1608
      %v1641 = vmax.f32 %v1577, %v1609
      %v1642 = vmax.f32 %v1578, %v1610
      %v1643 = vmax.f32 %v1579, %v1611
      %v1644 = vmax.f32 %v1580, %v1612
      %v1645 = vmax.f32 %v1581, %v1613
      %v1646 = vmax.f32 %v1582, %v1614
      %v1647 = vmax.f32 %v1583, %v1615
      %v1648 = vmax.f32 %v1584, %v1616
      %v1649 = vmax.f32 %v1585, %v1617
      %v1650 = vmax.f32 %v1586, %v1618
      %v1651 = vmax.f32 %v1587, %v1619
      %v1652 = vmax.f32 %v1588, %v1620
      %v1653 = vmax.f32 %v1589, %v1621
      %v1654 = vmax.f32 %v1590, %v1622
      %v1655 = vmax.f32 %v1591, %v1623
      %v1656 = vmax.f32 %v1592, %v1624
      %v1657 = vmax.f32 %v1593, %v1625
      %v1658 = vmax.f32 %v1594, %v1626
      %v1659 = vmax.f32 %v1595, %v1627
      %v1660 = vmax.f32 %v1596, %v1628
      %v1661 = vmax.f32 %v1597, %v1629
      %v1662 = vmax.f32 %v1598, %v1630
      %v1663 = vmax.f32 %v1599, %v1631
      %v1664 = vmax.f32 %v1600, %v1632
      %v1665 = vmax.f32 %v1601, %v1633
      %v1666 = vmax.f32 %v1602, %v1634
      %v1667 = vld [vmem:[#allocation3 + $0x3] sm:$0xff]
      %v1668 = vld [vmem:[#allocation3 + $0xb] sm:$0xff]
      %v1669 = vld [vmem:[#allocation3 + $0x1b] sm:$0xff]
      %v1670 = vld [vmem:[#allocation3 + $0x23] sm:$0xff]
      %v1671 = vld [vmem:[#allocation3 + $0x33] sm:$0xff]
      %v1672 = vld [vmem:[#allocation3 + $0x3b] sm:$0xff]
      %v1673 = vld [vmem:[#allocation3 + $0x4b] sm:$0xff]
      %v1674 = vld [vmem:[#allocation3 + $0x53] sm:$0xff]
      %v1675 = vld [vmem:[#allocation3 + $0x63] sm:$0xff]
      %v1676 = vld [vmem:[#allocation3 + $0x6b] sm:$0xff]
      %v1677 = vld [vmem:[#allocation3 + $0x7b] sm:$0xff]
      %v1678 = vld [vmem:[#allocation3 + $0x83] sm:$0xff]
      %v1679 = vld [vmem:[#allocation3 + $0x93] sm:$0xff]
      %v1680 = vld [vmem:[#allocation3 + $0x9b] sm:$0xff]
      %v1681 = vld [vmem:[#allocation3 + $0xab] sm:$0xff]
      %v1682 = vld [vmem:[#allocation3 + $0xb3] sm:$0xff]
      %v1683 = vld [vmem:[#allocation3 + $0xc3] sm:$0xff]
      %v1684 = vld [vmem:[#allocation3 + $0xcb] sm:$0xff]
      %v1685 = vld [vmem:[#allocation3 + $0xdb] sm:$0xff]
      %v1686 = vld [vmem:[#allocation3 + $0xe3] sm:$0xff]
      %v1687 = vld [vmem:[#allocation3 + $0xf3] sm:$0xff]
      %v1688 = vld [vmem:[#allocation3 + $0xfb] sm:$0xff]
      %v1689 = vld [vmem:[#allocation3 + $0x10b] sm:$0xff]
      %v1690 = vld [vmem:[#allocation3 + $0x113] sm:$0xff]
      %v1691 = vld [vmem:[#allocation3 + $0x123] sm:$0xff]
      %v1692 = vld [vmem:[#allocation3 + $0x12b] sm:$0xff]
      %v1693 = vld [vmem:[#allocation3 + $0x13b] sm:$0xff]
      %v1694 = vld [vmem:[#allocation3 + $0x143] sm:$0xff]
      %v1695 = vld [vmem:[#allocation3 + $0x153] sm:$0xff]
      %v1696 = vld [vmem:[#allocation3 + $0x15b] sm:$0xff]
      %v1697 = vld [vmem:[#allocation3 + $0x16b] sm:$0xff]
      %v1698 = vld [vmem:[#allocation3 + $0x173] sm:$0xff]
      %v1699 = vmax.f32 %v1635, %v1667
      %v1700 = vmax.f32 %v1636, %v1668
      %v1701 = vmax.f32 %v1637, %v1669
      %v1702 = vmax.f32 %v1638, %v1670
      %v1703 = vmax.f32 %v1639, %v1671
      %v1704 = vmax.f32 %v1640, %v1672
      %v1705 = vmax.f32 %v1641, %v1673
      %v1706 = vmax.f32 %v1642, %v1674
      %v1707 = vmax.f32 %v1643, %v1675
      %v1708 = vmax.f32 %v1644, %v1676
      %v1709 = vmax.f32 %v1645, %v1677
      %v1710 = vmax.f32 %v1646, %v1678
      %v1711 = vmax.f32 %v1647, %v1679
      %v1712 = vmax.f32 %v1648, %v1680
      %v1713 = vmax.f32 %v1649, %v1681
      %v1714 = vmax.f32 %v1650, %v1682
      %v1715 = vmax.f32 %v1651, %v1683
      %v1716 = vmax.f32 %v1652, %v1684
      %v1717 = vmax.f32 %v1653, %v1685
      %v1718 = vmax.f32 %v1654, %v1686
      %v1719 = vmax.f32 %v1655, %v1687
      %v1720 = vmax.f32 %v1656, %v1688
      %v1721 = vmax.f32 %v1657, %v1689
      %v1722 = vmax.f32 %v1658, %v1690
      %v1723 = vmax.f32 %v1659, %v1691
      %v1724 = vmax.f32 %v1660, %v1692
      %v1725 = vmax.f32 %v1661, %v1693
      %v1726 = vmax.f32 %v1662, %v1694
      %v1727 = vmax.f32 %v1663, %v1695
      %v1728 = vmax.f32 %v1664, %v1696
      %v1729 = vmax.f32 %v1665, %v1697
      %v1730 = vmax.f32 %v1666, %v1698
      %v1731 = vld [vmem:[#allocation3 + $0x4] sm:$0xff]
      %v1732 = vld [vmem:[#allocation3 + $0xc] sm:$0xff]
      %v1733 = vld [vmem:[#allocation3 + $0x1c] sm:$0xff]
      %v1734 = vld [vmem:[#allocation3 + $0x24] sm:$0xff]
      %v1735 = vld [vmem:[#allocation3 + $0x34] sm:$0xff]
      %v1736 = vld [vmem:[#allocation3 + $0x3c] sm:$0xff]
      %v1737 = vld [vmem:[#allocation3 + $0x4c] sm:$0xff]
      %v1738 = vld [vmem:[#allocation3 + $0x54] sm:$0xff]
      %v1739 = vld [vmem:[#allocation3 + $0x64] sm:$0xff]
      %v1740 = vld [vmem:[#allocation3 + $0x6c] sm:$0xff]
      %v1741 = vld [vmem:[#allocation3 + $0x7c] sm:$0xff]
      %v1742 = vld [vmem:[#allocation3 + $0x84] sm:$0xff]
      %v1743 = vld [vmem:[#allocation3 + $0x94] sm:$0xff]
      %v1744 = vld [vmem:[#allocation3 + $0x9c] sm:$0xff]
      %v1745 = vld [vmem:[#allocation3 + $0xac] sm:$0xff]
      %v1746 = vld [vmem:[#allocation3 + $0xb4] sm:$0xff]
      %v1747 = vld [vmem:[#allocation3 + $0xc4] sm:$0xff]
      %v1748 = vld [vmem:[#allocation3 + $0xcc] sm:$0xff]
      %v1749 = vld [vmem:[#allocation3 + $0xdc] sm:$0xff]
      %v1750 = vld [vmem:[#allocation3 + $0xe4] sm:$0xff]
      %v1751 = vld [vmem:[#allocation3 + $0xf4] sm:$0xff]
      %v1752 = vld [vmem:[#allocation3 + $0xfc] sm:$0xff]
      %v1753 = vld [vmem:[#allocation3 + $0x10c] sm:$0xff]
      %v1754 = vld [vmem:[#allocation3 + $0x114] sm:$0xff]
      %v1755 = vld [vmem:[#allocation3 + $0x124] sm:$0xff]
      %v1756 = vld [vmem:[#allocation3 + $0x12c] sm:$0xff]
      %v1757 = vld [vmem:[#allocation3 + $0x13c] sm:$0xff]
      %v1758 = vld [vmem:[#allocation3 + $0x144] sm:$0xff]
      %v1759 = vld [vmem:[#allocation3 + $0x154] sm:$0xff]
      %v1760 = vld [vmem:[#allocation3 + $0x15c] sm:$0xff]
      %v1761 = vld [vmem:[#allocation3 + $0x16c] sm:$0xff]
      %v1762 = vld [vmem:[#allocation3 + $0x174] sm:$0xff]
      %v1763 = vmax.f32 %v1699, %v1731
      %v1764 = vmax.f32 %v1700, %v1732
      %v1765 = vmax.f32 %v1701, %v1733
      %v1766 = vmax.f32 %v1702, %v1734
      %v1767 = vmax.f32 %v1703, %v1735
      %v1768 = vmax.f32 %v1704, %v1736
      %v1769 = vmax.f32 %v1705, %v1737
      %v1770 = vmax.f32 %v1706, %v1738
      %v1771 = vmax.f32 %v1707, %v1739
      %v1772 = vmax.f32 %v1708, %v1740
      %v1773 = vmax.f32 %v1709, %v1741
      %v1774 = vmax.f32 %v1710, %v1742
      %v1775 = vmax.f32 %v1711, %v1743
      %v1776 = vmax.f32 %v1712, %v1744
      %v1777 = vmax.f32 %v1713, %v1745
      %v1778 = vmax.f32 %v1714, %v1746
      %v1779 = vmax.f32 %v1715, %v1747
      %v1780 = vmax.f32 %v1716, %v1748
      %v1781 = vmax.f32 %v1717, %v1749
      %v1782 = vmax.f32 %v1718, %v1750
      %v1783 = vmax.f32 %v1719, %v1751
      %v1784 = vmax.f32 %v1720, %v1752
      %v1785 = vmax.f32 %v1721, %v1753
      %v1786 = vmax.f32 %v1722, %v1754
      %v1787 = vmax.f32 %v1723, %v1755
      %v1788 = vmax.f32 %v1724, %v1756
      %v1789 = vmax.f32 %v1725, %v1757
      %v1790 = vmax.f32 %v1726, %v1758
      %v1791 = vmax.f32 %v1727, %v1759
      %v1792 = vmax.f32 %v1728, %v1760
      %v1793 = vmax.f32 %v1729, %v1761
      %v1794 = vmax.f32 %v1730, %v1762
      %v1795 = vld [vmem:[#allocation2] sm:$0xff]
      %v1796 = vld [vmem:[#allocation2 + $0x8] sm:$0xff]
      %v1797 = vld [vmem:[#allocation2 + $0x10] sm:$0xff]
      %v1798 = vld [vmem:[#allocation2 + $0x18] sm:$0xff]
      %v1799 = vld [vmem:[#allocation2 + $0x20] sm:$0xff]
      %v1800 = vld [vmem:[#allocation2 + $0x28] sm:$0xff]
      %v1801 = vld [vmem:[#allocation2 + $0x30] sm:$0xff]
      %v1802 = vld [vmem:[#allocation2 + $0x38] sm:$0xff]
      %v1803 = vld [vmem:[#allocation2 + $0x40] sm:$0xff]
      %v1804 = vld [vmem:[#allocation2 + $0x48] sm:$0xff]
      %v1805 = vld [vmem:[#allocation2 + $0x50] sm:$0xff]
      %v1806 = vld [vmem:[#allocation2 + $0x58] sm:$0xff]
      %v1807 = vld [vmem:[#allocation2 + $0x60] sm:$0xff]
      %v1808 = vld [vmem:[#allocation2 + $0x68] sm:$0xff]
      %v1809 = vld [vmem:[#allocation2 + $0x70] sm:$0xff]
      %v1810 = vld [vmem:[#allocation2 + $0x78] sm:$0xff]
      %v1811 = vld [vmem:[#allocation2 + $0x80] sm:$0xff]
      %v1812 = vld [vmem:[#allocation2 + $0x88] sm:$0xff]
      %v1813 = vld [vmem:[#allocation2 + $0x90] sm:$0xff]
      %v1814 = vld [vmem:[#allocation2 + $0x98] sm:$0xff]
      %v1815 = vld [vmem:[#allocation2 + $0xa0] sm:$0xff]
      %v1816 = vld [vmem:[#allocation2 + $0xa8] sm:$0xff]
      %v1817 = vld [vmem:[#allocation2 + $0xb0] sm:$0xff]
      %v1818 = vld [vmem:[#allocation2 + $0xb8] sm:$0xff]
      %v1819 = vld [vmem:[#allocation2 + $0xc0] sm:$0xff]
      %v1820 = vld [vmem:[#allocation2 + $0xc8] sm:$0xff]
      %v1821 = vld [vmem:[#allocation2 + $0xd0] sm:$0xff]
      %v1822 = vld [vmem:[#allocation2 + $0xd8] sm:$0xff]
      %v1823 = vld [vmem:[#allocation2 + $0xe0] sm:$0xff]
      %v1824 = vld [vmem:[#allocation2 + $0xe8] sm:$0xff]
      %v1825 = vld [vmem:[#allocation2 + $0xf0] sm:$0xff]
      %v1826 = vld [vmem:[#allocation2 + $0xf8] sm:$0xff]
      %v1827 = vpack.c.bf16 %v1764, %v1763
      %v1828 = vpack.c.bf16 %v1766, %v1765
      %v1829 = vpack.c.bf16 %v1768, %v1767
      %v1830 = vpack.c.bf16 %v1770, %v1769
      %v1831 = vpack.c.bf16 %v1772, %v1771
      %v1832 = vpack.c.bf16 %v1774, %v1773
      %v1833 = vpack.c.bf16 %v1776, %v1775
      %v1834 = vpack.c.bf16 %v1778, %v1777
      %v1835 = vpack.c.bf16 %v1780, %v1779
      %v1836 = vpack.c.bf16 %v1782, %v1781
      %v1837 = vpack.c.bf16 %v1784, %v1783
      %v1838 = vpack.c.bf16 %v1786, %v1785
      %v1839 = vpack.c.bf16 %v1788, %v1787
      %v1840 = vpack.c.bf16 %v1790, %v1789
      %v1841 = vpack.c.bf16 %v1792, %v1791
      %v1842 = vpack.c.bf16 %v1794, %v1793
      %s1843 = scalar_lea.vmem %s1, 4
      %v1844 = vld [vmem:[%s1843] sm:$0x3]
      %v1846 = vsel %vm285, %v1827, 0
      %v1849 = vsel %vm285, %v1828, 0
      %v1852 = vsel %vm285, %v1829, 0
      %v1855 = vsel %vm285, %v1830, 0
      %v1858 = vsel %vm285, %v1831, 0
      %v1861 = vsel %vm285, %v1832, 0
      %v1864 = vsel %vm285, %v1833, 0
      %v1867 = vsel %vm285, %v1834, 0
      %v1870 = vsel %vm285, %v1835, 0
      %v1873 = vsel %vm285, %v1836, 0
      %v1876 = vsel %vm285, %v1837, 0
      %v1879 = vsel %vm285, %v1838, 0
      %v1882 = vsel %vm285, %v1839, 0
      %v1885 = vsel %vm285, %v1840, 0
      %v1888 = vsel %vm285, %v1841, 0
      %v1891 = vsel %vm285, %v1842, 0
      %v1894 = vsel %vm334, %v1844, 0
      %1896 = vmatprep.subr.bf16.mxu0 0
      %1897 = vmatpush1.bf16.msra.mxu0 %v1894
      %1898 = vmatprep.subr.bf16.mxu0 0
      %1899 = vmatpush1.bf16.msra.mxu0 0
      %1900 = vmatprep.subr.bf16.mxu0 0
      %1901 = vmatpush1.bf16.msra.mxu0 0
      %1902 = vmatprep.subr.bf16.mxu0 0
      %1903 = vmatpush1.bf16.msra.mxu0 0
      %1904 = vmatprep.subr.bf16.mxu0 0
      %1905 = vmatpush1.bf16.msra.mxu0 0
      %1906 = vmatprep.subr.bf16.mxu0 0
      %1907 = vmatpush1.bf16.msra.mxu0 0
      %1908 = vmatprep.subr.bf16.mxu0 0
      %1909 = vmatpush1.bf16.msra.mxu0 0
      %1910 = vmatprep.subr.bf16.mxu0 0
      %1911 = vmatpush1.bf16.msra.mxu0 0
      %1912 = vmatprep.subr.bf16.mxu0 0
      %1913 = vmatpush1.bf16.msra.mxu0 0
      %1914 = vmatprep.subr.bf16.mxu0 0
      %1915 = vmatpush1.bf16.msra.mxu0 0
      %1916 = vmatprep.subr.bf16.mxu0 0
      %1917 = vmatpush1.bf16.msra.mxu0 0
      %1918 = vmatprep.subr.bf16.mxu0 0
      %1919 = vmatpush1.bf16.msra.mxu0 0
      %1920 = vmatprep.subr.bf16.mxu0 0
      %1921 = vmatpush1.bf16.msra.mxu0 0
      %1922 = vmatprep.subr.bf16.mxu0 0
      %1923 = vmatpush1.bf16.msra.mxu0 0
      %1924 = vmatprep.subr.bf16.mxu0 0
      %1925 = vmatpush1.bf16.msra.mxu0 0
      %1926 = vmatprep.subr.bf16.mxu0 0
      %1927 = vmatpush1.bf16.msra.mxu0 0
      %1928 = vmatprep.mubr.bf16.mxu0 0
      %1929 = vmatmul.mubr.bf16.gmra.mrb[0].mxu0 %v1846
      %v1930 = vpop.f32.mrb[0].mxu0
      %v1931 = vadd.f32 0.0, %v1930
      %v1932 = vpop.f32.mrb[0].mxu0
      %v1933 = vpop.f32.mrb[0].mxu0
      %v1934 = vadd.f32 0.0, %v1933
      %v1935 = vpop.f32.mrb[0].mxu0
      %1936 = vmatprep.mubr.bf16.mxu0 0
      %1937 = vmatmul.mubr.bf16.gmra.mrb[0].mxu0 %v1849
      %v1938 = vpop.f32.mrb[0].mxu0
      %v1939 = vadd.f32 0.0, %v1938
      %v1940 = vpop.f32.mrb[0].mxu0
      %v1941 = vpop.f32.mrb[0].mxu0
      %v1942 = vadd.f32 0.0, %v1941
      %v1943 = vpop.f32.mrb[0].mxu0
      %1944 = vmatprep.mubr.bf16.mxu0 0
      %1945 = vmatmul.mubr.bf16.gmra.mrb[0].mxu0 %v1852
      %v1946 = vpop.f32.mrb[0].mxu0
      %v1947 = vadd.f32 0.0, %v1946
      %v1948 = vpop.f32.mrb[0].mxu0
      %v1949 = vpop.f32.mrb[0].mxu0
      %v1950 = vadd.f32 0.0, %v1949
      %v1951 = vpop.f32.mrb[0].mxu0
      %1952 = vmatprep.mubr.bf16.mxu0 0
      %1953 = vmatmul.mubr.bf16.gmra.mrb[0].mxu0 %v1855
      %v1954 = vpop.f32.mrb[0].mxu0
      %v1955 = vadd.f32 0.0, %v1954
      %v1956 = vpop.f32.mrb[0].mxu0
      %v1957 = vpop.f32.mrb[0].mxu0
      %v1958 = vadd.f32 0.0, %v1957
      %v1959 = vpop.f32.mrb[0].mxu0
      %1960 = vmatprep.mubr.bf16.mxu0 0
      %1961 = vmatmul.mubr.bf16.gmra.mrb[0].mxu0 %v1858
      %v1962 = vpop.f32.mrb[0].mxu0
      %v1963 = vadd.f32 0.0, %v1962
      %v1964 = vpop.f32.mrb[0].mxu0
      %v1965 = vpop.f32.mrb[0].mxu0
      %v1966 = vadd.f32 0.0, %v1965
      %v1967 = vpop.f32.mrb[0].mxu0
      %1968 = vmatprep.mubr.bf16.mxu0 0
      %1969 = vmatmul.mubr.bf16.gmra.mrb[0].mxu0 %v1861
      %v1970 = vpop.f32.mrb[0].mxu0
      %v1971 = vadd.f32 0.0, %v1970
      %v1972 = vpop.f32.mrb[0].mxu0
      %v1973 = vpop.f32.mrb[0].mxu0
      %v1974 = vadd.f32 0.0, %v1973
      %v1975 = vpop.f32.mrb[0].mxu0
      %1976 = vmatprep.mubr.bf16.mxu0 0
      %1977 = vmatmul.mubr.bf16.gmra.mrb[0].mxu0 %v1864
      %v1978 = vpop.f32.mrb[0].mxu0
      %v1979 = vadd.f32 0.0, %v1978
      %v1980 = vpop.f32.mrb[0].mxu0
      %v1981 = vpop.f32.mrb[0].mxu0
      %v1982 = vadd.f32 0.0, %v1981
      %v1983 = vpop.f32.mrb[0].mxu0
      %1984 = vmatprep.mubr.bf16.mxu0 0
      %1985 = vmatmul.mubr.bf16.gmra.mrb[0].mxu0 %v1867
      %v1986 = vpop.f32.mrb[0].mxu0
      %v1987 = vadd.f32 0.0, %v1986
      %v1988 = vpop.f32.mrb[0].mxu0
      %v1989 = vpop.f32.mrb[0].mxu0
      %v1990 = vadd.f32 0.0, %v1989
      %v1991 = vpop.f32.mrb[0].mxu0
      %1992 = vmatprep.mubr.bf16.mxu0 0
      %1993 = vmatmul.mubr.bf16.gmra.mrb[0].mxu0 %v1870
      %v1994 = vpop.f32.mrb[0].mxu0
      %v1995 = vadd.f32 0.0, %v1994
      %v1996 = vpop.f32.mrb[0].mxu0
      %v1997 = vpop.f32.mrb[0].mxu0
      %v1998 = vadd.f32 0.0, %v1997
      %v1999 = vpop.f32.mrb[0].mxu0
      %2000 = vmatprep.mubr.bf16.mxu0 0
      %2001 = vmatmul.mubr.bf16.gmra.mrb[0].mxu0 %v1873
      %v2002 = vpop.f32.mrb[0].mxu0
      %v2003 = vadd.f32 0.0, %v2002
      %v2004 = vpop.f32.mrb[0].mxu0
      %v2005 = vpop.f32.mrb[0].mxu0
      %v2006 = vadd.f32 0.0, %v2005
      %v2007 = vpop.f32.mrb[0].mxu0
      %2008 = vmatprep.mubr.bf16.mxu0 0
      %2009 = vmatmul.mubr.bf16.gmra.mrb[0].mxu0 %v1876
      %v2010 = vpop.f32.mrb[0].mxu0
      %v2011 = vadd.f32 0.0, %v2010
      %v2012 = vpop.f32.mrb[0].mxu0
      %v2013 = vpop.f32.mrb[0].mxu0
      %v2014 = vadd.f32 0.0, %v2013
      %v2015 = vpop.f32.mrb[0].mxu0
      %2016 = vmatprep.mubr.bf16.mxu0 0
      %2017 = vmatmul.mubr.bf16.gmra.mrb[0].mxu0 %v1879
      %v2018 = vpop.f32.mrb[0].mxu0
      %v2019 = vadd.f32 0.0, %v2018
      %v2020 = vpop.f32.mrb[0].mxu0
      %v2021 = vpop.f32.mrb[0].mxu0
      %v2022 = vadd.f32 0.0, %v2021
      %v2023 = vpop.f32.mrb[0].mxu0
      %2024 = vmatprep.mubr.bf16.mxu0 0
      %2025 = vmatmul.mubr.bf16.gmra.mrb[0].mxu0 %v1882
      %v2026 = vpop.f32.mrb[0].mxu0
      %v2027 = vadd.f32 0.0, %v2026
      %v2028 = vpop.f32.mrb[0].mxu0
      %v2029 = vpop.f32.mrb[0].mxu0
      %v2030 = vadd.f32 0.0, %v2029
      %v2031 = vpop.f32.mrb[0].mxu0
      %2032 = vmatprep.mubr.bf16.mxu0 0
      %2033 = vmatmul.mubr.bf16.gmra.mrb[0].mxu0 %v1885
      %v2034 = vpop.f32.mrb[0].mxu0
      %v2035 = vadd.f32 0.0, %v2034
      %v2036 = vpop.f32.mrb[0].mxu0
      %v2037 = vpop.f32.mrb[0].mxu0
      %v2038 = vadd.f32 0.0, %v2037
      %v2039 = vpop.f32.mrb[0].mxu0
      %2040 = vmatprep.mubr.bf16.mxu0 0
      %2041 = vmatmul.mubr.bf16.gmra.mrb[0].mxu0 %v1888
      %v2042 = vpop.f32.mrb[0].mxu0
      %v2043 = vadd.f32 0.0, %v2042
      %v2044 = vpop.f32.mrb[0].mxu0
      %v2045 = vpop.f32.mrb[0].mxu0
      %v2046 = vadd.f32 0.0, %v2045
      %v2047 = vpop.f32.mrb[0].mxu0
      %2048 = vmatprep.mubr.bf16.mxu0 0
      %2049 = vmatmul.mubr.bf16.gmra.mrb[0].mxu0 %v1891
      %v2050 = vpop.f32.mrb[0].mxu0
      %v2051 = vadd.f32 0.0, %v2050
      %v2052 = vpop.f32.mrb[0].mxu0
      %v2053 = vpop.f32.mrb[0].mxu0
      %v2054 = vadd.f32 0.0, %v2053
      %v2055 = vpop.f32.mrb[0].mxu0
      %2056 = vdwg.mxu0
      %v2057 = vadd.f32 %v1795, %v1931
      %v2058 = vadd.f32 %v1796, %v1934
      %v2059 = vadd.f32 %v1797, %v1939
      %v2060 = vadd.f32 %v1798, %v1942
      %v2061 = vadd.f32 %v1799, %v1947
      %v2062 = vadd.f32 %v1800, %v1950
      %v2063 = vadd.f32 %v1801, %v1955
      %v2064 = vadd.f32 %v1802, %v1958
      %v2065 = vadd.f32 %v1803, %v1963
      %v2066 = vadd.f32 %v1804, %v1966
      %v2067 = vadd.f32 %v1805, %v1971
      %v2068 = vadd.f32 %v1806, %v1974
      %v2069 = vadd.f32 %v1807, %v1979
      %v2070 = vadd.f32 %v1808, %v1982
      %v2071 = vadd.f32 %v1809, %v1987
      %v2072 = vadd.f32 %v1810, %v1990
      %v2073 = vadd.f32 %v1811, %v1995
      %v2074 = vadd.f32 %v1812, %v1998
      %v2075 = vadd.f32 %v1813, %v2003
      %v2076 = vadd.f32 %v1814, %v2006
      %v2077 = vadd.f32 %v1815, %v2011
      %v2078 = vadd.f32 %v1816, %v2014
      %v2079 = vadd.f32 %v1817, %v2019
      %v2080 = vadd.f32 %v1818, %v2022
      %v2081 = vadd.f32 %v1819, %v2027
      %v2082 = vadd.f32 %v1820, %v2030
      %v2083 = vadd.f32 %v1821, %v2035
      %v2084 = vadd.f32 %v1822, %v2038
      %v2085 = vadd.f32 %v1823, %v2043
      %v2086 = vadd.f32 %v1824, %v2046
      %v2087 = vadd.f32 %v1825, %v2051
      %v2088 = vadd.f32 %v1826, %v2054
      %2089 = vst.msk [vmem:[#allocation2] sm:$0xff] %vm499, %v2057
      %2090 = vst.msk [vmem:[#allocation2 + $0x8] sm:$0xff] %vm499, %v2058
      %2091 = vst.msk [vmem:[#allocation2 + $0x10] sm:$0xff] %vm499, %v2059
      %2092 = vst.msk [vmem:[#allocation2 + $0x18] sm:$0xff] %vm499, %v2060
      %2093 = vst.msk [vmem:[#allocation2 + $0x20] sm:$0xff] %vm499, %v2061
      %2094 = vst.msk [vmem:[#allocation2 + $0x28] sm:$0xff] %vm499, %v2062
      %2095 = vst.msk [vmem:[#allocation2 + $0x30] sm:$0xff] %vm499, %v2063
      %2096 = vst.msk [vmem:[#allocation2 + $0x38] sm:$0xff] %vm499, %v2064
      %2097 = vst.msk [vmem:[#allocation2 + $0x40] sm:$0xff] %vm499, %v2065
      %2098 = vst.msk [vmem:[#allocation2 + $0x48] sm:$0xff] %vm499, %v2066
      %2099 = vst.msk [vmem:[#allocation2 + $0x50] sm:$0xff] %vm499, %v2067
      %2100 = vst.msk [vmem:[#allocation2 + $0x58] sm:$0xff] %vm499, %v2068
      %2101 = vst.msk [vmem:[#allocation2 + $0x60] sm:$0xff] %vm499, %v2069
      %2102 = vst.msk [vmem:[#allocation2 + $0x68] sm:$0xff] %vm499, %v2070
      %2103 = vst.msk [vmem:[#allocation2 + $0x70] sm:$0xff] %vm499, %v2071
      %2104 = vst.msk [vmem:[#allocation2 + $0x78] sm:$0xff] %vm499, %v2072
      %2105 = vst.msk [vmem:[#allocation2 + $0x80] sm:$0xff] %vm499, %v2073
      %2106 = vst.msk [vmem:[#allocation2 + $0x88] sm:$0xff] %vm499, %v2074
      %2107 = vst.msk [vmem:[#allocation2 + $0x90] sm:$0xff] %vm499, %v2075
      %2108 = vst.msk [vmem:[#allocation2 + $0x98] sm:$0xff] %vm499, %v2076
      %2109 = vst.msk [vmem:[#allocation2 + $0xa0] sm:$0xff] %vm499, %v2077
      %2110 = vst.msk [vmem:[#allocation2 + $0xa8] sm:$0xff] %vm499, %v2078
      %2111 = vst.msk [vmem:[#allocation2 + $0xb0] sm:$0xff] %vm499, %v2079
      %2112 = vst.msk [vmem:[#allocation2 + $0xb8] sm:$0xff] %vm499, %v2080
      %2113 = vst.msk [vmem:[#allocation2 + $0xc0] sm:$0xff] %vm499, %v2081
      %2114 = vst.msk [vmem:[#allocation2 + $0xc8] sm:$0xff] %vm499, %v2082
      %2115 = vst.msk [vmem:[#allocation2 + $0xd0] sm:$0xff] %vm499, %v2083
      %2116 = vst.msk [vmem:[#allocation2 + $0xd8] sm:$0xff] %vm499, %v2084
      %2117 = vst.msk [vmem:[#allocation2 + $0xe0] sm:$0xff] %vm499, %v2085
      %2118 = vst.msk [vmem:[#allocation2 + $0xe8] sm:$0xff] %vm499, %v2086
      %2119 = vst.msk [vmem:[#allocation2 + $0xf0] sm:$0xff] %vm499, %v2087
      %2120 = vst.msk [vmem:[#allocation2 + $0xf8] sm:$0xff] %vm499, %v2088
      %v2121 = vmax.f32 %v1767, %v1763
      %v2122 = vmax.f32 %v1768, %v1764
      %v2123 = vmax.f32 %v1769, %v1765
      %v2124 = vmax.f32 %v1770, %v1766
      %v2125 = vmax.f32 %v1771, %v1767
      %v2126 = vmax.f32 %v1772, %v1768
      %v2127 = vmax.f32 %v1773, %v1769
      %v2128 = vmax.f32 %v1774, %v1770
      %v2129 = vmax.f32 %v1775, %v1771
      %v2130 = vmax.f32 %v1776, %v1772
      %v2131 = vmax.f32 %v1777, %v1773
      %v2132 = vmax.f32 %v1778, %v1774
      %v2133 = vmax.f32 %v1779, %v1775
      %v2134 = vmax.f32 %v1780, %v1776
      %v2135 = vmax.f32 %v1781, %v1777
      %v2136 = vmax.f32 %v1782, %v1778
      %v2137 = vmax.f32 %v1783, %v1779
      %v2138 = vmax.f32 %v1784, %v1780
      %v2139 = vmax.f32 %v1785, %v1781
      %v2140 = vmax.f32 %v1786, %v1782
      %v2141 = vmax.f32 %v1787, %v1783
      %v2142 = vmax.f32 %v1788, %v1784
      %v2143 = vmax.f32 %v1789, %v1785
      %v2144 = vmax.f32 %v1790, %v1786
      %v2145 = vmax.f32 %v1791, %v1787
      %v2146 = vmax.f32 %v1792, %v1788
      %v2147 = vmax.f32 %v1793, %v1789
      %v2148 = vmax.f32 %v1794, %v1790
      %v2149 = vmax.f32 %v1763, %v1765
      %v2150 = vmax.f32 %v1764, %v1766
      %v2151 = vmax.f32 %v1765, %v2121
      %v2152 = vmax.f32 %v1766, %v2122
      %v2153 = vmax.f32 %v1767, %v2123
      %v2154 = vmax.f32 %v1768, %v2124
      %v2155 = vmax.f32 %v1769, %v2125
      %v2156 = vmax.f32 %v1770, %v2126
      %v2157 = vmax.f32 %v1771, %v2127
      %v2158 = vmax.f32 %v1772, %v2128
      %v2159 = vmax.f32 %v1773, %v2129
      %v2160 = vmax.f32 %v1774, %v2130
      %v2161 = vmax.f32 %v1775, %v2131
      %v2162 = vmax.f32 %v1776, %v2132
      %v2163 = vmax.f32 %v1777, %v2133
      %v2164 = vmax.f32 %v1778, %v2134
      %v2165 = vmax.f32 %v1779, %v2135
      %v2166 = vmax.f32 %v1780, %v2136
      %v2167 = vmax.f32 %v1781, %v2137
      %v2168 = vmax.f32 %v1782, %v2138
      %v2169 = vmax.f32 %v1783, %v2139
      %v2170 = vmax.f32 %v1784, %v2140
      %v2171 = vmax.f32 %v1785, %v2141
      %v2172 = vmax.f32 %v1786, %v2142
      %v2173 = vmax.f32 %v1787, %v2143
      %v2174 = vmax.f32 %v1788, %v2144
      %v2175 = vmax.f32 %v1789, %v2145
      %v2176 = vmax.f32 %v1790, %v2146
      %v2177 = vmax.f32 %v1791, %v2147
      %v2178 = vmax.f32 %v1792, %v2148
      %v2179 = vmax.f32 %v1793, %v1791
      %v2180 = vmax.f32 %v1794, %v1792
      %v2181 = vmax.f32 %v1771, %v1763
      %v2182 = vmax.f32 %v1772, %v1764
      %v2183 = vmax.f32 %v1773, %v1765
      %v2184 = vmax.f32 %v1774, %v1766
      %v2185 = vmax.f32 %v1775, %v1767
      %v2186 = vmax.f32 %v1776, %v1768
      %v2187 = vmax.f32 %v1777, %v1769
      %v2188 = vmax.f32 %v1778, %v1770
      %v2189 = vmax.f32 %v1779, %v1771
      %v2190 = vmax.f32 %v1780, %v1772
      %v2191 = vmax.f32 %v1781, %v1773
      %v2192 = vmax.f32 %v1782, %v1774
      %v2193 = vmax.f32 %v1783, %v1775
      %v2194 = vmax.f32 %v1784, %v1776
      %v2195 = vmax.f32 %v1785, %v1777
      %v2196 = vmax.f32 %v1786, %v1778
      %v2197 = vmax.f32 %v1787, %v1779
      %v2198 = vmax.f32 %v1788, %v1780
      %v2199 = vmax.f32 %v1789, %v1781
      %v2200 = vmax.f32 %v1790, %v1782
      %v2201 = vmax.f32 %v1791, %v1783
      %v2202 = vmax.f32 %v1792, %v1784
      %v2203 = vmax.f32 %v1793, %v1785
      %v2204 = vmax.f32 %v1794, %v1786
      %v2205 = vmax.f32 %v2149, %v1767
      %v2206 = vmax.f32 %v2150, %v1768
      %v2207 = vmax.f32 %v2151, %v1769
      %v2208 = vmax.f32 %v2152, %v1770
      %v2209 = vmax.f32 %v2153, %v2181
      %v2210 = vmax.f32 %v2154, %v2182
      %v2211 = vmax.f32 %v2155, %v2183
      %v2212 = vmax.f32 %v2156, %v2184
      %v2213 = vmax.f32 %v2157, %v2185
      %v2214 = vmax.f32 %v2158, %v2186
      %v2215 = vmax.f32 %v2159, %v2187
      %v2216 = vmax.f32 %v2160, %v2188
      %v2217 = vmax.f32 %v2161, %v2189
      %v2218 = vmax.f32 %v2162, %v2190
      %v2219 = vmax.f32 %v2163, %v2191
      %v2220 = vmax.f32 %v2164, %v2192
      %v2221 = vmax.f32 %v2165, %v2193
      %v2222 = vmax.f32 %v2166, %v2194
      %v2223 = vmax.f32 %v2167, %v2195
      %v2224 = vmax.f32 %v2168, %v2196
      %v2225 = vmax.f32 %v2169, %v2197
      %v2226 = vmax.f32 %v2170, %v2198
      %v2227 = vmax.f32 %v2171, %v2199
      %v2228 = vmax.f32 %v2172, %v2200
      %v2229 = vmax.f32 %v2173, %v2201
      %v2230 = vmax.f32 %v2174, %v2202
      %v2231 = vmax.f32 %v2175, %v2203
      %v2232 = vmax.f32 %v2176, %v2204
      %v2233 = vmax.f32 %v2177, %v1787
      %v2234 = vmax.f32 %v2178, %v1788
      %v2235 = vmax.f32 %v2179, %v1789
      %v2236 = vmax.f32 %v2180, %v1790
      %2237 = vst.msk [vmem:[#allocation3 + $0x2] sm:$0xff] %vm285, %v2205
      %2238 = vst.msk [vmem:[#allocation3 + $0xa] sm:$0xff] %vm285, %v2206
      %2239 = vst.msk [vmem:[#allocation3 + $0x1a] sm:$0xff] %vm285, %v2207
      %2240 = vst.msk [vmem:[#allocation3 + $0x22] sm:$0xff] %vm285, %v2208
      %2241 = vst.msk [vmem:[#allocation3 + $0x32] sm:$0xff] %vm285, %v2209
      %2242 = vst.msk [vmem:[#allocation3 + $0x3a] sm:$0xff] %vm285, %v2210
      %2243 = vst.msk [vmem:[#allocation3 + $0x4a] sm:$0xff] %vm285, %v2211
      %2244 = vst.msk [vmem:[#allocation3 + $0x52] sm:$0xff] %vm285, %v2212
      %2245 = vst.msk [vmem:[#allocation3 + $0x62] sm:$0xff] %vm285, %v2213
      %2246 = vst.msk [vmem:[#allocation3 + $0x6a] sm:$0xff] %vm285, %v2214
      %2247 = vst.msk [vmem:[#allocation3 + $0x7a] sm:$0xff] %vm285, %v2215
      %2248 = vst.msk [vmem:[#allocation3 + $0x82] sm:$0xff] %vm285, %v2216
      %2249 = vst.msk [vmem:[#allocation3 + $0x92] sm:$0xff] %vm285, %v2217
      %2250 = vst.msk [vmem:[#allocation3 + $0x9a] sm:$0xff] %vm285, %v2218
      %2251 = vst.msk [vmem:[#allocation3 + $0xaa] sm:$0xff] %vm285, %v2219
      %2252 = vst.msk [vmem:[#allocation3 + $0xb2] sm:$0xff] %vm285, %v2220
      %2253 = vst.msk [vmem:[#allocation3 + $0xc2] sm:$0xff] %vm285, %v2221
      %2254 = vst.msk [vmem:[#allocation3 + $0xca] sm:$0xff] %vm285, %v2222
      %2255 = vst.msk [vmem:[#allocation3 + $0xda] sm:$0xff] %vm285, %v2223
      %2256 = vst.msk [vmem:[#allocation3 + $0xe2] sm:$0xff] %vm285, %v2224
      %2257 = vst.msk [vmem:[#allocation3 + $0xf2] sm:$0xff] %vm285, %v2225
      %2258 = vst.msk [vmem:[#allocation3 + $0xfa] sm:$0xff] %vm285, %v2226
      %2259 = vst.msk [vmem:[#allocation3 + $0x10a] sm:$0xff] %vm285, %v2227
      %2260 = vst.msk [vmem:[#allocation3 + $0x112] sm:$0xff] %vm285, %v2228
      %2261 = vst.msk [vmem:[#allocation3 + $0x122] sm:$0xff] %vm285, %v2229
      %2262 = vst.msk [vmem:[#allocation3 + $0x12a] sm:$0xff] %vm285, %v2230
      %2263 = vst.msk [vmem:[#allocation3 + $0x13a] sm:$0xff] %vm285, %v2231
      %2264 = vst.msk [vmem:[#allocation3 + $0x142] sm:$0xff] %vm285, %v2232
      %2265 = vst.msk [vmem:[#allocation3 + $0x152] sm:$0xff] %vm285, %v2233
      %2266 = vst.msk [vmem:[#allocation3 + $0x15a] sm:$0xff] %vm285, %v2234
      %2267 = vst.msk [vmem:[#allocation3 + $0x16a] sm:$0xff] %vm285, %v2235
      %2268 = vst.msk [vmem:[#allocation3 + $0x172] sm:$0xff] %vm285, %v2236
      %v2269 = vld [vmem:[#allocation3] sm:$0xff]
      %v2270 = vld [vmem:[#allocation3 + $0x8] sm:$0xff]
      %v2271 = vld [vmem:[#allocation3 + $0x18] sm:$0xff]
      %v2272 = vld [vmem:[#allocation3 + $0x20] sm:$0xff]
      %v2273 = vld [vmem:[#allocation3 + $0x30] sm:$0xff]
      %v2274 = vld [vmem:[#allocation3 + $0x38] sm:$0xff]
      %v2275 = vld [vmem:[#allocation3 + $0x48] sm:$0xff]
      %v2276 = vld [vmem:[#allocation3 + $0x50] sm:$0xff]
      %v2277 = vld [vmem:[#allocation3 + $0x60] sm:$0xff]
      %v2278 = vld [vmem:[#allocation3 + $0x68] sm:$0xff]
      %v2279 = vld [vmem:[#allocation3 + $0x78] sm:$0xff]
      %v2280 = vld [vmem:[#allocation3 + $0x80] sm:$0xff]
      %v2281 = vld [vmem:[#allocation3 + $0x90] sm:$0xff]
      %v2282 = vld [vmem:[#allocation3 + $0x98] sm:$0xff]
      %v2283 = vld [vmem:[#allocation3 + $0xa8] sm:$0xff]
      %v2284 = vld [vmem:[#allocation3 + $0xb0] sm:$0xff]
      %v2285 = vld [vmem:[#allocation3 + $0xc0] sm:$0xff]
      %v2286 = vld [vmem:[#allocation3 + $0xc8] sm:$0xff]
      %v2287 = vld [vmem:[#allocation3 + $0xd8] sm:$0xff]
      %v2288 = vld [vmem:[#allocation3 + $0xe0] sm:$0xff]
      %v2289 = vld [vmem:[#allocation3 + $0xf0] sm:$0xff]
      %v2290 = vld [vmem:[#allocation3 + $0xf8] sm:$0xff]
      %v2291 = vld [vmem:[#allocation3 + $0x108] sm:$0xff]
      %v2292 = vld [vmem:[#allocation3 + $0x110] sm:$0xff]
      %v2293 = vld [vmem:[#allocation3 + $0x120] sm:$0xff]
      %v2294 = vld [vmem:[#allocation3 + $0x128] sm:$0xff]
      %v2295 = vld [vmem:[#allocation3 + $0x138] sm:$0xff]
      %v2296 = vld [vmem:[#allocation3 + $0x140] sm:$0xff]
      %v2297 = vld [vmem:[#allocation3 + $0x150] sm:$0xff]
      %v2298 = vld [vmem:[#allocation3 + $0x158] sm:$0xff]
      %v2299 = vld [vmem:[#allocation3 + $0x168] sm:$0xff]
      %v2300 = vld [vmem:[#allocation3 + $0x170] sm:$0xff]
      %v2301 = vld [vmem:[#allocation3 + $0x1] sm:$0xff]
      %v2302 = vld [vmem:[#allocation3 + $0x9] sm:$0xff]
      %v2303 = vld [vmem:[#allocation3 + $0x19] sm:$0xff]
      %v2304 = vld [vmem:[#allocation3 + $0x21] sm:$0xff]
      %v2305 = vld [vmem:[#allocation3 + $0x31] sm:$0xff]
      %v2306 = vld [vmem:[#allocation3 + $0x39] sm:$0xff]
      %v2307 = vld [vmem:[#allocation3 + $0x49] sm:$0xff]
      %v2308 = vld [vmem:[#allocation3 + $0x51] sm:$0xff]
      %v2309 = vld [vmem:[#allocation3 + $0x61] sm:$0xff]
      %v2310 = vld [vmem:[#allocation3 + $0x69] sm:$0xff]
      %v2311 = vld [vmem:[#allocation3 + $0x79] sm:$0xff]
      %v2312 = vld [vmem:[#allocation3 + $0x81] sm:$0xff]
      %v2313 = vld [vmem:[#allocation3 + $0x91] sm:$0xff]
      %v2314 = vld [vmem:[#allocation3 + $0x99] sm:$0xff]
      %v2315 = vld [vmem:[#allocation3 + $0xa9] sm:$0xff]
      %v2316 = vld [vmem:[#allocation3 + $0xb1] sm:$0xff]
      %v2317 = vld [vmem:[#allocation3 + $0xc1] sm:$0xff]
      %v2318 = vld [vmem:[#allocation3 + $0xc9] sm:$0xff]
      %v2319 = vld [vmem:[#allocation3 + $0xd9] sm:$0xff]
      %v2320 = vld [vmem:[#allocation3 + $0xe1] sm:$0xff]
      %v2321 = vld [vmem:[#allocation3 + $0xf1] sm:$0xff]
      %v2322 = vld [vmem:[#allocation3 + $0xf9] sm:$0xff]
      %v2323 = vld [vmem:[#allocation3 + $0x109] sm:$0xff]
      %v2324 = vld [vmem:[#allocation3 + $0x111] sm:$0xff]
      %v2325 = vld [vmem:[#allocation3 + $0x121] sm:$0xff]
      %v2326 = vld [vmem:[#allocation3 + $0x129] sm:$0xff]
      %v2327 = vld [vmem:[#allocation3 + $0x139] sm:$0xff]
      %v2328 = vld [vmem:[#allocation3 + $0x141] sm:$0xff]
      %v2329 = vld [vmem:[#allocation3 + $0x151] sm:$0xff]
      %v2330 = vld [vmem:[#allocation3 + $0x159] sm:$0xff]
      %v2331 = vld [vmem:[#allocation3 + $0x169] sm:$0xff]
      %v2332 = vld [vmem:[#allocation3 + $0x171] sm:$0xff]
      %v2333 = vmax.f32 %v2269, %v2301
      %v2334 = vmax.f32 %v2270, %v2302
      %v2335 = vmax.f32 %v2271, %v2303
      %v2336 = vmax.f32 %v2272, %v2304
      %v2337 = vmax.f32 %v2273, %v2305
      %v2338 = vmax.f32 %v2274, %v2306
      %v2339 = vmax.f32 %v2275, %v2307
      %v2340 = vmax.f32 %v2276, %v2308
      %v2341 = vmax.f32 %v2277, %v2309
      %v2342 = vmax.f32 %v2278, %v2310
      %v2343 = vmax.f32 %v2279, %v2311
      %v2344 = vmax.f32 %v2280, %v2312
      %v2345 = vmax.f32 %v2281, %v2313
      %v2346 = vmax.f32 %v2282, %v2314
      %v2347 = vmax.f32 %v2283, %v2315
      %v2348 = vmax.f32 %v2284, %v2316
      %v2349 = vmax.f32 %v2285, %v2317
      %v2350 = vmax.f32 %v2286, %v2318
      %v2351 = vmax.f32 %v2287, %v2319
      %v2352 = vmax.f32 %v2288, %v2320
      %v2353 = vmax.f32 %v2289, %v2321
      %v2354 = vmax.f32 %v2290, %v2322
      %v2355 = vmax.f32 %v2291, %v2323
      %v2356 = vmax.f32 %v2292, %v2324
      %v2357 = vmax.f32 %v2293, %v2325
      %v2358 = vmax.f32 %v2294, %v2326
      %v2359 = vmax.f32 %v2295, %v2327
      %v2360 = vmax.f32 %v2296, %v2328
      %v2361 = vmax.f32 %v2297, %v2329
      %v2362 = vmax.f32 %v2298, %v2330
      %v2363 = vmax.f32 %v2299, %v2331
      %v2364 = vmax.f32 %v2300, %v2332
      %v2365 = vld [vmem:[#allocation3 + $0x2] sm:$0xff]
      %v2366 = vld [vmem:[#allocation3 + $0xa] sm:$0xff]
      %v2367 = vld [vmem:[#allocation3 + $0x1a] sm:$0xff]
      %v2368 = vld [vmem:[#allocation3 + $0x22] sm:$0xff]
      %v2369 = vld [vmem:[#allocation3 + $0x32] sm:$0xff]
      %v2370 = vld [vmem:[#allocation3 + $0x3a] sm:$0xff]
      %v2371 = vld [vmem:[#allocation3 + $0x4a] sm:$0xff]
      %v2372 = vld [vmem:[#allocation3 + $0x52] sm:$0xff]
      %v2373 = vld [vmem:[#allocation3 + $0x62] sm:$0xff]
      %v2374 = vld [vmem:[#allocation3 + $0x6a] sm:$0xff]
      %v2375 = vld [vmem:[#allocation3 + $0x7a] sm:$0xff]
      %v2376 = vld [vmem:[#allocation3 + $0x82] sm:$0xff]
      %v2377 = vld [vmem:[#allocation3 + $0x92] sm:$0xff]
      %v2378 = vld [vmem:[#allocation3 + $0x9a] sm:$0xff]
      %v2379 = vld [vmem:[#allocation3 + $0xaa] sm:$0xff]
      %v2380 = vld [vmem:[#allocation3 + $0xb2] sm:$0xff]
      %v2381 = vld [vmem:[#allocation3 + $0xc2] sm:$0xff]
      %v2382 = vld [vmem:[#allocation3 + $0xca] sm:$0xff]
      %v2383 = vld [vmem:[#allocation3 + $0xda] sm:$0xff]
      %v2384 = vld [vmem:[#allocation3 + $0xe2] sm:$0xff]
      %v2385 = vld [vmem:[#allocation3 + $0xf2] sm:$0xff]
      %v2386 = vld [vmem:[#allocation3 + $0xfa] sm:$0xff]
      %v2387 = vld [vmem:[#allocation3 + $0x10a] sm:$0xff]
      %v2388 = vld [vmem:[#allocation3 + $0x112] sm:$0xff]
      %v2389 = vld [vmem:[#allocation3 + $0x122] sm:$0xff]
      %v2390 = vld [vmem:[#allocation3 + $0x12a] sm:$0xff]
      %v2391 = vld [vmem:[#allocation3 + $0x13a] sm:$0xff]
      %v2392 = vld [vmem:[#allocation3 + $0x142] sm:$0xff]
      %v2393 = vld [vmem:[#allocation3 + $0x152] sm:$0xff]
      %v2394 = vld [vmem:[#allocation3 + $0x15a] sm:$0xff]
      %v2395 = vld [vmem:[#allocation3 + $0x16a] sm:$0xff]
      %v2396 = vld [vmem:[#allocation3 + $0x172] sm:$0xff]
      %v2397 = vmax.f32 %v2333, %v2365
      %v2398 = vmax.f32 %v2334, %v2366
      %v2399 = vmax.f32 %v2335, %v2367
      %v2400 = vmax.f32 %v2336, %v2368
      %v2401 = vmax.f32 %v2337, %v2369
      %v2402 = vmax.f32 %v2338, %v2370
      %v2403 = vmax.f32 %v2339, %v2371
      %v2404 = vmax.f32 %v2340, %v2372
      %v2405 = vmax.f32 %v2341, %v2373
      %v2406 = vmax.f32 %v2342, %v2374
      %v2407 = vmax.f32 %v2343, %v2375
      %v2408 = vmax.f32 %v2344, %v2376
      %v2409 = vmax.f32 %v2345, %v2377
      %v2410 = vmax.f32 %v2346, %v2378
      %v2411 = vmax.f32 %v2347, %v2379
      %v2412 = vmax.f32 %v2348, %v2380
      %v2413 = vmax.f32 %v2349, %v2381
      %v2414 = vmax.f32 %v2350, %v2382
      %v2415 = vmax.f32 %v2351, %v2383
      %v2416 = vmax.f32 %v2352, %v2384
      %v2417 = vmax.f32 %v2353, %v2385
      %v2418 = vmax.f32 %v2354, %v2386
      %v2419 = vmax.f32 %v2355, %v2387
      %v2420 = vmax.f32 %v2356, %v2388
      %v2421 = vmax.f32 %v2357, %v2389
      %v2422 = vmax.f32 %v2358, %v2390
      %v2423 = vmax.f32 %v2359, %v2391
      %v2424 = vmax.f32 %v2360, %v2392
      %v2425 = vmax.f32 %v2361, %v2393
      %v2426 = vmax.f32 %v2362, %v2394
      %v2427 = vmax.f32 %v2363, %v2395
      %v2428 = vmax.f32 %v2364, %v2396
      %v2429 = vld [vmem:[#allocation3 + $0x3] sm:$0xff]
      %v2430 = vld [vmem:[#allocation3 + $0xb] sm:$0xff]
      %v2431 = vld [vmem:[#allocation3 + $0x1b] sm:$0xff]
      %v2432 = vld [vmem:[#allocation3 + $0x23] sm:$0xff]
      %v2433 = vld [vmem:[#allocation3 + $0x33] sm:$0xff]
      %v2434 = vld [vmem:[#allocation3 + $0x3b] sm:$0xff]
      %v2435 = vld [vmem:[#allocation3 + $0x4b] sm:$0xff]
      %v2436 = vld [vmem:[#allocation3 + $0x53] sm:$0xff]
      %v2437 = vld [vmem:[#allocation3 + $0x63] sm:$0xff]
      %v2438 = vld [vmem:[#allocation3 + $0x6b] sm:$0xff]
      %v2439 = vld [vmem:[#allocation3 + $0x7b] sm:$0xff]
      %v2440 = vld [vmem:[#allocation3 + $0x83] sm:$0xff]
      %v2441 = vld [vmem:[#allocation3 + $0x93] sm:$0xff]
      %v2442 = vld [vmem:[#allocation3 + $0x9b] sm:$0xff]
      %v2443 = vld [vmem:[#allocation3 + $0xab] sm:$0xff]
      %v2444 = vld [vmem:[#allocation3 + $0xb3] sm:$0xff]
      %v2445 = vld [vmem:[#allocation3 + $0xc3] sm:$0xff]
      %v2446 = vld [vmem:[#allocation3 + $0xcb] sm:$0xff]
      %v2447 = vld [vmem:[#allocation3 + $0xdb] sm:$0xff]
      %v2448 = vld [vmem:[#allocation3 + $0xe3] sm:$0xff]
      %v2449 = vld [vmem:[#allocation3 + $0xf3] sm:$0xff]
      %v2450 = vld [vmem:[#allocation3 + $0xfb] sm:$0xff]
      %v2451 = vld [vmem:[#allocation3 + $0x10b] sm:$0xff]
      %v2452 = vld [vmem:[#allocation3 + $0x113] sm:$0xff]
      %v2453 = vld [vmem:[#allocation3 + $0x123] sm:$0xff]
      %v2454 = vld [vmem:[#allocation3 + $0x12b] sm:$0xff]
      %v2455 = vld [vmem:[#allocation3 + $0x13b] sm:$0xff]
      %v2456 = vld [vmem:[#allocation3 + $0x143] sm:$0xff]
      %v2457 = vld [vmem:[#allocation3 + $0x153] sm:$0xff]
      %v2458 = vld [vmem:[#allocation3 + $0x15b] sm:$0xff]
      %v2459 = vld [vmem:[#allocation3 + $0x16b] sm:$0xff]
      %v2460 = vld [vmem:[#allocation3 + $0x173] sm:$0xff]
      %v2461 = vmax.f32 %v2397, %v2429
      %v2462 = vmax.f32 %v2398, %v2430
      %v2463 = vmax.f32 %v2399, %v2431
      %v2464 = vmax.f32 %v2400, %v2432
      %v2465 = vmax.f32 %v2401, %v2433
      %v2466 = vmax.f32 %v2402, %v2434
      %v2467 = vmax.f32 %v2403, %v2435
      %v2468 = vmax.f32 %v2404, %v2436
      %v2469 = vmax.f32 %v2405, %v2437
      %v2470 = vmax.f32 %v2406, %v2438
      %v2471 = vmax.f32 %v2407, %v2439
      %v2472 = vmax.f32 %v2408, %v2440
      %v2473 = vmax.f32 %v2409, %v2441
      %v2474 = vmax.f32 %v2410, %v2442
      %v2475 = vmax.f32 %v2411, %v2443
      %v2476 = vmax.f32 %v2412, %v2444
      %v2477 = vmax.f32 %v2413, %v2445
      %v2478 = vmax.f32 %v2414, %v2446
      %v2479 = vmax.f32 %v2415, %v2447
      %v2480 = vmax.f32 %v2416, %v2448
      %v2481 = vmax.f32 %v2417, %v2449
      %v2482 = vmax.f32 %v2418, %v2450
      %v2483 = vmax.f32 %v2419, %v2451
      %v2484 = vmax.f32 %v2420, %v2452
      %v2485 = vmax.f32 %v2421, %v2453
      %v2486 = vmax.f32 %v2422, %v2454
      %v2487 = vmax.f32 %v2423, %v2455
      %v2488 = vmax.f32 %v2424, %v2456
      %v2489 = vmax.f32 %v2425, %v2457
      %v2490 = vmax.f32 %v2426, %v2458
      %v2491 = vmax.f32 %v2427, %v2459
      %v2492 = vmax.f32 %v2428, %v2460
      %v2493 = vld [vmem:[#allocation3 + $0x4] sm:$0xff]
      %v2494 = vld [vmem:[#allocation3 + $0xc] sm:$0xff]
      %v2495 = vld [vmem:[#allocation3 + $0x1c] sm:$0xff]
      %v2496 = vld [vmem:[#allocation3 + $0x24] sm:$0xff]
      %v2497 = vld [vmem:[#allocation3 + $0x34] sm:$0xff]
      %v2498 = vld [vmem:[#allocation3 + $0x3c] sm:$0xff]
      %v2499 = vld [vmem:[#allocation3 + $0x4c] sm:$0xff]
      %v2500 = vld [vmem:[#allocation3 + $0x54] sm:$0xff]
      %v2501 = vld [vmem:[#allocation3 + $0x64] sm:$0xff]
      %v2502 = vld [vmem:[#allocation3 + $0x6c] sm:$0xff]
      %v2503 = vld [vmem:[#allocation3 + $0x7c] sm:$0xff]
      %v2504 = vld [vmem:[#allocation3 + $0x84] sm:$0xff]
      %v2505 = vld [vmem:[#allocation3 + $0x94] sm:$0xff]
      %v2506 = vld [vmem:[#allocation3 + $0x9c] sm:$0xff]
      %v2507 = vld [vmem:[#allocation3 + $0xac] sm:$0xff]
      %v2508 = vld [vmem:[#allocation3 + $0xb4] sm:$0xff]
      %v2509 = vld [vmem:[#allocation3 + $0xc4] sm:$0xff]
      %v2510 = vld [vmem:[#allocation3 + $0xcc] sm:$0xff]
      %v2511 = vld [vmem:[#allocation3 + $0xdc] sm:$0xff]
      %v2512 = vld [vmem:[#allocation3 + $0xe4] sm:$0xff]
      %v2513 = vld [vmem:[#allocation3 + $0xf4] sm:$0xff]
      %v2514 = vld [vmem:[#allocation3 + $0xfc] sm:$0xff]
      %v2515 = vld [vmem:[#allocation3 + $0x10c] sm:$0xff]
      %v2516 = vld [vmem:[#allocation3 + $0x114] sm:$0xff]
      %v2517 = vld [vmem:[#allocation3 + $0x124] sm:$0xff]
      %v2518 = vld [vmem:[#allocation3 + $0x12c] sm:$0xff]
      %v2519 = vld [vmem:[#allocation3 + $0x13c] sm:$0xff]
      %v2520 = vld [vmem:[#allocation3 + $0x144] sm:$0xff]
      %v2521 = vld [vmem:[#allocation3 + $0x154] sm:$0xff]
      %v2522 = vld [vmem:[#allocation3 + $0x15c] sm:$0xff]
      %v2523 = vld [vmem:[#allocation3 + $0x16c] sm:$0xff]
      %v2524 = vld [vmem:[#allocation3 + $0x174] sm:$0xff]
      %v2525 = vmax.f32 %v2461, %v2493
      %v2526 = vmax.f32 %v2462, %v2494
      %v2527 = vmax.f32 %v2463, %v2495
      %v2528 = vmax.f32 %v2464, %v2496
      %v2529 = vmax.f32 %v2465, %v2497
      %v2530 = vmax.f32 %v2466, %v2498
      %v2531 = vmax.f32 %v2467, %v2499
      %v2532 = vmax.f32 %v2468, %v2500
      %v2533 = vmax.f32 %v2469, %v2501
      %v2534 = vmax.f32 %v2470, %v2502
      %v2535 = vmax.f32 %v2471, %v2503
      %v2536 = vmax.f32 %v2472, %v2504
      %v2537 = vmax.f32 %v2473, %v2505
      %v2538 = vmax.f32 %v2474, %v2506
      %v2539 = vmax.f32 %v2475, %v2507
      %v2540 = vmax.f32 %v2476, %v2508
      %v2541 = vmax.f32 %v2477, %v2509
      %v2542 = vmax.f32 %v2478, %v2510
      %v2543 = vmax.f32 %v2479, %v2511
      %v2544 = vmax.f32 %v2480, %v2512
      %v2545 = vmax.f32 %v2481, %v2513
      %v2546 = vmax.f32 %v2482, %v2514
      %v2547 = vmax.f32 %v2483, %v2515
      %v2548 = vmax.f32 %v2484, %v2516
      %v2549 = vmax.f32 %v2485, %v2517
      %v2550 = vmax.f32 %v2486, %v2518
      %v2551 = vmax.f32 %v2487, %v2519
      %v2552 = vmax.f32 %v2488, %v2520
      %v2553 = vmax.f32 %v2489, %v2521
      %v2554 = vmax.f32 %v2490, %v2522
      %v2555 = vmax.f32 %v2491, %v2523
      %v2556 = vmax.f32 %v2492, %v2524
      %v2557 = vld [vmem:[#allocation2] sm:$0xff]
      %v2558 = vld [vmem:[#allocation2 + $0x8] sm:$0xff]
      %v2559 = vld [vmem:[#allocation2 + $0x10] sm:$0xff]
      %v2560 = vld [vmem:[#allocation2 + $0x18] sm:$0xff]
      %v2561 = vld [vmem:[#allocation2 + $0x20] sm:$0xff]
      %v2562 = vld [vmem:[#allocation2 + $0x28] sm:$0xff]
      %v2563 = vld [vmem:[#allocation2 + $0x30] sm:$0xff]
      %v2564 = vld [vmem:[#allocation2 + $0x38] sm:$0xff]
      %v2565 = vld [vmem:[#allocation2 + $0x40] sm:$0xff]
      %v2566 = vld [vmem:[#allocation2 + $0x48] sm:$0xff]
      %v2567 = vld [vmem:[#allocation2 + $0x50] sm:$0xff]
      %v2568 = vld [vmem:[#allocation2 + $0x58] sm:$0xff]
      %v2569 = vld [vmem:[#allocation2 + $0x60] sm:$0xff]
      %v2570 = vld [vmem:[#allocation2 + $0x68] sm:$0xff]
      %v2571 = vld [vmem:[#allocation2 + $0x70] sm:$0xff]
      %v2572 = vld [vmem:[#allocation2 + $0x78] sm:$0xff]
      %v2573 = vld [vmem:[#allocation2 + $0x80] sm:$0xff]
      %v2574 = vld [vmem:[#allocation2 + $0x88] sm:$0xff]
      %v2575 = vld [vmem:[#allocation2 + $0x90] sm:$0xff]
      %v2576 = vld [vmem:[#allocation2 + $0x98] sm:$0xff]
      %v2577 = vld [vmem:[#allocation2 + $0xa0] sm:$0xff]
      %v2578 = vld [vmem:[#allocation2 + $0xa8] sm:$0xff]
      %v2579 = vld [vmem:[#allocation2 + $0xb0] sm:$0xff]
      %v2580 = vld [vmem:[#allocation2 + $0xb8] sm:$0xff]
      %v2581 = vld [vmem:[#allocation2 + $0xc0] sm:$0xff]
      %v2582 = vld [vmem:[#allocation2 + $0xc8] sm:$0xff]
      %v2583 = vld [vmem:[#allocation2 + $0xd0] sm:$0xff]
      %v2584 = vld [vmem:[#allocation2 + $0xd8] sm:$0xff]
      %v2585 = vld [vmem:[#allocation2 + $0xe0] sm:$0xff]
      %v2586 = vld [vmem:[#allocation2 + $0xe8] sm:$0xff]
      %v2587 = vld [vmem:[#allocation2 + $0xf0] sm:$0xff]
      %v2588 = vld [vmem:[#allocation2 + $0xf8] sm:$0xff]
      %v2589 = vpack.c.bf16 %v2526, %v2525
      %v2590 = vpack.c.bf16 %v2528, %v2527
      %v2591 = vpack.c.bf16 %v2530, %v2529
      %v2592 = vpack.c.bf16 %v2532, %v2531
      %v2593 = vpack.c.bf16 %v2534, %v2533
      %v2594 = vpack.c.bf16 %v2536, %v2535
      %v2595 = vpack.c.bf16 %v2538, %v2537
      %v2596 = vpack.c.bf16 %v2540, %v2539
      %v2597 = vpack.c.bf16 %v2542, %v2541
      %v2598 = vpack.c.bf16 %v2544, %v2543
      %v2599 = vpack.c.bf16 %v2546, %v2545
      %v2600 = vpack.c.bf16 %v2548, %v2547
      %v2601 = vpack.c.bf16 %v2550, %v2549
      %v2602 = vpack.c.bf16 %v2552, %v2551
      %v2603 = vpack.c.bf16 %v2554, %v2553
      %v2604 = vpack.c.bf16 %v2556, %v2555
      %s2605 = scalar_lea.vmem %s1, 6
      %v2606 = vld [vmem:[%s2605] sm:$0x3]
      %v2608 = vsel %vm285, %v2589, 0
      %v2611 = vsel %vm285, %v2590, 0
      %v2614 = vsel %vm285, %v2591, 0
      %v2617 = vsel %vm285, %v2592, 0
      %v2620 = vsel %vm285, %v2593, 0
      %v2623 = vsel %vm285, %v2594, 0
      %v2626 = vsel %vm285, %v2595, 0
      %v2629 = vsel %vm285, %v2596, 0
      %v2632 = vsel %vm285, %v2597, 0
      %v2635 = vsel %vm285, %v2598, 0
      %v2638 = vsel %vm285, %v2599, 0
      %v2641 = vsel %vm285, %v2600, 0
      %v2644 = vsel %vm285, %v2601, 0
      %v2647 = vsel %vm285, %v2602, 0
      %v2650 = vsel %vm285, %v2603, 0
      %v2653 = vsel %vm285, %v2604, 0
      %v2656 = vsel %vm334, %v2606, 0
      %2658 = vmatprep.subr.bf16.mxu0 0
      %2659 = vmatpush1.bf16.msra.mxu0 %v2656
      %2660 = vmatprep.subr.bf16.mxu0 0
      %2661 = vmatpush1.bf16.msra.mxu0 0
      %2662 = vmatprep.subr.bf16.mxu0 0
      %2663 = vmatpush1.bf16.msra.mxu0 0
      %2664 = vmatprep.subr.bf16.mxu0 0
      %2665 = vmatpush1.bf16.msra.mxu0 0
      %2666 = vmatprep.subr.bf16.mxu0 0
      %2667 = vmatpush1.bf16.msra.mxu0 0
      %2668 = vmatprep.subr.bf16.mxu0 0
      %2669 = vmatpush1.bf16.msra.mxu0 0
      %2670 = vmatprep.subr.bf16.mxu0 0
      %2671 = vmatpush1.bf16.msra.mxu0 0
      %2672 = vmatprep.subr.bf16.mxu0 0
      %2673 = vmatpush1.bf16.msra.mxu0 0
      %2674 = vmatprep.subr.bf16.mxu0 0
      %2675 = vmatpush1.bf16.msra.mxu0 0
      %2676 = vmatprep.subr.bf16.mxu0 0
      %2677 = vmatpush1.bf16.msra.mxu0 0
      %2678 = vmatprep.subr.bf16.mxu0 0
      %2679 = vmatpush1.bf16.msra.mxu0 0
      %2680 = vmatprep.subr.bf16.mxu0 0
      %2681 = vmatpush1.bf16.msra.mxu0 0
      %2682 = vmatprep.subr.bf16.mxu0 0
      %2683 = vmatpush1.bf16.msra.mxu0 0
      %2684 = vmatprep.subr.bf16.mxu0 0
      %2685 = vmatpush1.bf16.msra.mxu0 0
      %2686 = vmatprep.subr.bf16.mxu0 0
      %2687 = vmatpush1.bf16.msra.mxu0 0
      %2688 = vmatprep.subr.bf16.mxu0 0
      %2689 = vmatpush1.bf16.msra.mxu0 0
      %2690 = vmatprep.mubr.bf16.mxu0 0
      %2691 = vmatmul.mubr.bf16.gmra.mrb[0].mxu0 %v2608
      %v2692 = vpop.f32.mrb[0].mxu0
      %v2693 = vadd.f32 0.0, %v2692
      %v2694 = vpop.f32.mrb[0].mxu0
      %v2695 = vpop.f32.mrb[0].mxu0
      %v2696 = vadd.f32 0.0, %v2695
      %v2697 = vpop.f32.mrb[0].mxu0
      %2698 = vmatprep.mubr.bf16.mxu0 0
      %2699 = vmatmul.mubr.bf16.gmra.mrb[0].mxu0 %v2611
      %v2700 = vpop.f32.mrb[0].mxu0
      %v2701 = vadd.f32 0.0, %v2700
      %v2702 = vpop.f32.mrb[0].mxu0
      %v2703 = vpop.f32.mrb[0].mxu0
      %v2704 = vadd.f32 0.0, %v2703
      %v2705 = vpop.f32.mrb[0].mxu0
      %2706 = vmatprep.mubr.bf16.mxu0 0
      %2707 = vmatmul.mubr.bf16.gmra.mrb[0].mxu0 %v2614
      %v2708 = vpop.f32.mrb[0].mxu0
      %v2709 = vadd.f32 0.0, %v2708
      %v2710 = vpop.f32.mrb[0].mxu0
      %v2711 = vpop.f32.mrb[0].mxu0
      %v2712 = vadd.f32 0.0, %v2711
      %v2713 = vpop.f32.mrb[0].mxu0
      %2714 = vmatprep.mubr.bf16.mxu0 0
      %2715 = vmatmul.mubr.bf16.gmra.mrb[0].mxu0 %v2617
      %v2716 = vpop.f32.mrb[0].mxu0
      %v2717 = vadd.f32 0.0, %v2716
      %v2718 = vpop.f32.mrb[0].mxu0
      %v2719 = vpop.f32.mrb[0].mxu0
      %v2720 = vadd.f32 0.0, %v2719
      %v2721 = vpop.f32.mrb[0].mxu0
      %2722 = vmatprep.mubr.bf16.mxu0 0
      %2723 = vmatmul.mubr.bf16.gmra.mrb[0].mxu0 %v2620
      %v2724 = vpop.f32.mrb[0].mxu0
      %v2725 = vadd.f32 0.0, %v2724
      %v2726 = vpop.f32.mrb[0].mxu0
      %v2727 = vpop.f32.mrb[0].mxu0
      %v2728 = vadd.f32 0.0, %v2727
      %v2729 = vpop.f32.mrb[0].mxu0
      %2730 = vmatprep.mubr.bf16.mxu0 0
      %2731 = vmatmul.mubr.bf16.gmra.mrb[0].mxu0 %v2623
      %v2732 = vpop.f32.mrb[0].mxu0
      %v2733 = vadd.f32 0.0, %v2732
      %v2734 = vpop.f32.mrb[0].mxu0
      %v2735 = vpop.f32.mrb[0].mxu0
      %v2736 = vadd.f32 0.0, %v2735
      %v2737 = vpop.f32.mrb[0].mxu0
      %2738 = vmatprep.mubr.bf16.mxu0 0
      %2739 = vmatmul.mubr.bf16.gmra.mrb[0].mxu0 %v2626
      %v2740 = vpop.f32.mrb[0].mxu0
      %v2741 = vadd.f32 0.0, %v2740
      %v2742 = vpop.f32.mrb[0].mxu0
      %v2743 = vpop.f32.mrb[0].mxu0
      %v2744 = vadd.f32 0.0, %v2743
      %v2745 = vpop.f32.mrb[0].mxu0
      %2746 = vmatprep.mubr.bf16.mxu0 0
      %2747 = vmatmul.mubr.bf16.gmra.mrb[0].mxu0 %v2629
      %v2748 = vpop.f32.mrb[0].mxu0
      %v2749 = vadd.f32 0.0, %v2748
      %v2750 = vpop.f32.mrb[0].mxu0
      %v2751 = vpop.f32.mrb[0].mxu0
      %v2752 = vadd.f32 0.0, %v2751
      %v2753 = vpop.f32.mrb[0].mxu0
      %2754 = vmatprep.mubr.bf16.mxu0 0
      %2755 = vmatmul.mubr.bf16.gmra.mrb[0].mxu0 %v2632
      %v2756 = vpop.f32.mrb[0].mxu0
      %v2757 = vadd.f32 0.0, %v2756
      %v2758 = vpop.f32.mrb[0].mxu0
      %v2759 = vpop.f32.mrb[0].mxu0
      %v2760 = vadd.f32 0.0, %v2759
      %v2761 = vpop.f32.mrb[0].mxu0
      %2762 = vmatprep.mubr.bf16.mxu0 0
      %2763 = vmatmul.mubr.bf16.gmra.mrb[0].mxu0 %v2635
      %v2764 = vpop.f32.mrb[0].mxu0
      %v2765 = vadd.f32 0.0, %v2764
      %v2766 = vpop.f32.mrb[0].mxu0
      %v2767 = vpop.f32.mrb[0].mxu0
      %v2768 = vadd.f32 0.0, %v2767
      %v2769 = vpop.f32.mrb[0].mxu0
      %2770 = vmatprep.mubr.bf16.mxu0 0
      %2771 = vmatmul.mubr.bf16.gmra.mrb[0].mxu0 %v2638
      %v2772 = vpop.f32.mrb[0].mxu0
      %v2773 = vadd.f32 0.0, %v2772
      %v2774 = vpop.f32.mrb[0].mxu0
      %v2775 = vpop.f32.mrb[0].mxu0
      %v2776 = vadd.f32 0.0, %v2775
      %v2777 = vpop.f32.mrb[0].mxu0
      %2778 = vmatprep.mubr.bf16.mxu0 0
      %2779 = vmatmul.mubr.bf16.gmra.mrb[0].mxu0 %v2641
      %v2780 = vpop.f32.mrb[0].mxu0
      %v2781 = vadd.f32 0.0, %v2780
      %v2782 = vpop.f32.mrb[0].mxu0
      %v2783 = vpop.f32.mrb[0].mxu0
      %v2784 = vadd.f32 0.0, %v2783
      %v2785 = vpop.f32.mrb[0].mxu0
      %2786 = vmatprep.mubr.bf16.mxu0 0
      %2787 = vmatmul.mubr.bf16.gmra.mrb[0].mxu0 %v2644
      %v2788 = vpop.f32.mrb[0].mxu0
      %v2789 = vadd.f32 0.0, %v2788
      %v2790 = vpop.f32.mrb[0].mxu0
      %v2791 = vpop.f32.mrb[0].mxu0
      %v2792 = vadd.f32 0.0, %v2791
      %v2793 = vpop.f32.mrb[0].mxu0
      %2794 = vmatprep.mubr.bf16.mxu0 0
      %2795 = vmatmul.mubr.bf16.gmra.mrb[0].mxu0 %v2647
      %v2796 = vpop.f32.mrb[0].mxu0
      %v2797 = vadd.f32 0.0, %v2796
      %v2798 = vpop.f32.mrb[0].mxu0
      %v2799 = vpop.f32.mrb[0].mxu0
      %v2800 = vadd.f32 0.0, %v2799
      %v2801 = vpop.f32.mrb[0].mxu0
      %2802 = vmatprep.mubr.bf16.mxu0 0
      %2803 = vmatmul.mubr.bf16.gmra.mrb[0].mxu0 %v2650
      %v2804 = vpop.f32.mrb[0].mxu0
      %v2805 = vadd.f32 0.0, %v2804
      %v2806 = vpop.f32.mrb[0].mxu0
      %v2807 = vpop.f32.mrb[0].mxu0
      %v2808 = vadd.f32 0.0, %v2807
      %v2809 = vpop.f32.mrb[0].mxu0
      %2810 = vmatprep.mubr.bf16.mxu0 0
      %2811 = vmatmul.mubr.bf16.gmra.mrb[0].mxu0 %v2653
      %v2812 = vpop.f32.mrb[0].mxu0
      %v2813 = vadd.f32 0.0, %v2812
      %v2814 = vpop.f32.mrb[0].mxu0
      %v2815 = vpop.f32.mrb[0].mxu0
      %v2816 = vadd.f32 0.0, %v2815
      %v2817 = vpop.f32.mrb[0].mxu0
      %2818 = vdwg.mxu0
      %v2819 = vadd.f32 %v2557, %v2693
      %v2820 = vadd.f32 %v2558, %v2696
      %v2821 = vadd.f32 %v2559, %v2701
      %v2822 = vadd.f32 %v2560, %v2704
      %v2823 = vadd.f32 %v2561, %v2709
      %v2824 = vadd.f32 %v2562, %v2712
      %v2825 = vadd.f32 %v2563, %v2717
      %v2826 = vadd.f32 %v2564, %v2720
      %v2827 = vadd.f32 %v2565, %v2725
      %v2828 = vadd.f32 %v2566, %v2728
      %v2829 = vadd.f32 %v2567, %v2733
      %v2830 = vadd.f32 %v2568, %v2736
      %v2831 = vadd.f32 %v2569, %v2741
      %v2832 = vadd.f32 %v2570, %v2744
      %v2833 = vadd.f32 %v2571, %v2749
      %v2834 = vadd.f32 %v2572, %v2752
      %v2835 = vadd.f32 %v2573, %v2757
      %v2836 = vadd.f32 %v2574, %v2760
      %v2837 = vadd.f32 %v2575, %v2765
      %v2838 = vadd.f32 %v2576, %v2768
      %v2839 = vadd.f32 %v2577, %v2773
      %v2840 = vadd.f32 %v2578, %v2776
      %v2841 = vadd.f32 %v2579, %v2781
      %v2842 = vadd.f32 %v2580, %v2784
      %v2843 = vadd.f32 %v2581, %v2789
      %v2844 = vadd.f32 %v2582, %v2792
      %v2845 = vadd.f32 %v2583, %v2797
      %v2846 = vadd.f32 %v2584, %v2800
      %v2847 = vadd.f32 %v2585, %v2805
      %v2848 = vadd.f32 %v2586, %v2808
      %v2849 = vadd.f32 %v2587, %v2813
      %v2850 = vadd.f32 %v2588, %v2816
      %2851 = vst.msk [vmem:[#allocation2] sm:$0xff] %vm499, %v2819
      %2852 = vst.msk [vmem:[#allocation2 + $0x8] sm:$0xff] %vm499, %v2820
      %2853 = vst.msk [vmem:[#allocation2 + $0x10] sm:$0xff] %vm499, %v2821
      %2854 = vst.msk [vmem:[#allocation2 + $0x18] sm:$0xff] %vm499, %v2822
      %2855 = vst.msk [vmem:[#allocation2 + $0x20] sm:$0xff] %vm499, %v2823
      %2856 = vst.msk [vmem:[#allocation2 + $0x28] sm:$0xff] %vm499, %v2824
      %2857 = vst.msk [vmem:[#allocation2 + $0x30] sm:$0xff] %vm499, %v2825
      %2858 = vst.msk [vmem:[#allocation2 + $0x38] sm:$0xff] %vm499, %v2826
      %2859 = vst.msk [vmem:[#allocation2 + $0x40] sm:$0xff] %vm499, %v2827
      %2860 = vst.msk [vmem:[#allocation2 + $0x48] sm:$0xff] %vm499, %v2828
      %2861 = vst.msk [vmem:[#allocation2 + $0x50] sm:$0xff] %vm499, %v2829
      %2862 = vst.msk [vmem:[#allocation2 + $0x58] sm:$0xff] %vm499, %v2830
      %2863 = vst.msk [vmem:[#allocation2 + $0x60] sm:$0xff] %vm499, %v2831
      %2864 = vst.msk [vmem:[#allocation2 + $0x68] sm:$0xff] %vm499, %v2832
      %2865 = vst.msk [vmem:[#allocation2 + $0x70] sm:$0xff] %vm499, %v2833
      %2866 = vst.msk [vmem:[#allocation2 + $0x78] sm:$0xff] %vm499, %v2834
      %2867 = vst.msk [vmem:[#allocation2 + $0x80] sm:$0xff] %vm499, %v2835
      %2868 = vst.msk [vmem:[#allocation2 + $0x88] sm:$0xff] %vm499, %v2836
      %2869 = vst.msk [vmem:[#allocation2 + $0x90] sm:$0xff] %vm499, %v2837
      %2870 = vst.msk [vmem:[#allocation2 + $0x98] sm:$0xff] %vm499, %v2838
      %2871 = vst.msk [vmem:[#allocation2 + $0xa0] sm:$0xff] %vm499, %v2839
      %2872 = vst.msk [vmem:[#allocation2 + $0xa8] sm:$0xff] %vm499, %v2840
      %2873 = vst.msk [vmem:[#allocation2 + $0xb0] sm:$0xff] %vm499, %v2841
      %2874 = vst.msk [vmem:[#allocation2 + $0xb8] sm:$0xff] %vm499, %v2842
      %2875 = vst.msk [vmem:[#allocation2 + $0xc0] sm:$0xff] %vm499, %v2843
      %2876 = vst.msk [vmem:[#allocation2 + $0xc8] sm:$0xff] %vm499, %v2844
      %2877 = vst.msk [vmem:[#allocation2 + $0xd0] sm:$0xff] %vm499, %v2845
      %2878 = vst.msk [vmem:[#allocation2 + $0xd8] sm:$0xff] %vm499, %v2846
      %2879 = vst.msk [vmem:[#allocation2 + $0xe0] sm:$0xff] %vm499, %v2847
      %2880 = vst.msk [vmem:[#allocation2 + $0xe8] sm:$0xff] %vm499, %v2848
      %2881 = vst.msk [vmem:[#allocation2 + $0xf0] sm:$0xff] %vm499, %v2849
      %2882 = vst.msk [vmem:[#allocation2 + $0xf8] sm:$0xff] %vm499, %v2850
      %v2883 = vld [vmem:[#allocation2] sm:$0xff]
      %v2884 = vld [vmem:[#allocation2 + $0x8] sm:$0xff]
      %v2885 = vld [vmem:[#allocation2 + $0x10] sm:$0xff]
      %v2886 = vld [vmem:[#allocation2 + $0x18] sm:$0xff]
      %v2887 = vld [vmem:[#allocation2 + $0x20] sm:$0xff]
      %v2888 = vld [vmem:[#allocation2 + $0x28] sm:$0xff]
      %v2889 = vld [vmem:[#allocation2 + $0x30] sm:$0xff]
      %v2890 = vld [vmem:[#allocation2 + $0x38] sm:$0xff]
      %v2891 = vld [vmem:[#allocation2 + $0x40] sm:$0xff]
      %v2892 = vld [vmem:[#allocation2 + $0x48] sm:$0xff]
      %v2893 = vld [vmem:[#allocation2 + $0x50] sm:$0xff]
      %v2894 = vld [vmem:[#allocation2 + $0x58] sm:$0xff]
      %v2895 = vld [vmem:[#allocation2 + $0x60] sm:$0xff]
      %v2896 = vld [vmem:[#allocation2 + $0x68] sm:$0xff]
      %v2897 = vld [vmem:[#allocation2 + $0x70] sm:$0xff]
      %v2898 = vld [vmem:[#allocation2 + $0x78] sm:$0xff]
      %v2899 = vld [vmem:[#allocation2 + $0x80] sm:$0xff]
      %v2900 = vld [vmem:[#allocation2 + $0x88] sm:$0xff]
      %v2901 = vld [vmem:[#allocation2 + $0x90] sm:$0xff]
      %v2902 = vld [vmem:[#allocation2 + $0x98] sm:$0xff]
      %v2903 = vld [vmem:[#allocation2 + $0xa0] sm:$0xff]
      %v2904 = vld [vmem:[#allocation2 + $0xa8] sm:$0xff]
      %v2905 = vld [vmem:[#allocation2 + $0xb0] sm:$0xff]
      %v2906 = vld [vmem:[#allocation2 + $0xb8] sm:$0xff]
      %v2907 = vld [vmem:[#allocation2 + $0xc0] sm:$0xff]
      %v2908 = vld [vmem:[#allocation2 + $0xc8] sm:$0xff]
      %v2909 = vld [vmem:[#allocation2 + $0xd0] sm:$0xff]
      %v2910 = vld [vmem:[#allocation2 + $0xd8] sm:$0xff]
      %v2911 = vld [vmem:[#allocation2 + $0xe0] sm:$0xff]
      %v2912 = vld [vmem:[#allocation2 + $0xe8] sm:$0xff]
      %v2913 = vld [vmem:[#allocation2 + $0xf0] sm:$0xff]
      %v2914 = vld [vmem:[#allocation2 + $0xf8] sm:$0xff]
      %v2915 = vld [vmem:[%s2] sm:$0x1]
      %v2917 = vlaneseq
      %v2918 = vshrl.u32 %v2917, 7
      %v2919 = vsub.s32 0, %v2918
      %v2920 = vrot.slane %v2915, %v2919
      %v2922 = vadd.f32 %v2883, %v2920
      %v2923 = vadd.f32 %v2884, %v2920
      %v2924 = vadd.f32 %v2885, %v2920
      %v2925 = vadd.f32 %v2886, %v2920
      %v2926 = vadd.f32 %v2887, %v2920
      %v2927 = vadd.f32 %v2888, %v2920
      %v2928 = vadd.f32 %v2889, %v2920
      %v2929 = vadd.f32 %v2890, %v2920
      %v2930 = vadd.f32 %v2891, %v2920
      %v2931 = vadd.f32 %v2892, %v2920
      %v2932 = vadd.f32 %v2893, %v2920
      %v2933 = vadd.f32 %v2894, %v2920
      %v2934 = vadd.f32 %v2895, %v2920
      %v2935 = vadd.f32 %v2896, %v2920
      %v2936 = vadd.f32 %v2897, %v2920
      %v2937 = vadd.f32 %v2898, %v2920
      %v2938 = vadd.f32 %v2899, %v2920
      %v2939 = vadd.f32 %v2900, %v2920
      %v2940 = vadd.f32 %v2901, %v2920
      %v2941 = vadd.f32 %v2902, %v2920
      %v2942 = vadd.f32 %v2903, %v2920
      %v2943 = vadd.f32 %v2904, %v2920
      %v2944 = vadd.f32 %v2905, %v2920
      %v2945 = vadd.f32 %v2906, %v2920
      %v2946 = vadd.f32 %v2907, %v2920
      %v2947 = vadd.f32 %v2908, %v2920
      %v2948 = vadd.f32 %v2909, %v2920
      %v2949 = vadd.f32 %v2910, %v2920
      %v2950 = vadd.f32 %v2911, %v2920
      %v2951 = vadd.f32 %v2912, %v2920
      %v2952 = vadd.f32 %v2913, %v2920
      %v2953 = vadd.f32 %v2914, %v2920
      %v2954 = vadd.f32 %v2922, 3.0
      %v2955 = vadd.f32 %v2923, 3.0
      %v2956 = vadd.f32 %v2924, 3.0
      %v2957 = vadd.f32 %v2925, 3.0
      %v2958 = vadd.f32 %v2926, 3.0
      %v2959 = vadd.f32 %v2927, 3.0
      %v2960 = vadd.f32 %v2928, 3.0
      %v2961 = vadd.f32 %v2929, 3.0
      %v2962 = vadd.f32 %v2930, 3.0
      %v2963 = vadd.f32 %v2931, 3.0
      %v2964 = vadd.f32 %v2932, 3.0
      %v2965 = vadd.f32 %v2933, 3.0
      %v2966 = vadd.f32 %v2934, 3.0
      %v2967 = vadd.f32 %v2935, 3.0
      %v2968 = vadd.f32 %v2936, 3.0
      %v2969 = vadd.f32 %v2937, 3.0
      %v2970 = vadd.f32 %v2938, 3.0
      %v2971 = vadd.f32 %v2939, 3.0
      %v2972 = vadd.f32 %v2940, 3.0
      %v2973 = vadd.f32 %v2941, 3.0
      %v2974 = vadd.f32 %v2942, 3.0
      %v2975 = vadd.f32 %v2943, 3.0
      %v2976 = vadd.f32 %v2944, 3.0
      %v2977 = vadd.f32 %v2945, 3.0
      %v2978 = vadd.f32 %v2946, 3.0
      %v2979 = vadd.f32 %v2947, 3.0
      %v2980 = vadd.f32 %v2948, 3.0
      %v2981 = vadd.f32 %v2949, 3.0
      %v2982 = vadd.f32 %v2950, 3.0
      %v2983 = vadd.f32 %v2951, 3.0
      %v2984 = vadd.f32 %v2952, 3.0
      %v2985 = vadd.f32 %v2953, 3.0
      %v2986 = vmax.f32 %v2954, 0.0
      %v2987 = vmax.f32 %v2955, 0.0
      %v2988 = vmax.f32 %v2956, 0.0
      %v2989 = vmax.f32 %v2957, 0.0
      %v2990 = vmax.f32 %v2958, 0.0
      %v2991 = vmax.f32 %v2959, 0.0
      %v2992 = vmax.f32 %v2960, 0.0
      %v2993 = vmax.f32 %v2961, 0.0
      %v2994 = vmax.f32 %v2962, 0.0
      %v2995 = vmax.f32 %v2963, 0.0
      %v2996 = vmax.f32 %v2964, 0.0
      %v2997 = vmax.f32 %v2965, 0.0
      %v2998 = vmax.f32 %v2966, 0.0
      %v2999 = vmax.f32 %v2967, 0.0
      %v3000 = vmax.f32 %v2968, 0.0
      %v3001 = vmax.f32 %v2969, 0.0
      %v3002 = vmax.f32 %v2970, 0.0
      %v3003 = vmax.f32 %v2971, 0.0
      %v3004 = vmax.f32 %v2972, 0.0
      %v3005 = vmax.f32 %v2973, 0.0
      %v3006 = vmax.f32 %v2974, 0.0
      %v3007 = vmax.f32 %v2975, 0.0
      %v3008 = vmax.f32 %v2976, 0.0
      %v3009 = vmax.f32 %v2977, 0.0
      %v3010 = vmax.f32 %v2978, 0.0
      %v3011 = vmax.f32 %v2979, 0.0
      %v3012 = vmax.f32 %v2980, 0.0
      %v3013 = vmax.f32 %v2981, 0.0
      %v3014 = vmax.f32 %v2982, 0.0
      %v3015 = vmax.f32 %v2983, 0.0
      %v3016 = vmax.f32 %v2984, 0.0
      %v3017 = vmax.f32 %v2985, 0.0
      %v3018 = vmin.f32 %v2986, 6.0
      %v3019 = vmin.f32 %v2987, 6.0
      %v3020 = vmin.f32 %v2988, 6.0
      %v3021 = vmin.f32 %v2989, 6.0
      %v3022 = vmin.f32 %v2990, 6.0
      %v3023 = vmin.f32 %v2991, 6.0
      %v3024 = vmin.f32 %v2992, 6.0
      %v3025 = vmin.f32 %v2993, 6.0
      %v3026 = vmin.f32 %v2994, 6.0
      %v3027 = vmin.f32 %v2995, 6.0
      %v3028 = vmin.f32 %v2996, 6.0
      %v3029 = vmin.f32 %v2997, 6.0
      %v3030 = vmin.f32 %v2998, 6.0
      %v3031 = vmin.f32 %v2999, 6.0
      %v3032 = vmin.f32 %v3000, 6.0
      %v3033 = vmin.f32 %v3001, 6.0
      %v3034 = vmin.f32 %v3002, 6.0
      %v3035 = vmin.f32 %v3003, 6.0
      %v3036 = vmin.f32 %v3004, 6.0
      %v3037 = vmin.f32 %v3005, 6.0
      %v3038 = vmin.f32 %v3006, 6.0
      %v3039 = vmin.f32 %v3007, 6.0
      %v3040 = vmin.f32 %v3008, 6.0
      %v3041 = vmin.f32 %v3009, 6.0
      %v3042 = vmin.f32 %v3010, 6.0
      %v3043 = vmin.f32 %v3011, 6.0
      %v3044 = vmin.f32 %v3012, 6.0
      %v3045 = vmin.f32 %v3013, 6.0
      %v3046 = vmin.f32 %v3014, 6.0
      %v3047 = vmin.f32 %v3015, 6.0
      %v3048 = vmin.f32 %v3016, 6.0
      %v3049 = vmin.f32 %v3017, 6.0
      %v3050 = vmul.f32 %v2922, %v3018
      %v3051 = vmul.f32 %v2923, %v3019
      %v3052 = vmul.f32 %v2924, %v3020
      %v3053 = vmul.f32 %v2925, %v3021
      %v3054 = vmul.f32 %v2926, %v3022
      %v3055 = vmul.f32 %v2927, %v3023
      %v3056 = vmul.f32 %v2928, %v3024
      %v3057 = vmul.f32 %v2929, %v3025
      %v3058 = vmul.f32 %v2930, %v3026
      %v3059 = vmul.f32 %v2931, %v3027
      %v3060 = vmul.f32 %v2932, %v3028
      %v3061 = vmul.f32 %v2933, %v3029
      %v3062 = vmul.f32 %v2934, %v3030
      %v3063 = vmul.f32 %v2935, %v3031
      %v3064 = vmul.f32 %v2936, %v3032
      %v3065 = vmul.f32 %v2937, %v3033
      %v3066 = vmul.f32 %v2938, %v3034
      %v3067 = vmul.f32 %v2939, %v3035
      %v3068 = vmul.f32 %v2940, %v3036
      %v3069 = vmul.f32 %v2941, %v3037
      %v3070 = vmul.f32 %v2942, %v3038
      %v3071 = vmul.f32 %v2943, %v3039
      %v3072 = vmul.f32 %v2944, %v3040
      %v3073 = vmul.f32 %v2945, %v3041
      %v3074 = vmul.f32 %v2946, %v3042
      %v3075 = vmul.f32 %v2947, %v3043
      %v3076 = vmul.f32 %v2948, %v3044
      %v3077 = vmul.f32 %v2949, %v3045
      %v3078 = vmul.f32 %v2950, %v3046
      %v3079 = vmul.f32 %v2951, %v3047
      %v3080 = vmul.f32 %v2952, %v3048
      %v3081 = vmul.f32 %v2953, %v3049
      %v3082 = vmul.f32 %v3050, 0.16666667
      %v3083 = vmul.f32 %v3051, 0.16666667
      %v3084 = vmul.f32 %v3052, 0.16666667
      %v3085 = vmul.f32 %v3053, 0.16666667
      %v3086 = vmul.f32 %v3054, 0.16666667
      %v3087 = vmul.f32 %v3055, 0.16666667
      %v3088 = vmul.f32 %v3056, 0.16666667
      %v3089 = vmul.f32 %v3057, 0.16666667
      %v3090 = vmul.f32 %v3058, 0.16666667
      %v3091 = vmul.f32 %v3059, 0.16666667
      %v3092 = vmul.f32 %v3060, 0.16666667
      %v3093 = vmul.f32 %v3061, 0.16666667
      %v3094 = vmul.f32 %v3062, 0.16666667
      %v3095 = vmul.f32 %v3063, 0.16666667
      %v3096 = vmul.f32 %v3064, 0.16666667
      %v3097 = vmul.f32 %v3065, 0.16666667
      %v3098 = vmul.f32 %v3066, 0.16666667
      %v3099 = vmul.f32 %v3067, 0.16666667
      %v3100 = vmul.f32 %v3068, 0.16666667
      %v3101 = vmul.f32 %v3069, 0.16666667
      %v3102 = vmul.f32 %v3070, 0.16666667
      %v3103 = vmul.f32 %v3071, 0.16666667
      %v3104 = vmul.f32 %v3072, 0.16666667
      %v3105 = vmul.f32 %v3073, 0.16666667
      %v3106 = vmul.f32 %v3074, 0.16666667
      %v3107 = vmul.f32 %v3075, 0.16666667
      %v3108 = vmul.f32 %v3076, 0.16666667
      %v3109 = vmul.f32 %v3077, 0.16666667
      %v3110 = vmul.f32 %v3078, 0.16666667
      %v3111 = vmul.f32 %v3079, 0.16666667
      %v3112 = vmul.f32 %v3080, 0.16666667
      %v3113 = vmul.f32 %v3081, 0.16666667
      %3114 = vst.msk [vmem:[%s170] sm:$0xff] %vm499, %v3082
      %3115 = vst.msk [vmem:[%s170 + $0x8] sm:$0xff] %vm499, %v3083
      %3116 = vst.msk [vmem:[%s170 + $0x10] sm:$0xff] %vm499, %v3084
      %3117 = vst.msk [vmem:[%s170 + $0x18] sm:$0xff] %vm499, %v3085
      %3118 = vst.msk [vmem:[%s170 + $0x20] sm:$0xff] %vm499, %v3086
      %3119 = vst.msk [vmem:[%s170 + $0x28] sm:$0xff] %vm499, %v3087
      %3120 = vst.msk [vmem:[%s170 + $0x30] sm:$0xff] %vm499, %v3088
      %3121 = vst.msk [vmem:[%s170 + $0x38] sm:$0xff] %vm499, %v3089
      %3122 = vst.msk [vmem:[%s170 + $0x40] sm:$0xff] %vm499, %v3090
      %3123 = vst.msk [vmem:[%s170 + $0x48] sm:$0xff] %vm499, %v3091
      %3124 = vst.msk [vmem:[%s170 + $0x50] sm:$0xff] %vm499, %v3092
      %3125 = vst.msk [vmem:[%s170 + $0x58] sm:$0xff] %vm499, %v3093
      %3126 = vst.msk [vmem:[%s170 + $0x60] sm:$0xff] %vm499, %v3094
      %3127 = vst.msk [vmem:[%s170 + $0x68] sm:$0xff] %vm499, %v3095
      %3128 = vst.msk [vmem:[%s170 + $0x70] sm:$0xff] %vm499, %v3096
      %3129 = vst.msk [vmem:[%s170 + $0x78] sm:$0xff] %vm499, %v3097
      %3130 = vst.msk [vmem:[%s170 + $0x80] sm:$0xff] %vm499, %v3098
      %3131 = vst.msk [vmem:[%s170 + $0x88] sm:$0xff] %vm499, %v3099
      %3132 = vst.msk [vmem:[%s170 + $0x90] sm:$0xff] %vm499, %v3100
      %3133 = vst.msk [vmem:[%s170 + $0x98] sm:$0xff] %vm499, %v3101
      %3134 = vst.msk [vmem:[%s170 + $0xa0] sm:$0xff] %vm499, %v3102
      %3135 = vst.msk [vmem:[%s170 + $0xa8] sm:$0xff] %vm499, %v3103
      %3136 = vst.msk [vmem:[%s170 + $0xb0] sm:$0xff] %vm499, %v3104
      %3137 = vst.msk [vmem:[%s170 + $0xb8] sm:$0xff] %vm499, %v3105
      %3138 = vst.msk [vmem:[%s170 + $0xc0] sm:$0xff] %vm499, %v3106
      %3139 = vst.msk [vmem:[%s170 + $0xc8] sm:$0xff] %vm499, %v3107
      %3140 = vst.msk [vmem:[%s170 + $0xd0] sm:$0xff] %vm499, %v3108
      %3141 = vst.msk [vmem:[%s170 + $0xd8] sm:$0xff] %vm499, %v3109
      %3142 = vst.msk [vmem:[%s170 + $0xe0] sm:$0xff] %vm499, %v3110
      %3143 = vst.msk [vmem:[%s170 + $0xe8] sm:$0xff] %vm499, %v3111
      %3144 = vst.msk [vmem:[%s170 + $0xf0] sm:$0xff] %vm499, %v3112
      %3145 = vst.msk [vmem:[%s170 + $0xf8] sm:$0xff] %vm499, %v3113
      %p3146 = scmp.lt.s32.totalorder %s14, 1
      %s3147 = scalar_select %p3146, %s14, 1
      %s3148 = smul.addr %s3147, 32
      %s3149 = smul.addr %s3148, 8
      %s3150 = scalar_lea.vmem %s3, %s3149
      // Predicated region
      $region33: #{_spp_forward_jit.3} parent=31 // pred_check
        %p3151 = pneg %p100
      $region34: #{_spp_forward_jit.3} parent=31 // pred_check_branch
        %3153 = sbr.rel (%p3151) target = $region36
      $region35: #{_spp_forward_jit.3} parent=31 // pred_region
        _
      $region36: #{_spp_forward_jit.3} parent=31 // pred_fallthru
        _
    $region32: #{_spp_forward_jit.3} parent=5 // pred_fallthru
      _
    %p3154 = scmp.le.s32.totalorder 2, %s9
    // Predicated region
    $region37: #{_spp_forward_jit.3} parent=5 // pred_check
      %p3155 = pneg %p3154
    $region38: #{_spp_forward_jit.3} parent=5 // pred_check_branch
      %3157 = sbr.rel (%p3155) target = $region40
    $region39: #{_spp_forward_jit.3} parent=5 // pred_region
      %s3158 = ssub.s32 %s9, 2
      // Predicated region
      $region41: #{_spp_forward_jit.3} parent=39 // pred_check
        %p3159 = pneg %p106
      $region42: #{_spp_forward_jit.3} parent=39 // pred_check_branch
        %3161 = sbr.rel (%p3159) target = $region44
      $region43: #{_spp_forward_jit.3} parent=39 // pred_region
        %p3162 = scmp.lt.s32.totalorder %s15, 1
        %s3163 = scalar_select %p3162, %s15, 1
        %s3164 = smul.addr %s3163, 32
        %s3165 = smul.addr %s3164, 8
        %s3166 = scalar_lea.vmem %s3, %s3165
      $region44: #{_spp_forward_jit.3} parent=39 // pred_fallthru
        _
    $region40: #{_spp_forward_jit.3} parent=5 // pred_fallthru
      _
  $region6: #{_spp_forward_jit.3} parent=0 // loop_footer
    %s13 = sadd.s32 1, %s9
  $region7: #{_spp_forward_jit.3} parent=0 // loop_footer_branch
    %8 = sbr.rel target = $region3
  $region8: #{_spp_forward_jit.3} parent=0 // loop_exit
    _

</llo_original>
